<compile_context>
chip_gen: v6e
topology: v6e:2x2x1
jax: 0.10.0
libtpu: 0.0.40
codegen_flags: <defaults>
</compile_context>

<pallas_src>
import jax
import jax.numpy as jnp
from jax.experimental import pallas as pl
from jax.experimental.pallas import tpu as pltpu

BETA = 0.9        # snn.Leaky(beta=0.9)
THRESHOLD = 1.0   # snn.Leaky default threshold, reset_mechanism='subtract'

_LANE = 128       # pad channel dims to multiples of the lane width
_SUBLANE = 8      # pad batch dim to multiples of the sublane width


def _round_up(n, m):
    return ((n + m - 1) // m) * m


def _mm(a, w):
    # MXU matmul: LHS cast to the (bf16) weight dtype, f32 accumulation.
    return jnp.dot(a.astype(w.dtype), w, preferred_element_type=jnp.float32)


def _lif_step(inp, mem_prev):
    """snntorch Leaky forward (reset_delay=True, subtract-reset):
       reset_t = H(mem_{t-1} - thr)
       mem_t   = beta * mem_{t-1} + in_t - reset_t * thr
       spk_t   = H(mem_t - thr)   (fast_sigmoid surrogate: heaviside fwd)
    """
    reset = (mem_prev > THRESHOLD).astype(jnp.float32)
    mem_new = BETA * mem_prev + inp - reset * THRESHOLD
    spk = (mem_new > THRESHOLD).astype(jnp.float32)
    return spk, mem_new


def _make_kernel(has_ds, c_pads, T, TB, c0_pad):
    num_layers = len(has_ds)
    # layer 0 always contributes 3 refs (bias folded into the fused weight);
    # deeper layers contribute 5 (with downsample) or 4 refs; +2 for FC.
    n_w = 3 + sum(5 if d else 4 for d in has_ds[1:]) + 2
    cp0 = c_pads[0]

    def kernel(*refs):
        x_ref = refs[0]
        w_refs = refs[1:1 + n_w]
        out_ref = refs[1 + n_w]

        def bb(ref):  # hoisted bias broadcast (JAX does not CSE broadcasts)
            return jnp.broadcast_to(ref[...], (TB, ref.shape[-1]))

        # ---- parse params; hoist the weights that are reused every timestep.
        idx = 0
        l0_w = w_refs[idx][...]          # fused conv1[+downsample], bias folded
        idx += 1
        l0_w2 = w_refs[idx][...]         # layer-0 conv2, reused T times
        idx += 1
        l0_b2 = bb(w_refs[idx])
        idx += 1
        rest = []
        for d in has_ds[1:]:
            if d:
                wf, b1, w2, b2, bd = w_refs[idx:idx + 5]
                idx += 5
                rest.append((wf[...], bb(b1), w2[...], bb(b2), bb(bd)))
            else:
                w1, b1, w2, b2 = w_refs[idx:idx + 4]
                idx += 4
                rest.append((w1[...], bb(b1), w2[...], bb(b2), None))
        fcT_ref = w_refs[idx]            # FC weights loaded at their single use
        fcb_ref = w_refs[idx + 1]

        # ---- layer-0 conv1 (+downsample) hoisted across ALL timesteps:
        # one (T*TB, c0_pad) x (c0_pad, width0) matmul (bias folded via the
        # constant-1 input lane) instead of T tiny TB-row matmuls.
        x_all = x_ref[...].reshape(T * TB, c0_pad)          # f32
        l0_all = _mm(x_all, l0_w)                           # (T*TB, width0) f32

        # LIF membrane states + rate-code accumulator are values carried
        # through the fully unrolled time loop (memFwd = init_leaky() == 0).
        mems = [jnp.zeros((TB, c_pads[li]), jnp.float32)
                for li in range(num_layers) for _ in range(3)]
        rate = jnp.zeros((TB, c_pads[-1]), jnp.float32)

        # T is small & static: the Python loop fully unrolls at trace time so
        # the scheduler can interleave MXU pushes with the VPU LIF updates.
        for t in range(T):
            row = l0_all[t * TB:(t + 1) * TB]               # sublane-aligned
            if has_ds[0]:
                a1 = row[:, :cp0]                           # conv1 + b1
                res = row[:, cp0:]                          # downsample + bd
            else:
                a1 = row
                res = x_all[t * TB:(t + 1) * TB, :cp0]      # identity residual
            spk1, mems[0] = _lif_step(a1, mems[0])
            spk2, mems[1] = _lif_step(_mm(spk1, l0_w2) + l0_b2, mems[1])
            xt, mems[2] = _lif_step(spk2 + res, mems[2])

            for li in range(1, num_layers):
                cp = c_pads[li]
                w1, b1b, w2, b2b, bdb = rest[li - 1]
                if has_ds[li]:
                    # conv1 + 1x1 downsample fused into one matmul on xt.
                    fused = _mm(xt, w1)
                    a1 = fused[:, :cp] + b1b
                    res = fused[:, cp:] + bdb
                else:
                    a1 = _mm(xt, w1) + b1b
                    res = xt                                # identity residual
                base = 3 * li
                spk1, mems[base] = _lif_step(a1, mems[base])
                spk2, mems[base + 1] = _lif_step(_mm(spk1, w2) + b2b,
                                                 mems[base + 1])
                xt, mems[base + 2] = _lif_step(spk2 + res, mems[base + 2])

            rate = rate + xt                                # rateCode temporal sum

        out_ref[...] = (_mm(rate, fcT_ref[...]) + bb(fcb_ref)).astype(out_ref.dtype)

    return kernel


def _pad2d(a, rows, cols, dtype=jnp.float32):
    return jnp.zeros((rows, cols), dtype).at[
        :a.shape[0], :a.shape[1]].set(a.astype(dtype))


def stcn_assembled_forward(x, layers, fcT, fcb):
    """x: (T, B, C0) float32.
    layers: list of dicts with keys w1T (Cin,Cout), b1 (1,Cout), w2T (Cout,Cout),
    b2 (1,Cout) and optionally wdT (Cin,Cout), bd (1,Cout).
    fcT: (Clast, nGestures), fcb: (1, nGestures)."""
    T, B, C0 = x.shape
    nG = fcT.shape[1]

    b_pad = _round_up(B, _SUBLANE)
    # +1 guarantees a spare input lane for the constant-1.0 bias-fold lane.
    c0_pad = _round_up(C0 + 1, _LANE)
    ng_pad = _round_up(nG, _LANE)

    # Batch tile: split into two tiles when possible so v7x's second
    # TensorCore gets half the (batch-independent) recurrence; 1 tile otherwise.
    TB = b_pad // 2 if (b_pad >= 16 and b_pad % 16 == 0) else b_pad
    grid = (b_pad // TB,)

    # Lane/sublane-dense zero-padding; lane C0 of real rows carries the
    # constant 1.0 that the folded layer-0 biases multiply against.
    x_p = (jnp.zeros((T, b_pad, c0_pad), jnp.float32)
           .at[:, :B, :C0].set(x.astype(jnp.float32))
           .at[:, :B, C0].set(1.0))

    has_ds = tuple('wdT' in lp for lp in layers)
    inputs = [x_p]
    c_pads = []
    c_in_pad = c0_pad
    for i, lp in enumerate(layers):
        c_out = lp['w1T'].shape[1]
        cp = _round_up(c_out, _LANE)
        c_pads.append(cp)
        w1T_p = _pad2d(lp['w1T'], c_in_pad, cp, jnp.bfloat16)
        b1_p = _pad2d(lp['b1'], 1, cp)
        w2T_p = _pad2d(lp['w2T'], cp, cp, jnp.bfloat16)
        b2_p = _pad2d(lp['b2'], 1, cp)
        if i == 0:
            # Fold b1 (and bd) into the constant-1 lane (row C0) of the
            # hoisted layer-0 weight; no bias refs needed for this layer.
            w1T_p = w1T_p.at[C0, :c_out].set(lp['b1'][0].astype(jnp.bfloat16))
            if 'wdT' in lp:
                wdT_p = _pad2d(lp['wdT'], c_in_pad, cp, jnp.bfloat16)
                wdT_p = wdT_p.at[C0, :c_out].set(lp['bd'][0].astype(jnp.bfloat16))
                inputs += [jnp.concatenate([w1T_p, wdT_p], axis=1), w2T_p, b2_p]
            else:
                inputs += [w1T_p, w2T_p, b2_p]
        else:
            if 'wdT' in lp:
                wdT_p = _pad2d(lp['wdT'], c_in_pad, cp, jnp.bfloat16)
                bd_p = _pad2d(lp['bd'], 1, cp)
                # Fuse conv1 and the downsample 1x1 conv (both consume xt).
                inputs += [jnp.concatenate([w1T_p, wdT_p], axis=1),
                           b1_p, w2T_p, b2_p, bd_p]
            else:
                inputs += [w1T_p, b1_p, w2T_p, b2_p]
        c_in_pad = cp
    inputs += [_pad2d(fcT, c_pads[-1], ng_pad, jnp.bfloat16),
               _pad2d(fcb, 1, ng_pad)]

    def w_spec(arr):
        nd = arr.ndim
        return pl.BlockSpec(arr.shape, lambda b, _nd=nd: (0,) * _nd)

    in_specs = ([pl.BlockSpec((T, TB, c0_pad), lambda b: (0, b, 0))]
                + [w_spec(a) for a in inputs[1:]])
    out_specs = pl.BlockSpec((TB, ng_pad), lambda b: (b, 0))

    kernel = _make_kernel(has_ds, tuple(c_pads), T, TB, c0_pad)

    in_bytes = sum(int(a.size) * a.dtype.itemsize for a in inputs)
    out_bytes = b_pad * ng_pad * 4
    # Cap well below v7x's 64 MiB physical VMEM per TensorCore.
    vmem_limit = int(min(48 << 20,
                         max(8 << 20, in_bytes + out_bytes + (4 << 20))))

    out_p = pl.pallas_call(
        kernel,
        out_shape=jax.ShapeDtypeStruct((b_pad, ng_pad), jnp.float32),
        grid_spec=pltpu.PrefetchScalarGridSpec(
            num_scalar_prefetch=0,
            grid=grid,                    # batch tiles; recurrence stays inside
            in_specs=in_specs,
            out_specs=out_specs),
        compiler_params=pltpu.CompilerParams(
            dimension_semantics=("parallel",),
            vmem_limit_bytes=vmem_limit),
    )(*inputs)
    return out_p[:B, :nG]


def reference_forward(x, layers, fcT, fcb):
    """Pure-JAX re-implementation of STCN_Assembled.forward for validation."""
    T, B, _ = x.shape

    def mm(a, w):
        return jnp.dot(a, w, preferred_element_type=jnp.float32)

    mems = []
    for lp in layers:
        c_out = lp['w1T'].shape[1]
        mems.append([jnp.zeros((B, c_out), jnp.float32) for _ in range(3)])
    rate = jnp.zeros((B, layers[-1]['w1T'].shape[1]), jnp.float32)

    for t in range(T):
        xt = x[t]
        for li, lp in enumerate(layers):
            spk1, mems[li][0] = _lif_step(mm(xt, lp['w1T']) + lp['b1'], mems[li][0])
            spk2, mems[li][1] = _lif_step(mm(spk1, lp['w2T']) + lp['b2'], mems[li][1])
            res = (mm(xt, lp['wdT']) + lp['bd']) if 'wdT' in lp else xt
            xt, mems[li][2] = _lif_step(spk2 + res, mems[li][2])
        rate = rate + xt
    return mm(rate, fcT) + fcb


def _quant(key, shape, scale, step=0.125, clip=2.0):
    # Quantize to multiples of 1/8 (and clip) so bf16 / MXU matmuls are exact
    # and the kernel-vs-reference check is robust to matmul precision modes.
    v = jax.random.normal(key, shape, jnp.float32) * scale
    return jnp.clip(jnp.round(v / step) * step, -clip, clip)


if __name__ == "__main__":
    # Shapes implied by the module: x is (T, B, nInputs); every timestep goes
    # through the block stack with spatial length 1; output is (B, nGestures).
    T, B = 8, 2
    nInputs = 4
    nStages = (16, 16)   # layer0 has downsample (4 != 16); layer1 identity residual
    nGestures = 5
    kernelSize = 3

    key = jax.random.PRNGKey(0)
    keys = iter(jax.random.split(key, 32))

    # Deterministic synthetic parameters. The module's N(0, 0.01) init would
    # never cross the spike threshold, so a larger scale is used to actually
    # exercise the LIF dynamics (values, not semantics, differ).
    layers = []
    c_in = nInputs
    for c_out in nStages:
        w1 = _quant(next(keys), (c_out, c_in, kernelSize), 0.5)   # conv1 (weight-norm folded)
        b1 = _quant(next(keys), (c_out,), 0.1)
        w2 = _quant(next(keys), (c_out, c_out, kernelSize), 0.5)  # conv2 (weight-norm folded)
        b2 = _quant(next(keys), (c_out,), 0.1)
        lp = {
            # center tap of the dilated 'same' conv applied to length-1 inputs
            'w1T': jnp.transpose(w1[:, :, kernelSize // 2]),
            'b1': b1.reshape(1, c_out),
            'w2T': jnp.transpose(w2[:, :, kernelSize // 2]),
            'b2': b2.reshape(1, c_out),
        }
        if c_in != c_out:  # downsample = 1x1 conv
            wd = _quant(next(keys), (c_out, c_in, 1), 0.5)
            bd = _quant(next(keys), (c_out,), 0.1)
            lp['wdT'] = jnp.transpose(wd[:, :, 0])
            lp['bd'] = bd.reshape(1, c_out)
        layers.append(lp)
        c_in = c_out

    fc_w = _quant(next(keys), (nGestures, nStages[-1]), 0.3)
    fc_b = _quant(next(keys), (nGestures,), 0.1)
    fcT = jnp.transpose(fc_w)
    fcb = fc_b.reshape(1, nGestures)

    x = _quant(next(keys), (T, B, nInputs), 1.0)

    out = stcn_assembled_forward(x, layers, fcT, fcb)
    out = jax.block_until_ready(out)

    assert out.shape == (B, nGestures), out.shape
    assert bool(jnp.all(jnp.isfinite(out)))

    ref = reference_forward(x, layers, fcT, fcb)
    if not jnp.allclose(out, ref, atol=1e-3, rtol=1e-3):
        raise AssertionError(
            "kernel/reference mismatch, max|diff|="
            f"{float(jnp.max(jnp.abs(out - ref)))}")

    print("KERNEL_OK")
</pallas_src>

<mosaic_0001>
module attributes {stable_mosaic.version = 11 : i64} {
  func.func @kernel(%arg0: i32, %arg1: memref<8x8x128xf32, #tpu.memory_space<vmem>>, %arg2: memref<128x256xbf16, #tpu.memory_space<vmem>>, %arg3: memref<128x128xbf16, #tpu.memory_space<vmem>>, %arg4: memref<1x128xf32, #tpu.memory_space<vmem>>, %arg5: memref<128x128xbf16, #tpu.memory_space<vmem>>, %arg6: memref<1x128xf32, #tpu.memory_space<vmem>>, %arg7: memref<128x128xbf16, #tpu.memory_space<vmem>>, %arg8: memref<1x128xf32, #tpu.memory_space<vmem>>, %arg9: memref<128x128xbf16, #tpu.memory_space<vmem>>, %arg10: memref<1x128xf32, #tpu.memory_space<vmem>>, %arg11: memref<8x128xf32, #tpu.memory_space<vmem>>) attributes {dimension_semantics = [#tpu.dimension_semantics<parallel>], iteration_bounds = array<i64: 1>, scalar_prefetch = 0 : i64, scratch_operands = 0 : i64, tpu.core_type = #tpu.core_type<tc>, window_params = [{transform_indices = @transform_0, window_bounds = array<i64: 8, 8, 128>}, {pipeline_mode = #tpu.pipeline_mode<synchronous>, transform_indices = @transform_1, window_bounds = array<i64: 128, 256>}, {pipeline_mode = #tpu.pipeline_mode<synchronous>, transform_indices = @transform_2, window_bounds = array<i64: 128, 128>}, {pipeline_mode = #tpu.pipeline_mode<synchronous>, transform_indices = @transform_3, window_bounds = array<i64: 1, 128>}, {pipeline_mode = #tpu.pipeline_mode<synchronous>, transform_indices = @transform_4, window_bounds = array<i64: 128, 128>}, {pipeline_mode = #tpu.pipeline_mode<synchronous>, transform_indices = @transform_5, window_bounds = array<i64: 1, 128>}, {pipeline_mode = #tpu.pipeline_mode<synchronous>, transform_indices = @transform_6, window_bounds = array<i64: 128, 128>}, {pipeline_mode = #tpu.pipeline_mode<synchronous>, transform_indices = @transform_7, window_bounds = array<i64: 1, 128>}, {pipeline_mode = #tpu.pipeline_mode<synchronous>, transform_indices = @transform_8, window_bounds = array<i64: 128, 128>}, {pipeline_mode = #tpu.pipeline_mode<synchronous>, transform_indices = @transform_9, window_bounds = array<i64: 1, 128>}, {transform_indices = @transform_10, window_bounds = array<i64: 8, 128>}]} {
    %c0 = arith.constant 0 : index
    %c0_0 = arith.constant 0 : index
    %0 = vector.load %arg2[%c0, %c0_0] : memref<128x256xbf16, #tpu.memory_space<vmem>>, vector<128x256xbf16>
    %c0_1 = arith.constant 0 : index
    %c0_2 = arith.constant 0 : index
    %1 = vector.load %arg3[%c0_1, %c0_2] : memref<128x128xbf16, #tpu.memory_space<vmem>>, vector<128x128xbf16>
    %c0_3 = arith.constant 0 : index
    %c0_4 = arith.constant 0 : index
    %2 = vector.load %arg4[%c0_3, %c0_4] : memref<1x128xf32, #tpu.memory_space<vmem>>, vector<1x128xf32>
    %3 = vector.shape_cast %2 : vector<1x128xf32> to vector<1x128xf32>
    %4 = vector.broadcast %3 : vector<1x128xf32> to vector<8x128xf32>
    %c0_5 = arith.constant 0 : index
    %c0_6 = arith.constant 0 : index
    %5 = vector.load %arg5[%c0_5, %c0_6] : memref<128x128xbf16, #tpu.memory_space<vmem>>, vector<128x128xbf16>
    %c0_7 = arith.constant 0 : index
    %c0_8 = arith.constant 0 : index
    %6 = vector.load %arg6[%c0_7, %c0_8] : memref<1x128xf32, #tpu.memory_space<vmem>>, vector<1x128xf32>
    %7 = vector.shape_cast %6 : vector<1x128xf32> to vector<1x128xf32>
    %8 = vector.broadcast %7 : vector<1x128xf32> to vector<8x128xf32>
    %c0_9 = arith.constant 0 : index
    %c0_10 = arith.constant 0 : index
    %9 = vector.load %arg7[%c0_9, %c0_10] : memref<128x128xbf16, #tpu.memory_space<vmem>>, vector<128x128xbf16>
    %c0_11 = arith.constant 0 : index
    %c0_12 = arith.constant 0 : index
    %10 = vector.load %arg8[%c0_11, %c0_12] : memref<1x128xf32, #tpu.memory_space<vmem>>, vector<1x128xf32>
    %11 = vector.shape_cast %10 : vector<1x128xf32> to vector<1x128xf32>
    %12 = vector.broadcast %11 : vector<1x128xf32> to vector<8x128xf32>
    %c0_13 = arith.constant 0 : index
    %c0_14 = arith.constant 0 : index
    %c0_15 = arith.constant 0 : index
    %13 = vector.load %arg1[%c0_13, %c0_14, %c0_15] : memref<8x8x128xf32, #tpu.memory_space<vmem>>, vector<8x8x128xf32>
    %14 = vector.shape_cast %13 : vector<8x8x128xf32> to vector<64x128xf32>
    %15 = arith.truncf %14 : vector<64x128xf32> to vector<64x128xbf16>
    %cst = arith.constant dense<0.000000e+00> : vector<64x256xf32>
    %16 = tpu.matmul %15, %0, %cst {dimension_numbers = #tpu.dot_dimension_numbers<[1], [0], [0], [1], [0, 0, 1, 1], [], []>} : vector<64x128xbf16>, vector<128x256xbf16>, vector<64x256xf32> -> vector<64x256xf32>
    %cst_16 = arith.constant 0.000000e+00 : f32
    %17 = vector.broadcast %cst_16 : f32 to vector<8x128xf32>
    %cst_17 = arith.constant 0.000000e+00 : f32
    %18 = vector.broadcast %cst_17 : f32 to vector<8x128xf32>
    %cst_18 = arith.constant 0.000000e+00 : f32
    %19 = vector.broadcast %cst_18 : f32 to vector<8x128xf32>
    %cst_19 = arith.constant 0.000000e+00 : f32
    %20 = vector.broadcast %cst_19 : f32 to vector<8x128xf32>
    %cst_20 = arith.constant 0.000000e+00 : f32
    %21 = vector.broadcast %cst_20 : f32 to vector<8x128xf32>
    %cst_21 = arith.constant 0.000000e+00 : f32
    %22 = vector.broadcast %cst_21 : f32 to vector<8x128xf32>
    %cst_22 = arith.constant 0.000000e+00 : f32
    %23 = vector.broadcast %cst_22 : f32 to vector<8x128xf32>
    %24 = vector.extract_strided_slice %16 {offsets = [0, 0], sizes = [8, 256], strides = [1, 1]} : vector<64x256xf32> to vector<8x256xf32>
    %25 = vector.extract_strided_slice %24 {offsets = [0, 0], sizes = [8, 128], strides = [1, 1]} : vector<8x256xf32> to vector<8x128xf32>
    %26 = vector.extract_strided_slice %24 {offsets = [0, 128], sizes = [8, 128], strides = [1, 1]} : vector<8x256xf32> to vector<8x128xf32>
    %cst_23 = arith.constant 1.000000e+00 : f32
    %27 = vector.broadcast %cst_23 : f32 to vector<8x128xf32>
    %28 = arith.cmpf ogt, %17, %27 : vector<8x128xf32>
    %29 = arith.extui %28 : vector<8x128xi1> to vector<8x128xi32>
    %30 = arith.sitofp %29 : vector<8x128xi32> to vector<8x128xf32>
    %cst_24 = arith.constant 0.899999976 : f32
    %31 = vector.broadcast %cst_24 : f32 to vector<8x128xf32>
    %32 = arith.mulf %31, %17 : vector<8x128xf32>
    %33 = arith.addf %32, %25 : vector<8x128xf32>
    %cst_25 = arith.constant 1.000000e+00 : f32
    %34 = vector.broadcast %cst_25 : f32 to vector<8x128xf32>
    %35 = arith.mulf %30, %34 : vector<8x128xf32>
    %36 = arith.subf %33, %35 : vector<8x128xf32>
    %cst_26 = arith.constant 1.000000e+00 : f32
    %37 = vector.broadcast %cst_26 : f32 to vector<8x128xf32>
    %38 = arith.cmpf ogt, %36, %37 : vector<8x128xf32>
    %39 = arith.extui %38 : vector<8x128xi1> to vector<8x128xi32>
    %40 = arith.sitofp %39 : vector<8x128xi32> to vector<8x128xf32>
    %41 = arith.truncf %40 : vector<8x128xf32> to vector<8x128xbf16>
    %cst_27 = arith.constant dense<0.000000e+00> : vector<8x128xf32>
    %42 = tpu.matmul %41, %1, %cst_27 {dimension_numbers = #tpu.dot_dimension_numbers<[1], [0], [0], [1], [0, 0, 1, 1], [], []>} : vector<8x128xbf16>, vector<128x128xbf16>, vector<8x128xf32> -> vector<8x128xf32>
    %43 = arith.addf %42, %4 : vector<8x128xf32>
    %cst_28 = arith.constant 1.000000e+00 : f32
    %44 = vector.broadcast %cst_28 : f32 to vector<8x128xf32>
    %45 = arith.cmpf ogt, %18, %44 : vector<8x128xf32>
    %46 = arith.extui %45 : vector<8x128xi1> to vector<8x128xi32>
    %47 = arith.sitofp %46 : vector<8x128xi32> to vector<8x128xf32>
    %cst_29 = arith.constant 0.899999976 : f32
    %48 = vector.broadcast %cst_29 : f32 to vector<8x128xf32>
    %49 = arith.mulf %48, %18 : vector<8x128xf32>
    %50 = arith.addf %49, %43 : vector<8x128xf32>
    %cst_30 = arith.constant 1.000000e+00 : f32
    %51 = vector.broadcast %cst_30 : f32 to vector<8x128xf32>
    %52 = arith.mulf %47, %51 : vector<8x128xf32>
    %53 = arith.subf %50, %52 : vector<8x128xf32>
    %cst_31 = arith.constant 1.000000e+00 : f32
    %54 = vector.broadcast %cst_31 : f32 to vector<8x128xf32>
    %55 = arith.cmpf ogt, %53, %54 : vector<8x128xf32>
    %56 = arith.extui %55 : vector<8x128xi1> to vector<8x128xi32>
    %57 = arith.sitofp %56 : vector<8x128xi32> to vector<8x128xf32>
    %58 = arith.addf %57, %26 : vector<8x128xf32>
    %cst_32 = arith.constant 1.000000e+00 : f32
    %59 = vector.broadcast %cst_32 : f32 to vector<8x128xf32>
    %60 = arith.cmpf ogt, %19, %59 : vector<8x128xf32>
    %61 = arith.extui %60 : vector<8x128xi1> to vector<8x128xi32>
    %62 = arith.sitofp %61 : vector<8x128xi32> to vector<8x128xf32>
    %cst_33 = arith.constant 0.899999976 : f32
    %63 = vector.broadcast %cst_33 : f32 to vector<8x128xf32>
    %64 = arith.mulf %63, %19 : vector<8x128xf32>
    %65 = arith.addf %64, %58 : vector<8x128xf32>
    %cst_34 = arith.constant 1.000000e+00 : f32
    %66 = vector.broadcast %cst_34 : f32 to vector<8x128xf32>
    %67 = arith.mulf %62, %66 : vector<8x128xf32>
    %68 = arith.subf %65, %67 : vector<8x128xf32>
    %cst_35 = arith.constant 1.000000e+00 : f32
    %69 = vector.broadcast %cst_35 : f32 to vector<8x128xf32>
    %70 = arith.cmpf ogt, %68, %69 : vector<8x128xf32>
    %71 = arith.extui %70 : vector<8x128xi1> to vector<8x128xi32>
    %72 = arith.sitofp %71 : vector<8x128xi32> to vector<8x128xf32>
    %73 = arith.truncf %72 : vector<8x128xf32> to vector<8x128xbf16>
    %cst_36 = arith.constant dense<0.000000e+00> : vector<8x128xf32>
    %74 = tpu.matmul %73, %5, %cst_36 {dimension_numbers = #tpu.dot_dimension_numbers<[1], [0], [0], [1], [0, 0, 1, 1], [], []>} : vector<8x128xbf16>, vector<128x128xbf16>, vector<8x128xf32> -> vector<8x128xf32>
    %75 = arith.addf %74, %8 : vector<8x128xf32>
    %cst_37 = arith.constant 1.000000e+00 : f32
    %76 = vector.broadcast %cst_37 : f32 to vector<8x128xf32>
    %77 = arith.cmpf ogt, %20, %76 : vector<8x128xf32>
    %78 = arith.extui %77 : vector<8x128xi1> to vector<8x128xi32>
    %79 = arith.sitofp %78 : vector<8x128xi32> to vector<8x128xf32>
    %cst_38 = arith.constant 0.899999976 : f32
    %80 = vector.broadcast %cst_38 : f32 to vector<8x128xf32>
    %81 = arith.mulf %80, %20 : vector<8x128xf32>
    %82 = arith.addf %81, %75 : vector<8x128xf32>
    %cst_39 = arith.constant 1.000000e+00 : f32
    %83 = vector.broadcast %cst_39 : f32 to vector<8x128xf32>
    %84 = arith.mulf %79, %83 : vector<8x128xf32>
    %85 = arith.subf %82, %84 : vector<8x128xf32>
    %cst_40 = arith.constant 1.000000e+00 : f32
    %86 = vector.broadcast %cst_40 : f32 to vector<8x128xf32>
    %87 = arith.cmpf ogt, %85, %86 : vector<8x128xf32>
    %88 = arith.extui %87 : vector<8x128xi1> to vector<8x128xi32>
    %89 = arith.sitofp %88 : vector<8x128xi32> to vector<8x128xf32>
    %90 = arith.truncf %89 : vector<8x128xf32> to vector<8x128xbf16>
    %cst_41 = arith.constant dense<0.000000e+00> : vector<8x128xf32>
    %91 = tpu.matmul %90, %9, %cst_41 {dimension_numbers = #tpu.dot_dimension_numbers<[1], [0], [0], [1], [0, 0, 1, 1], [], []>} : vector<8x128xbf16>, vector<128x128xbf16>, vector<8x128xf32> -> vector<8x128xf32>
    %92 = arith.addf %91, %12 : vector<8x128xf32>
    %cst_42 = arith.constant 1.000000e+00 : f32
    %93 = vector.broadcast %cst_42 : f32 to vector<8x128xf32>
    %94 = arith.cmpf ogt, %21, %93 : vector<8x128xf32>
    %95 = arith.extui %94 : vector<8x128xi1> to vector<8x128xi32>
    %96 = arith.sitofp %95 : vector<8x128xi32> to vector<8x128xf32>
    %cst_43 = arith.constant 0.899999976 : f32
    %97 = vector.broadcast %cst_43 : f32 to vector<8x128xf32>
    %98 = arith.mulf %97, %21 : vector<8x128xf32>
    %99 = arith.addf %98, %92 : vector<8x128xf32>
    %cst_44 = arith.constant 1.000000e+00 : f32
    %100 = vector.broadcast %cst_44 : f32 to vector<8x128xf32>
    %101 = arith.mulf %96, %100 : vector<8x128xf32>
    %102 = arith.subf %99, %101 : vector<8x128xf32>
    %cst_45 = arith.constant 1.000000e+00 : f32
    %103 = vector.broadcast %cst_45 : f32 to vector<8x128xf32>
    %104 = arith.cmpf ogt, %102, %103 : vector<8x128xf32>
    %105 = arith.extui %104 : vector<8x128xi1> to vector<8x128xi32>
    %106 = arith.sitofp %105 : vector<8x128xi32> to vector<8x128xf32>
    %107 = arith.addf %106, %72 : vector<8x128xf32>
    %cst_46 = arith.constant 1.000000e+00 : f32
    %108 = vector.broadcast %cst_46 : f32 to vector<8x128xf32>
    %109 = arith.cmpf ogt, %22, %108 : vector<8x128xf32>
    %110 = arith.extui %109 : vector<8x128xi1> to vector<8x128xi32>
    %111 = arith.sitofp %110 : vector<8x128xi32> to vector<8x128xf32>
    %cst_47 = arith.constant 0.899999976 : f32
    %112 = vector.broadcast %cst_47 : f32 to vector<8x128xf32>
    %113 = arith.mulf %112, %22 : vector<8x128xf32>
    %114 = arith.addf %113, %107 : vector<8x128xf32>
    %cst_48 = arith.constant 1.000000e+00 : f32
    %115 = vector.broadcast %cst_48 : f32 to vector<8x128xf32>
    %116 = arith.mulf %111, %115 : vector<8x128xf32>
    %117 = arith.subf %114, %116 : vector<8x128xf32>
    %cst_49 = arith.constant 1.000000e+00 : f32
    %118 = vector.broadcast %cst_49 : f32 to vector<8x128xf32>
    %119 = arith.cmpf ogt, %117, %118 : vector<8x128xf32>
    %120 = arith.extui %119 : vector<8x128xi1> to vector<8x128xi32>
    %121 = arith.sitofp %120 : vector<8x128xi32> to vector<8x128xf32>
    %122 = arith.addf %23, %121 : vector<8x128xf32>
    %123 = vector.extract_strided_slice %16 {offsets = [8, 0], sizes = [8, 256], strides = [1, 1]} : vector<64x256xf32> to vector<8x256xf32>
    %124 = vector.extract_strided_slice %123 {offsets = [0, 0], sizes = [8, 128], strides = [1, 1]} : vector<8x256xf32> to vector<8x128xf32>
    %125 = vector.extract_strided_slice %123 {offsets = [0, 128], sizes = [8, 128], strides = [1, 1]} : vector<8x256xf32> to vector<8x128xf32>
    %cst_50 = arith.constant 1.000000e+00 : f32
    %126 = vector.broadcast %cst_50 : f32 to vector<8x128xf32>
    %127 = arith.cmpf ogt, %36, %126 : vector<8x128xf32>
    %128 = arith.extui %127 : vector<8x128xi1> to vector<8x128xi32>
    %129 = arith.sitofp %128 : vector<8x128xi32> to vector<8x128xf32>
    %cst_51 = arith.constant 0.899999976 : f32
    %130 = vector.broadcast %cst_51 : f32 to vector<8x128xf32>
    %131 = arith.mulf %130, %36 : vector<8x128xf32>
    %132 = arith.addf %131, %124 : vector<8x128xf32>
    %cst_52 = arith.constant 1.000000e+00 : f32
    %133 = vector.broadcast %cst_52 : f32 to vector<8x128xf32>
    %134 = arith.mulf %129, %133 : vector<8x128xf32>
    %135 = arith.subf %132, %134 : vector<8x128xf32>
    %cst_53 = arith.constant 1.000000e+00 : f32
    %136 = vector.broadcast %cst_53 : f32 to vector<8x128xf32>
    %137 = arith.cmpf ogt, %135, %136 : vector<8x128xf32>
    %138 = arith.extui %137 : vector<8x128xi1> to vector<8x128xi32>
    %139 = arith.sitofp %138 : vector<8x128xi32> to vector<8x128xf32>
    %140 = arith.truncf %139 : vector<8x128xf32> to vector<8x128xbf16>
    %cst_54 = arith.constant dense<0.000000e+00> : vector<8x128xf32>
    %141 = tpu.matmul %140, %1, %cst_54 {dimension_numbers = #tpu.dot_dimension_numbers<[1], [0], [0], [1], [0, 0, 1, 1], [], []>} : vector<8x128xbf16>, vector<128x128xbf16>, vector<8x128xf32> -> vector<8x128xf32>
    %142 = arith.addf %141, %4 : vector<8x128xf32>
    %cst_55 = arith.constant 1.000000e+00 : f32
    %143 = vector.broadcast %cst_55 : f32 to vector<8x128xf32>
    %144 = arith.cmpf ogt, %53, %143 : vector<8x128xf32>
    %145 = arith.extui %144 : vector<8x128xi1> to vector<8x128xi32>
    %146 = arith.sitofp %145 : vector<8x128xi32> to vector<8x128xf32>
    %cst_56 = arith.constant 0.899999976 : f32
    %147 = vector.broadcast %cst_56 : f32 to vector<8x128xf32>
    %148 = arith.mulf %147, %53 : vector<8x128xf32>
    %149 = arith.addf %148, %142 : vector<8x128xf32>
    %cst_57 = arith.constant 1.000000e+00 : f32
    %150 = vector.broadcast %cst_57 : f32 to vector<8x128xf32>
    %151 = arith.mulf %146, %150 : vector<8x128xf32>
    %152 = arith.subf %149, %151 : vector<8x128xf32>
    %cst_58 = arith.constant 1.000000e+00 : f32
    %153 = vector.broadcast %cst_58 : f32 to vector<8x128xf32>
    %154 = arith.cmpf ogt, %152, %153 : vector<8x128xf32>
    %155 = arith.extui %154 : vector<8x128xi1> to vector<8x128xi32>
    %156 = arith.sitofp %155 : vector<8x128xi32> to vector<8x128xf32>
    %157 = arith.addf %156, %125 : vector<8x128xf32>
    %cst_59 = arith.constant 1.000000e+00 : f32
    %158 = vector.broadcast %cst_59 : f32 to vector<8x128xf32>
    %159 = arith.cmpf ogt, %68, %158 : vector<8x128xf32>
    %160 = arith.extui %159 : vector<8x128xi1> to vector<8x128xi32>
    %161 = arith.sitofp %160 : vector<8x128xi32> to vector<8x128xf32>
    %cst_60 = arith.constant 0.899999976 : f32
    %162 = vector.broadcast %cst_60 : f32 to vector<8x128xf32>
    %163 = arith.mulf %162, %68 : vector<8x128xf32>
    %164 = arith.addf %163, %157 : vector<8x128xf32>
    %cst_61 = arith.constant 1.000000e+00 : f32
    %165 = vector.broadcast %cst_61 : f32 to vector<8x128xf32>
    %166 = arith.mulf %161, %165 : vector<8x128xf32>
    %167 = arith.subf %164, %166 : vector<8x128xf32>
    %cst_62 = arith.constant 1.000000e+00 : f32
    %168 = vector.broadcast %cst_62 : f32 to vector<8x128xf32>
    %169 = arith.cmpf ogt, %167, %168 : vector<8x128xf32>
    %170 = arith.extui %169 : vector<8x128xi1> to vector<8x128xi32>
    %171 = arith.sitofp %170 : vector<8x128xi32> to vector<8x128xf32>
    %172 = arith.truncf %171 : vector<8x128xf32> to vector<8x128xbf16>
    %cst_63 = arith.constant dense<0.000000e+00> : vector<8x128xf32>
    %173 = tpu.matmul %172, %5, %cst_63 {dimension_numbers = #tpu.dot_dimension_numbers<[1], [0], [0], [1], [0, 0, 1, 1], [], []>} : vector<8x128xbf16>, vector<128x128xbf16>, vector<8x128xf32> -> vector<8x128xf32>
    %174 = arith.addf %173, %8 : vector<8x128xf32>
    %cst_64 = arith.constant 1.000000e+00 : f32
    %175 = vector.broadcast %cst_64 : f32 to vector<8x128xf32>
    %176 = arith.cmpf ogt, %85, %175 : vector<8x128xf32>
    %177 = arith.extui %176 : vector<8x128xi1> to vector<8x128xi32>
    %178 = arith.sitofp %177 : vector<8x128xi32> to vector<8x128xf32>
    %cst_65 = arith.constant 0.899999976 : f32
    %179 = vector.broadcast %cst_65 : f32 to vector<8x128xf32>
    %180 = arith.mulf %179, %85 : vector<8x128xf32>
    %181 = arith.addf %180, %174 : vector<8x128xf32>
    %cst_66 = arith.constant 1.000000e+00 : f32
    %182 = vector.broadcast %cst_66 : f32 to vector<8x128xf32>
    %183 = arith.mulf %178, %182 : vector<8x128xf32>
    %184 = arith.subf %181, %183 : vector<8x128xf32>
    %cst_67 = arith.constant 1.000000e+00 : f32
    %185 = vector.broadcast %cst_67 : f32 to vector<8x128xf32>
    %186 = arith.cmpf ogt, %184, %185 : vector<8x128xf32>
    %187 = arith.extui %186 : vector<8x128xi1> to vector<8x128xi32>
    %188 = arith.sitofp %187 : vector<8x128xi32> to vector<8x128xf32>
    %189 = arith.truncf %188 : vector<8x128xf32> to vector<8x128xbf16>
    %cst_68 = arith.constant dense<0.000000e+00> : vector<8x128xf32>
    %190 = tpu.matmul %189, %9, %cst_68 {dimension_numbers = #tpu.dot_dimension_numbers<[1], [0], [0], [1], [0, 0, 1, 1], [], []>} : vector<8x128xbf16>, vector<128x128xbf16>, vector<8x128xf32> -> vector<8x128xf32>
    %191 = arith.addf %190, %12 : vector<8x128xf32>
    %cst_69 = arith.constant 1.000000e+00 : f32
    %192 = vector.broadcast %cst_69 : f32 to vector<8x128xf32>
    %193 = arith.cmpf ogt, %102, %192 : vector<8x128xf32>
    %194 = arith.extui %193 : vector<8x128xi1> to vector<8x128xi32>
    %195 = arith.sitofp %194 : vector<8x128xi32> to vector<8x128xf32>
    %cst_70 = arith.constant 0.899999976 : f32
    %196 = vector.broadcast %cst_70 : f32 to vector<8x128xf32>
    %197 = arith.mulf %196, %102 : vector<8x128xf32>
    %198 = arith.addf %197, %191 : vector<8x128xf32>
    %cst_71 = arith.constant 1.000000e+00 : f32
    %199 = vector.broadcast %cst_71 : f32 to vector<8x128xf32>
    %200 = arith.mulf %195, %199 : vector<8x128xf32>
    %201 = arith.subf %198, %200 : vector<8x128xf32>
    %cst_72 = arith.constant 1.000000e+00 : f32
    %202 = vector.broadcast %cst_72 : f32 to vector<8x128xf32>
    %203 = arith.cmpf ogt, %201, %202 : vector<8x128xf32>
    %204 = arith.extui %203 : vector<8x128xi1> to vector<8x128xi32>
    %205 = arith.sitofp %204 : vector<8x128xi32> to vector<8x128xf32>
    %206 = arith.addf %205, %171 : vector<8x128xf32>
    %cst_73 = arith.constant 1.000000e+00 : f32
    %207 = vector.broadcast %cst_73 : f32 to vector<8x128xf32>
    %208 = arith.cmpf ogt, %117, %207 : vector<8x128xf32>
    %209 = arith.extui %208 : vector<8x128xi1> to vector<8x128xi32>
    %210 = arith.sitofp %209 : vector<8x128xi32> to vector<8x128xf32>
    %cst_74 = arith.constant 0.899999976 : f32
    %211 = vector.broadcast %cst_74 : f32 to vector<8x128xf32>
    %212 = arith.mulf %211, %117 : vector<8x128xf32>
    %213 = arith.addf %212, %206 : vector<8x128xf32>
    %cst_75 = arith.constant 1.000000e+00 : f32
    %214 = vector.broadcast %cst_75 : f32 to vector<8x128xf32>
    %215 = arith.mulf %210, %214 : vector<8x128xf32>
    %216 = arith.subf %213, %215 : vector<8x128xf32>
    %cst_76 = arith.constant 1.000000e+00 : f32
    %217 = vector.broadcast %cst_76 : f32 to vector<8x128xf32>
    %218 = arith.cmpf ogt, %216, %217 : vector<8x128xf32>
    %219 = arith.extui %218 : vector<8x128xi1> to vector<8x128xi32>
    %220 = arith.sitofp %219 : vector<8x128xi32> to vector<8x128xf32>
    %221 = arith.addf %122, %220 : vector<8x128xf32>
    %222 = vector.extract_strided_slice %16 {offsets = [16, 0], sizes = [8, 256], strides = [1, 1]} : vector<64x256xf32> to vector<8x256xf32>
    %223 = vector.extract_strided_slice %222 {offsets = [0, 0], sizes = [8, 128], strides = [1, 1]} : vector<8x256xf32> to vector<8x128xf32>
    %224 = vector.extract_strided_slice %222 {offsets = [0, 128], sizes = [8, 128], strides = [1, 1]} : vector<8x256xf32> to vector<8x128xf32>
    %cst_77 = arith.constant 1.000000e+00 : f32
    %225 = vector.broadcast %cst_77 : f32 to vector<8x128xf32>
    %226 = arith.cmpf ogt, %135, %225 : vector<8x128xf32>
    %227 = arith.extui %226 : vector<8x128xi1> to vector<8x128xi32>
    %228 = arith.sitofp %227 : vector<8x128xi32> to vector<8x128xf32>
    %cst_78 = arith.constant 0.899999976 : f32
    %229 = vector.broadcast %cst_78 : f32 to vector<8x128xf32>
    %230 = arith.mulf %229, %135 : vector<8x128xf32>
    %231 = arith.addf %230, %223 : vector<8x128xf32>
    %cst_79 = arith.constant 1.000000e+00 : f32
    %232 = vector.broadcast %cst_79 : f32 to vector<8x128xf32>
    %233 = arith.mulf %228, %232 : vector<8x128xf32>
    %234 = arith.subf %231, %233 : vector<8x128xf32>
    %cst_80 = arith.constant 1.000000e+00 : f32
    %235 = vector.broadcast %cst_80 : f32 to vector<8x128xf32>
    %236 = arith.cmpf ogt, %234, %235 : vector<8x128xf32>
    %237 = arith.extui %236 : vector<8x128xi1> to vector<8x128xi32>
    %238 = arith.sitofp %237 : vector<8x128xi32> to vector<8x128xf32>
    %239 = arith.truncf %238 : vector<8x128xf32> to vector<8x128xbf16>
    %cst_81 = arith.constant dense<0.000000e+00> : vector<8x128xf32>
    %240 = tpu.matmul %239, %1, %cst_81 {dimension_numbers = #tpu.dot_dimension_numbers<[1], [0], [0], [1], [0, 0, 1, 1], [], []>} : vector<8x128xbf16>, vector<128x128xbf16>, vector<8x128xf32> -> vector<8x128xf32>
    %241 = arith.addf %240, %4 : vector<8x128xf32>
    %cst_82 = arith.constant 1.000000e+00 : f32
    %242 = vector.broadcast %cst_82 : f32 to vector<8x128xf32>
    %243 = arith.cmpf ogt, %152, %242 : vector<8x128xf32>
    %244 = arith.extui %243 : vector<8x128xi1> to vector<8x128xi32>
    %245 = arith.sitofp %244 : vector<8x128xi32> to vector<8x128xf32>
    %cst_83 = arith.constant 0.899999976 : f32
    %246 = vector.broadcast %cst_83 : f32 to vector<8x128xf32>
    %247 = arith.mulf %246, %152 : vector<8x128xf32>
    %248 = arith.addf %247, %241 : vector<8x128xf32>
    %cst_84 = arith.constant 1.000000e+00 : f32
    %249 = vector.broadcast %cst_84 : f32 to vector<8x128xf32>
    %250 = arith.mulf %245, %249 : vector<8x128xf32>
    %251 = arith.subf %248, %250 : vector<8x128xf32>
    %cst_85 = arith.constant 1.000000e+00 : f32
    %252 = vector.broadcast %cst_85 : f32 to vector<8x128xf32>
    %253 = arith.cmpf ogt, %251, %252 : vector<8x128xf32>
    %254 = arith.extui %253 : vector<8x128xi1> to vector<8x128xi32>
    %255 = arith.sitofp %254 : vector<8x128xi32> to vector<8x128xf32>
    %256 = arith.addf %255, %224 : vector<8x128xf32>
    %cst_86 = arith.constant 1.000000e+00 : f32
    %257 = vector.broadcast %cst_86 : f32 to vector<8x128xf32>
    %258 = arith.cmpf ogt, %167, %257 : vector<8x128xf32>
    %259 = arith.extui %258 : vector<8x128xi1> to vector<8x128xi32>
    %260 = arith.sitofp %259 : vector<8x128xi32> to vector<8x128xf32>
    %cst_87 = arith.constant 0.899999976 : f32
    %261 = vector.broadcast %cst_87 : f32 to vector<8x128xf32>
    %262 = arith.mulf %261, %167 : vector<8x128xf32>
    %263 = arith.addf %262, %256 : vector<8x128xf32>
    %cst_88 = arith.constant 1.000000e+00 : f32
    %264 = vector.broadcast %cst_88 : f32 to vector<8x128xf32>
    %265 = arith.mulf %260, %264 : vector<8x128xf32>
    %266 = arith.subf %263, %265 : vector<8x128xf32>
    %cst_89 = arith.constant 1.000000e+00 : f32
    %267 = vector.broadcast %cst_89 : f32 to vector<8x128xf32>
    %268 = arith.cmpf ogt, %266, %267 : vector<8x128xf32>
    %269 = arith.extui %268 : vector<8x128xi1> to vector<8x128xi32>
    %270 = arith.sitofp %269 : vector<8x128xi32> to vector<8x128xf32>
    %271 = arith.truncf %270 : vector<8x128xf32> to vector<8x128xbf16>
    %cst_90 = arith.constant dense<0.000000e+00> : vector<8x128xf32>
    %272 = tpu.matmul %271, %5, %cst_90 {dimension_numbers = #tpu.dot_dimension_numbers<[1], [0], [0], [1], [0, 0, 1, 1], [], []>} : vector<8x128xbf16>, vector<128x128xbf16>, vector<8x128xf32> -> vector<8x128xf32>
    %273 = arith.addf %272, %8 : vector<8x128xf32>
    %cst_91 = arith.constant 1.000000e+00 : f32
    %274 = vector.broadcast %cst_91 : f32 to vector<8x128xf32>
    %275 = arith.cmpf ogt, %184, %274 : vector<8x128xf32>
    %276 = arith.extui %275 : vector<8x128xi1> to vector<8x128xi32>
    %277 = arith.sitofp %276 : vector<8x128xi32> to vector<8x128xf32>
    %cst_92 = arith.constant 0.899999976 : f32
    %278 = vector.broadcast %cst_92 : f32 to vector<8x128xf32>
    %279 = arith.mulf %278, %184 : vector<8x128xf32>
    %280 = arith.addf %279, %273 : vector<8x128xf32>
    %cst_93 = arith.constant 1.000000e+00 : f32
    %281 = vector.broadcast %cst_93 : f32 to vector<8x128xf32>
    %282 = arith.mulf %277, %281 : vector<8x128xf32>
    %283 = arith.subf %280, %282 : vector<8x128xf32>
    %cst_94 = arith.constant 1.000000e+00 : f32
    %284 = vector.broadcast %cst_94 : f32 to vector<8x128xf32>
    %285 = arith.cmpf ogt, %283, %284 : vector<8x128xf32>
    %286 = arith.extui %285 : vector<8x128xi1> to vector<8x128xi32>
    %287 = arith.sitofp %286 : vector<8x128xi32> to vector<8x128xf32>
    %288 = arith.truncf %287 : vector<8x128xf32> to vector<8x128xbf16>
    %cst_95 = arith.constant dense<0.000000e+00> : vector<8x128xf32>
    %289 = tpu.matmul %288, %9, %cst_95 {dimension_numbers = #tpu.dot_dimension_numbers<[1], [0], [0], [1], [0, 0, 1, 1], [], []>} : vector<8x128xbf16>, vector<128x128xbf16>, vector<8x128xf32> -> vector<8x128xf32>
    %290 = arith.addf %289, %12 : vector<8x128xf32>
    %cst_96 = arith.constant 1.000000e+00 : f32
    %291 = vector.broadcast %cst_96 : f32 to vector<8x128xf32>
    %292 = arith.cmpf ogt, %201, %291 : vector<8x128xf32>
    %293 = arith.extui %292 : vector<8x128xi1> to vector<8x128xi32>
    %294 = arith.sitofp %293 : vector<8x128xi32> to vector<8x128xf32>
    %cst_97 = arith.constant 0.899999976 : f32
    %295 = vector.broadcast %cst_97 : f32 to vector<8x128xf32>
    %296 = arith.mulf %295, %201 : vector<8x128xf32>
    %297 = arith.addf %296, %290 : vector<8x128xf32>
    %cst_98 = arith.constant 1.000000e+00 : f32
    %298 = vector.broadcast %cst_98 : f32 to vector<8x128xf32>
    %299 = arith.mulf %294, %298 : vector<8x128xf32>
    %300 = arith.subf %297, %299 : vector<8x128xf32>
    %cst_99 = arith.constant 1.000000e+00 : f32
    %301 = vector.broadcast %cst_99 : f32 to vector<8x128xf32>
    %302 = arith.cmpf ogt, %300, %301 : vector<8x128xf32>
    %303 = arith.extui %302 : vector<8x128xi1> to vector<8x128xi32>
    %304 = arith.sitofp %303 : vector<8x128xi32> to vector<8x128xf32>
    %305 = arith.addf %304, %270 : vector<8x128xf32>
    %cst_100 = arith.constant 1.000000e+00 : f32
    %306 = vector.broadcast %cst_100 : f32 to vector<8x128xf32>
    %307 = arith.cmpf ogt, %216, %306 : vector<8x128xf32>
    %308 = arith.extui %307 : vector<8x128xi1> to vector<8x128xi32>
    %309 = arith.sitofp %308 : vector<8x128xi32> to vector<8x128xf32>
    %cst_101 = arith.constant 0.899999976 : f32
    %310 = vector.broadcast %cst_101 : f32 to vector<8x128xf32>
    %311 = arith.mulf %310, %216 : vector<8x128xf32>
    %312 = arith.addf %311, %305 : vector<8x128xf32>
    %cst_102 = arith.constant 1.000000e+00 : f32
    %313 = vector.broadcast %cst_102 : f32 to vector<8x128xf32>
    %314 = arith.mulf %309, %313 : vector<8x128xf32>
    %315 = arith.subf %312, %314 : vector<8x128xf32>
    %cst_103 = arith.constant 1.000000e+00 : f32
    %316 = vector.broadcast %cst_103 : f32 to vector<8x128xf32>
    %317 = arith.cmpf ogt, %315, %316 : vector<8x128xf32>
    %318 = arith.extui %317 : vector<8x128xi1> to vector<8x128xi32>
    %319 = arith.sitofp %318 : vector<8x128xi32> to vector<8x128xf32>
    %320 = arith.addf %221, %319 : vector<8x128xf32>
    %321 = vector.extract_strided_slice %16 {offsets = [24, 0], sizes = [8, 256], strides = [1, 1]} : vector<64x256xf32> to vector<8x256xf32>
    %322 = vector.extract_strided_slice %321 {offsets = [0, 0], sizes = [8, 128], strides = [1, 1]} : vector<8x256xf32> to vector<8x128xf32>
    %323 = vector.extract_strided_slice %321 {offsets = [0, 128], sizes = [8, 128], strides = [1, 1]} : vector<8x256xf32> to vector<8x128xf32>
    %cst_104 = arith.constant 1.000000e+00 : f32
    %324 = vector.broadcast %cst_104 : f32 to vector<8x128xf32>
    %325 = arith.cmpf ogt, %234, %324 : vector<8x128xf32>
    %326 = arith.extui %325 : vector<8x128xi1> to vector<8x128xi32>
    %327 = arith.sitofp %326 : vector<8x128xi32> to vector<8x128xf32>
    %cst_105 = arith.constant 0.899999976 : f32
    %328 = vector.broadcast %cst_105 : f32 to vector<8x128xf32>
    %329 = arith.mulf %328, %234 : vector<8x128xf32>
    %330 = arith.addf %329, %322 : vector<8x128xf32>
    %cst_106 = arith.constant 1.000000e+00 : f32
    %331 = vector.broadcast %cst_106 : f32 to vector<8x128xf32>
    %332 = arith.mulf %327, %331 : vector<8x128xf32>
    %333 = arith.subf %330, %332 : vector<8x128xf32>
    %cst_107 = arith.constant 1.000000e+00 : f32
    %334 = vector.broadcast %cst_107 : f32 to vector<8x128xf32>
    %335 = arith.cmpf ogt, %333, %334 : vector<8x128xf32>
    %336 = arith.extui %335 : vector<8x128xi1> to vector<8x128xi32>
    %337 = arith.sitofp %336 : vector<8x128xi32> to vector<8x128xf32>
    %338 = arith.truncf %337 : vector<8x128xf32> to vector<8x128xbf16>
    %cst_108 = arith.constant dense<0.000000e+00> : vector<8x128xf32>
    %339 = tpu.matmul %338, %1, %cst_108 {dimension_numbers = #tpu.dot_dimension_numbers<[1], [0], [0], [1], [0, 0, 1, 1], [], []>} : vector<8x128xbf16>, vector<128x128xbf16>, vector<8x128xf32> -> vector<8x128xf32>
    %340 = arith.addf %339, %4 : vector<8x128xf32>
    %cst_109 = arith.constant 1.000000e+00 : f32
    %341 = vector.broadcast %cst_109 : f32 to vector<8x128xf32>
    %342 = arith.cmpf ogt, %251, %341 : vector<8x128xf32>
    %343 = arith.extui %342 : vector<8x128xi1> to vector<8x128xi32>
    %344 = arith.sitofp %343 : vector<8x128xi32> to vector<8x128xf32>
    %cst_110 = arith.constant 0.899999976 : f32
    %345 = vector.broadcast %cst_110 : f32 to vector<8x128xf32>
    %346 = arith.mulf %345, %251 : vector<8x128xf32>
    %347 = arith.addf %346, %340 : vector<8x128xf32>
    %cst_111 = arith.constant 1.000000e+00 : f32
    %348 = vector.broadcast %cst_111 : f32 to vector<8x128xf32>
    %349 = arith.mulf %344, %348 : vector<8x128xf32>
    %350 = arith.subf %347, %349 : vector<8x128xf32>
    %cst_112 = arith.constant 1.000000e+00 : f32
    %351 = vector.broadcast %cst_112 : f32 to vector<8x128xf32>
    %352 = arith.cmpf ogt, %350, %351 : vector<8x128xf32>
    %353 = arith.extui %352 : vector<8x128xi1> to vector<8x128xi32>
    %354 = arith.sitofp %353 : vector<8x128xi32> to vector<8x128xf32>
    %355 = arith.addf %354, %323 : vector<8x128xf32>
    %cst_113 = arith.constant 1.000000e+00 : f32
    %356 = vector.broadcast %cst_113 : f32 to vector<8x128xf32>
    %357 = arith.cmpf ogt, %266, %356 : vector<8x128xf32>
    %358 = arith.extui %357 : vector<8x128xi1> to vector<8x128xi32>
    %359 = arith.sitofp %358 : vector<8x128xi32> to vector<8x128xf32>
    %cst_114 = arith.constant 0.899999976 : f32
    %360 = vector.broadcast %cst_114 : f32 to vector<8x128xf32>
    %361 = arith.mulf %360, %266 : vector<8x128xf32>
    %362 = arith.addf %361, %355 : vector<8x128xf32>
    %cst_115 = arith.constant 1.000000e+00 : f32
    %363 = vector.broadcast %cst_115 : f32 to vector<8x128xf32>
    %364 = arith.mulf %359, %363 : vector<8x128xf32>
    %365 = arith.subf %362, %364 : vector<8x128xf32>
    %cst_116 = arith.constant 1.000000e+00 : f32
    %366 = vector.broadcast %cst_116 : f32 to vector<8x128xf32>
    %367 = arith.cmpf ogt, %365, %366 : vector<8x128xf32>
    %368 = arith.extui %367 : vector<8x128xi1> to vector<8x128xi32>
    %369 = arith.sitofp %368 : vector<8x128xi32> to vector<8x128xf32>
    %370 = arith.truncf %369 : vector<8x128xf32> to vector<8x128xbf16>
    %cst_117 = arith.constant dense<0.000000e+00> : vector<8x128xf32>
    %371 = tpu.matmul %370, %5, %cst_117 {dimension_numbers = #tpu.dot_dimension_numbers<[1], [0], [0], [1], [0, 0, 1, 1], [], []>} : vector<8x128xbf16>, vector<128x128xbf16>, vector<8x128xf32> -> vector<8x128xf32>
    %372 = arith.addf %371, %8 : vector<8x128xf32>
    %cst_118 = arith.constant 1.000000e+00 : f32
    %373 = vector.broadcast %cst_118 : f32 to vector<8x128xf32>
    %374 = arith.cmpf ogt, %283, %373 : vector<8x128xf32>
    %375 = arith.extui %374 : vector<8x128xi1> to vector<8x128xi32>
    %376 = arith.sitofp %375 : vector<8x128xi32> to vector<8x128xf32>
    %cst_119 = arith.constant 0.899999976 : f32
    %377 = vector.broadcast %cst_119 : f32 to vector<8x128xf32>
    %378 = arith.mulf %377, %283 : vector<8x128xf32>
    %379 = arith.addf %378, %372 : vector<8x128xf32>
    %cst_120 = arith.constant 1.000000e+00 : f32
    %380 = vector.broadcast %cst_120 : f32 to vector<8x128xf32>
    %381 = arith.mulf %376, %380 : vector<8x128xf32>
    %382 = arith.subf %379, %381 : vector<8x128xf32>
    %cst_121 = arith.constant 1.000000e+00 : f32
    %383 = vector.broadcast %cst_121 : f32 to vector<8x128xf32>
    %384 = arith.cmpf ogt, %382, %383 : vector<8x128xf32>
    %385 = arith.extui %384 : vector<8x128xi1> to vector<8x128xi32>
    %386 = arith.sitofp %385 : vector<8x128xi32> to vector<8x128xf32>
    %387 = arith.truncf %386 : vector<8x128xf32> to vector<8x128xbf16>
    %cst_122 = arith.constant dense<0.000000e+00> : vector<8x128xf32>
    %388 = tpu.matmul %387, %9, %cst_122 {dimension_numbers = #tpu.dot_dimension_numbers<[1], [0], [0], [1], [0, 0, 1, 1], [], []>} : vector<8x128xbf16>, vector<128x128xbf16>, vector<8x128xf32> -> vector<8x128xf32>
    %389 = arith.addf %388, %12 : vector<8x128xf32>
    %cst_123 = arith.constant 1.000000e+00 : f32
    %390 = vector.broadcast %cst_123 : f32 to vector<8x128xf32>
    %391 = arith.cmpf ogt, %300, %390 : vector<8x128xf32>
    %392 = arith.extui %391 : vector<8x128xi1> to vector<8x128xi32>
    %393 = arith.sitofp %392 : vector<8x128xi32> to vector<8x128xf32>
    %cst_124 = arith.constant 0.899999976 : f32
    %394 = vector.broadcast %cst_124 : f32 to vector<8x128xf32>
    %395 = arith.mulf %394, %300 : vector<8x128xf32>
    %396 = arith.addf %395, %389 : vector<8x128xf32>
    %cst_125 = arith.constant 1.000000e+00 : f32
    %397 = vector.broadcast %cst_125 : f32 to vector<8x128xf32>
    %398 = arith.mulf %393, %397 : vector<8x128xf32>
    %399 = arith.subf %396, %398 : vector<8x128xf32>
    %cst_126 = arith.constant 1.000000e+00 : f32
    %400 = vector.broadcast %cst_126 : f32 to vector<8x128xf32>
    %401 = arith.cmpf ogt, %399, %400 : vector<8x128xf32>
    %402 = arith.extui %401 : vector<8x128xi1> to vector<8x128xi32>
    %403 = arith.sitofp %402 : vector<8x128xi32> to vector<8x128xf32>
    %404 = arith.addf %403, %369 : vector<8x128xf32>
    %cst_127 = arith.constant 1.000000e+00 : f32
    %405 = vector.broadcast %cst_127 : f32 to vector<8x128xf32>
    %406 = arith.cmpf ogt, %315, %405 : vector<8x128xf32>
    %407 = arith.extui %406 : vector<8x128xi1> to vector<8x128xi32>
    %408 = arith.sitofp %407 : vector<8x128xi32> to vector<8x128xf32>
    %cst_128 = arith.constant 0.899999976 : f32
    %409 = vector.broadcast %cst_128 : f32 to vector<8x128xf32>
    %410 = arith.mulf %409, %315 : vector<8x128xf32>
    %411 = arith.addf %410, %404 : vector<8x128xf32>
    %cst_129 = arith.constant 1.000000e+00 : f32
    %412 = vector.broadcast %cst_129 : f32 to vector<8x128xf32>
    %413 = arith.mulf %408, %412 : vector<8x128xf32>
    %414 = arith.subf %411, %413 : vector<8x128xf32>
    %cst_130 = arith.constant 1.000000e+00 : f32
    %415 = vector.broadcast %cst_130 : f32 to vector<8x128xf32>
    %416 = arith.cmpf ogt, %414, %415 : vector<8x128xf32>
    %417 = arith.extui %416 : vector<8x128xi1> to vector<8x128xi32>
    %418 = arith.sitofp %417 : vector<8x128xi32> to vector<8x128xf32>
    %419 = arith.addf %320, %418 : vector<8x128xf32>
    %420 = vector.extract_strided_slice %16 {offsets = [32, 0], sizes = [8, 256], strides = [1, 1]} : vector<64x256xf32> to vector<8x256xf32>
    %421 = vector.extract_strided_slice %420 {offsets = [0, 0], sizes = [8, 128], strides = [1, 1]} : vector<8x256xf32> to vector<8x128xf32>
    %422 = vector.extract_strided_slice %420 {offsets = [0, 128], sizes = [8, 128], strides = [1, 1]} : vector<8x256xf32> to vector<8x128xf32>
    %cst_131 = arith.constant 1.000000e+00 : f32
    %423 = vector.broadcast %cst_131 : f32 to vector<8x128xf32>
    %424 = arith.cmpf ogt, %333, %423 : vector<8x128xf32>
    %425 = arith.extui %424 : vector<8x128xi1> to vector<8x128xi32>
    %426 = arith.sitofp %425 : vector<8x128xi32> to vector<8x128xf32>
    %cst_132 = arith.constant 0.899999976 : f32
    %427 = vector.broadcast %cst_132 : f32 to vector<8x128xf32>
    %428 = arith.mulf %427, %333 : vector<8x128xf32>
    %429 = arith.addf %428, %421 : vector<8x128xf32>
    %cst_133 = arith.constant 1.000000e+00 : f32
    %430 = vector.broadcast %cst_133 : f32 to vector<8x128xf32>
    %431 = arith.mulf %426, %430 : vector<8x128xf32>
    %432 = arith.subf %429, %431 : vector<8x128xf32>
    %cst_134 = arith.constant 1.000000e+00 : f32
    %433 = vector.broadcast %cst_134 : f32 to vector<8x128xf32>
    %434 = arith.cmpf ogt, %432, %433 : vector<8x128xf32>
    %435 = arith.extui %434 : vector<8x128xi1> to vector<8x128xi32>
    %436 = arith.sitofp %435 : vector<8x128xi32> to vector<8x128xf32>
    %437 = arith.truncf %436 : vector<8x128xf32> to vector<8x128xbf16>
    %cst_135 = arith.constant dense<0.000000e+00> : vector<8x128xf32>
    %438 = tpu.matmul %437, %1, %cst_135 {dimension_numbers = #tpu.dot_dimension_numbers<[1], [0], [0], [1], [0, 0, 1, 1], [], []>} : vector<8x128xbf16>, vector<128x128xbf16>, vector<8x128xf32> -> vector<8x128xf32>
    %439 = arith.addf %438, %4 : vector<8x128xf32>
    %cst_136 = arith.constant 1.000000e+00 : f32
    %440 = vector.broadcast %cst_136 : f32 to vector<8x128xf32>
    %441 = arith.cmpf ogt, %350, %440 : vector<8x128xf32>
    %442 = arith.extui %441 : vector<8x128xi1> to vector<8x128xi32>
    %443 = arith.sitofp %442 : vector<8x128xi32> to vector<8x128xf32>
    %cst_137 = arith.constant 0.899999976 : f32
    %444 = vector.broadcast %cst_137 : f32 to vector<8x128xf32>
    %445 = arith.mulf %444, %350 : vector<8x128xf32>
    %446 = arith.addf %445, %439 : vector<8x128xf32>
    %cst_138 = arith.constant 1.000000e+00 : f32
    %447 = vector.broadcast %cst_138 : f32 to vector<8x128xf32>
    %448 = arith.mulf %443, %447 : vector<8x128xf32>
    %449 = arith.subf %446, %448 : vector<8x128xf32>
    %cst_139 = arith.constant 1.000000e+00 : f32
    %450 = vector.broadcast %cst_139 : f32 to vector<8x128xf32>
    %451 = arith.cmpf ogt, %449, %450 : vector<8x128xf32>
    %452 = arith.extui %451 : vector<8x128xi1> to vector<8x128xi32>
    %453 = arith.sitofp %452 : vector<8x128xi32> to vector<8x128xf32>
    %454 = arith.addf %453, %422 : vector<8x128xf32>
    %cst_140 = arith.constant 1.000000e+00 : f32
    %455 = vector.broadcast %cst_140 : f32 to vector<8x128xf32>
    %456 = arith.cmpf ogt, %365, %455 : vector<8x128xf32>
    %457 = arith.extui %456 : vector<8x128xi1> to vector<8x128xi32>
    %458 = arith.sitofp %457 : vector<8x128xi32> to vector<8x128xf32>
    %cst_141 = arith.constant 0.899999976 : f32
    %459 = vector.broadcast %cst_141 : f32 to vector<8x128xf32>
    %460 = arith.mulf %459, %365 : vector<8x128xf32>
    %461 = arith.addf %460, %454 : vector<8x128xf32>
    %cst_142 = arith.constant 1.000000e+00 : f32
    %462 = vector.broadcast %cst_142 : f32 to vector<8x128xf32>
    %463 = arith.mulf %458, %462 : vector<8x128xf32>
    %464 = arith.subf %461, %463 : vector<8x128xf32>
    %cst_143 = arith.constant 1.000000e+00 : f32
    %465 = vector.broadcast %cst_143 : f32 to vector<8x128xf32>
    %466 = arith.cmpf ogt, %464, %465 : vector<8x128xf32>
    %467 = arith.extui %466 : vector<8x128xi1> to vector<8x128xi32>
    %468 = arith.sitofp %467 : vector<8x128xi32> to vector<8x128xf32>
    %469 = arith.truncf %468 : vector<8x128xf32> to vector<8x128xbf16>
    %cst_144 = arith.constant dense<0.000000e+00> : vector<8x128xf32>
    %470 = tpu.matmul %469, %5, %cst_144 {dimension_numbers = #tpu.dot_dimension_numbers<[1], [0], [0], [1], [0, 0, 1, 1], [], []>} : vector<8x128xbf16>, vector<128x128xbf16>, vector<8x128xf32> -> vector<8x128xf32>
    %471 = arith.addf %470, %8 : vector<8x128xf32>
    %cst_145 = arith.constant 1.000000e+00 : f32
    %472 = vector.broadcast %cst_145 : f32 to vector<8x128xf32>
    %473 = arith.cmpf ogt, %382, %472 : vector<8x128xf32>
    %474 = arith.extui %473 : vector<8x128xi1> to vector<8x128xi32>
    %475 = arith.sitofp %474 : vector<8x128xi32> to vector<8x128xf32>
    %cst_146 = arith.constant 0.899999976 : f32
    %476 = vector.broadcast %cst_146 : f32 to vector<8x128xf32>
    %477 = arith.mulf %476, %382 : vector<8x128xf32>
    %478 = arith.addf %477, %471 : vector<8x128xf32>
    %cst_147 = arith.constant 1.000000e+00 : f32
    %479 = vector.broadcast %cst_147 : f32 to vector<8x128xf32>
    %480 = arith.mulf %475, %479 : vector<8x128xf32>
    %481 = arith.subf %478, %480 : vector<8x128xf32>
    %cst_148 = arith.constant 1.000000e+00 : f32
    %482 = vector.broadcast %cst_148 : f32 to vector<8x128xf32>
    %483 = arith.cmpf ogt, %481, %482 : vector<8x128xf32>
    %484 = arith.extui %483 : vector<8x128xi1> to vector<8x128xi32>
    %485 = arith.sitofp %484 : vector<8x128xi32> to vector<8x128xf32>
    %486 = arith.truncf %485 : vector<8x128xf32> to vector<8x128xbf16>
    %cst_149 = arith.constant dense<0.000000e+00> : vector<8x128xf32>
    %487 = tpu.matmul %486, %9, %cst_149 {dimension_numbers = #tpu.dot_dimension_numbers<[1], [0], [0], [1], [0, 0, 1, 1], [], []>} : vector<8x128xbf16>, vector<128x128xbf16>, vector<8x128xf32> -> vector<8x128xf32>
    %488 = arith.addf %487, %12 : vector<8x128xf32>
    %cst_150 = arith.constant 1.000000e+00 : f32
    %489 = vector.broadcast %cst_150 : f32 to vector<8x128xf32>
    %490 = arith.cmpf ogt, %399, %489 : vector<8x128xf32>
    %491 = arith.extui %490 : vector<8x128xi1> to vector<8x128xi32>
    %492 = arith.sitofp %491 : vector<8x128xi32> to vector<8x128xf32>
    %cst_151 = arith.constant 0.899999976 : f32
    %493 = vector.broadcast %cst_151 : f32 to vector<8x128xf32>
    %494 = arith.mulf %493, %399 : vector<8x128xf32>
    %495 = arith.addf %494, %488 : vector<8x128xf32>
    %cst_152 = arith.constant 1.000000e+00 : f32
    %496 = vector.broadcast %cst_152 : f32 to vector<8x128xf32>
    %497 = arith.mulf %492, %496 : vector<8x128xf32>
    %498 = arith.subf %495, %497 : vector<8x128xf32>
    %cst_153 = arith.constant 1.000000e+00 : f32
    %499 = vector.broadcast %cst_153 : f32 to vector<8x128xf32>
    %500 = arith.cmpf ogt, %498, %499 : vector<8x128xf32>
    %501 = arith.extui %500 : vector<8x128xi1> to vector<8x128xi32>
    %502 = arith.sitofp %501 : vector<8x128xi32> to vector<8x128xf32>
    %503 = arith.addf %502, %468 : vector<8x128xf32>
    %cst_154 = arith.constant 1.000000e+00 : f32
    %504 = vector.broadcast %cst_154 : f32 to vector<8x128xf32>
    %505 = arith.cmpf ogt, %414, %504 : vector<8x128xf32>
    %506 = arith.extui %505 : vector<8x128xi1> to vector<8x128xi32>
    %507 = arith.sitofp %506 : vector<8x128xi32> to vector<8x128xf32>
    %cst_155 = arith.constant 0.899999976 : f32
    %508 = vector.broadcast %cst_155 : f32 to vector<8x128xf32>
    %509 = arith.mulf %508, %414 : vector<8x128xf32>
    %510 = arith.addf %509, %503 : vector<8x128xf32>
    %cst_156 = arith.constant 1.000000e+00 : f32
    %511 = vector.broadcast %cst_156 : f32 to vector<8x128xf32>
    %512 = arith.mulf %507, %511 : vector<8x128xf32>
    %513 = arith.subf %510, %512 : vector<8x128xf32>
    %cst_157 = arith.constant 1.000000e+00 : f32
    %514 = vector.broadcast %cst_157 : f32 to vector<8x128xf32>
    %515 = arith.cmpf ogt, %513, %514 : vector<8x128xf32>
    %516 = arith.extui %515 : vector<8x128xi1> to vector<8x128xi32>
    %517 = arith.sitofp %516 : vector<8x128xi32> to vector<8x128xf32>
    %518 = arith.addf %419, %517 : vector<8x128xf32>
    %519 = vector.extract_strided_slice %16 {offsets = [40, 0], sizes = [8, 256], strides = [1, 1]} : vector<64x256xf32> to vector<8x256xf32>
    %520 = vector.extract_strided_slice %519 {offsets = [0, 0], sizes = [8, 128], strides = [1, 1]} : vector<8x256xf32> to vector<8x128xf32>
    %521 = vector.extract_strided_slice %519 {offsets = [0, 128], sizes = [8, 128], strides = [1, 1]} : vector<8x256xf32> to vector<8x128xf32>
    %cst_158 = arith.constant 1.000000e+00 : f32
    %522 = vector.broadcast %cst_158 : f32 to vector<8x128xf32>
    %523 = arith.cmpf ogt, %432, %522 : vector<8x128xf32>
    %524 = arith.extui %523 : vector<8x128xi1> to vector<8x128xi32>
    %525 = arith.sitofp %524 : vector<8x128xi32> to vector<8x128xf32>
    %cst_159 = arith.constant 0.899999976 : f32
    %526 = vector.broadcast %cst_159 : f32 to vector<8x128xf32>
    %527 = arith.mulf %526, %432 : vector<8x128xf32>
    %528 = arith.addf %527, %520 : vector<8x128xf32>
    %cst_160 = arith.constant 1.000000e+00 : f32
    %529 = vector.broadcast %cst_160 : f32 to vector<8x128xf32>
    %530 = arith.mulf %525, %529 : vector<8x128xf32>
    %531 = arith.subf %528, %530 : vector<8x128xf32>
    %cst_161 = arith.constant 1.000000e+00 : f32
    %532 = vector.broadcast %cst_161 : f32 to vector<8x128xf32>
    %533 = arith.cmpf ogt, %531, %532 : vector<8x128xf32>
    %534 = arith.extui %533 : vector<8x128xi1> to vector<8x128xi32>
    %535 = arith.sitofp %534 : vector<8x128xi32> to vector<8x128xf32>
    %536 = arith.truncf %535 : vector<8x128xf32> to vector<8x128xbf16>
    %cst_162 = arith.constant dense<0.000000e+00> : vector<8x128xf32>
    %537 = tpu.matmul %536, %1, %cst_162 {dimension_numbers = #tpu.dot_dimension_numbers<[1], [0], [0], [1], [0, 0, 1, 1], [], []>} : vector<8x128xbf16>, vector<128x128xbf16>, vector<8x128xf32> -> vector<8x128xf32>
    %538 = arith.addf %537, %4 : vector<8x128xf32>
    %cst_163 = arith.constant 1.000000e+00 : f32
    %539 = vector.broadcast %cst_163 : f32 to vector<8x128xf32>
    %540 = arith.cmpf ogt, %449, %539 : vector<8x128xf32>
    %541 = arith.extui %540 : vector<8x128xi1> to vector<8x128xi32>
    %542 = arith.sitofp %541 : vector<8x128xi32> to vector<8x128xf32>
    %cst_164 = arith.constant 0.899999976 : f32
    %543 = vector.broadcast %cst_164 : f32 to vector<8x128xf32>
    %544 = arith.mulf %543, %449 : vector<8x128xf32>
    %545 = arith.addf %544, %538 : vector<8x128xf32>
    %cst_165 = arith.constant 1.000000e+00 : f32
    %546 = vector.broadcast %cst_165 : f32 to vector<8x128xf32>
    %547 = arith.mulf %542, %546 : vector<8x128xf32>
    %548 = arith.subf %545, %547 : vector<8x128xf32>
    %cst_166 = arith.constant 1.000000e+00 : f32
    %549 = vector.broadcast %cst_166 : f32 to vector<8x128xf32>
    %550 = arith.cmpf ogt, %548, %549 : vector<8x128xf32>
    %551 = arith.extui %550 : vector<8x128xi1> to vector<8x128xi32>
    %552 = arith.sitofp %551 : vector<8x128xi32> to vector<8x128xf32>
    %553 = arith.addf %552, %521 : vector<8x128xf32>
    %cst_167 = arith.constant 1.000000e+00 : f32
    %554 = vector.broadcast %cst_167 : f32 to vector<8x128xf32>
    %555 = arith.cmpf ogt, %464, %554 : vector<8x128xf32>
    %556 = arith.extui %555 : vector<8x128xi1> to vector<8x128xi32>
    %557 = arith.sitofp %556 : vector<8x128xi32> to vector<8x128xf32>
    %cst_168 = arith.constant 0.899999976 : f32
    %558 = vector.broadcast %cst_168 : f32 to vector<8x128xf32>
    %559 = arith.mulf %558, %464 : vector<8x128xf32>
    %560 = arith.addf %559, %553 : vector<8x128xf32>
    %cst_169 = arith.constant 1.000000e+00 : f32
    %561 = vector.broadcast %cst_169 : f32 to vector<8x128xf32>
    %562 = arith.mulf %557, %561 : vector<8x128xf32>
    %563 = arith.subf %560, %562 : vector<8x128xf32>
    %cst_170 = arith.constant 1.000000e+00 : f32
    %564 = vector.broadcast %cst_170 : f32 to vector<8x128xf32>
    %565 = arith.cmpf ogt, %563, %564 : vector<8x128xf32>
    %566 = arith.extui %565 : vector<8x128xi1> to vector<8x128xi32>
    %567 = arith.sitofp %566 : vector<8x128xi32> to vector<8x128xf32>
    %568 = arith.truncf %567 : vector<8x128xf32> to vector<8x128xbf16>
    %cst_171 = arith.constant dense<0.000000e+00> : vector<8x128xf32>
    %569 = tpu.matmul %568, %5, %cst_171 {dimension_numbers = #tpu.dot_dimension_numbers<[1], [0], [0], [1], [0, 0, 1, 1], [], []>} : vector<8x128xbf16>, vector<128x128xbf16>, vector<8x128xf32> -> vector<8x128xf32>
    %570 = arith.addf %569, %8 : vector<8x128xf32>
    %cst_172 = arith.constant 1.000000e+00 : f32
    %571 = vector.broadcast %cst_172 : f32 to vector<8x128xf32>
    %572 = arith.cmpf ogt, %481, %571 : vector<8x128xf32>
    %573 = arith.extui %572 : vector<8x128xi1> to vector<8x128xi32>
    %574 = arith.sitofp %573 : vector<8x128xi32> to vector<8x128xf32>
    %cst_173 = arith.constant 0.899999976 : f32
    %575 = vector.broadcast %cst_173 : f32 to vector<8x128xf32>
    %576 = arith.mulf %575, %481 : vector<8x128xf32>
    %577 = arith.addf %576, %570 : vector<8x128xf32>
    %cst_174 = arith.constant 1.000000e+00 : f32
    %578 = vector.broadcast %cst_174 : f32 to vector<8x128xf32>
    %579 = arith.mulf %574, %578 : vector<8x128xf32>
    %580 = arith.subf %577, %579 : vector<8x128xf32>
    %cst_175 = arith.constant 1.000000e+00 : f32
    %581 = vector.broadcast %cst_175 : f32 to vector<8x128xf32>
    %582 = arith.cmpf ogt, %580, %581 : vector<8x128xf32>
    %583 = arith.extui %582 : vector<8x128xi1> to vector<8x128xi32>
    %584 = arith.sitofp %583 : vector<8x128xi32> to vector<8x128xf32>
    %585 = arith.truncf %584 : vector<8x128xf32> to vector<8x128xbf16>
    %cst_176 = arith.constant dense<0.000000e+00> : vector<8x128xf32>
    %586 = tpu.matmul %585, %9, %cst_176 {dimension_numbers = #tpu.dot_dimension_numbers<[1], [0], [0], [1], [0, 0, 1, 1], [], []>} : vector<8x128xbf16>, vector<128x128xbf16>, vector<8x128xf32> -> vector<8x128xf32>
    %587 = arith.addf %586, %12 : vector<8x128xf32>
    %cst_177 = arith.constant 1.000000e+00 : f32
    %588 = vector.broadcast %cst_177 : f32 to vector<8x128xf32>
    %589 = arith.cmpf ogt, %498, %588 : vector<8x128xf32>
    %590 = arith.extui %589 : vector<8x128xi1> to vector<8x128xi32>
    %591 = arith.sitofp %590 : vector<8x128xi32> to vector<8x128xf32>
    %cst_178 = arith.constant 0.899999976 : f32
    %592 = vector.broadcast %cst_178 : f32 to vector<8x128xf32>
    %593 = arith.mulf %592, %498 : vector<8x128xf32>
    %594 = arith.addf %593, %587 : vector<8x128xf32>
    %cst_179 = arith.constant 1.000000e+00 : f32
    %595 = vector.broadcast %cst_179 : f32 to vector<8x128xf32>
    %596 = arith.mulf %591, %595 : vector<8x128xf32>
    %597 = arith.subf %594, %596 : vector<8x128xf32>
    %cst_180 = arith.constant 1.000000e+00 : f32
    %598 = vector.broadcast %cst_180 : f32 to vector<8x128xf32>
    %599 = arith.cmpf ogt, %597, %598 : vector<8x128xf32>
    %600 = arith.extui %599 : vector<8x128xi1> to vector<8x128xi32>
    %601 = arith.sitofp %600 : vector<8x128xi32> to vector<8x128xf32>
    %602 = arith.addf %601, %567 : vector<8x128xf32>
    %cst_181 = arith.constant 1.000000e+00 : f32
    %603 = vector.broadcast %cst_181 : f32 to vector<8x128xf32>
    %604 = arith.cmpf ogt, %513, %603 : vector<8x128xf32>
    %605 = arith.extui %604 : vector<8x128xi1> to vector<8x128xi32>
    %606 = arith.sitofp %605 : vector<8x128xi32> to vector<8x128xf32>
    %cst_182 = arith.constant 0.899999976 : f32
    %607 = vector.broadcast %cst_182 : f32 to vector<8x128xf32>
    %608 = arith.mulf %607, %513 : vector<8x128xf32>
    %609 = arith.addf %608, %602 : vector<8x128xf32>
    %cst_183 = arith.constant 1.000000e+00 : f32
    %610 = vector.broadcast %cst_183 : f32 to vector<8x128xf32>
    %611 = arith.mulf %606, %610 : vector<8x128xf32>
    %612 = arith.subf %609, %611 : vector<8x128xf32>
    %cst_184 = arith.constant 1.000000e+00 : f32
    %613 = vector.broadcast %cst_184 : f32 to vector<8x128xf32>
    %614 = arith.cmpf ogt, %612, %613 : vector<8x128xf32>
    %615 = arith.extui %614 : vector<8x128xi1> to vector<8x128xi32>
    %616 = arith.sitofp %615 : vector<8x128xi32> to vector<8x128xf32>
    %617 = arith.addf %518, %616 : vector<8x128xf32>
    %618 = vector.extract_strided_slice %16 {offsets = [48, 0], sizes = [8, 256], strides = [1, 1]} : vector<64x256xf32> to vector<8x256xf32>
    %619 = vector.extract_strided_slice %618 {offsets = [0, 0], sizes = [8, 128], strides = [1, 1]} : vector<8x256xf32> to vector<8x128xf32>
    %620 = vector.extract_strided_slice %618 {offsets = [0, 128], sizes = [8, 128], strides = [1, 1]} : vector<8x256xf32> to vector<8x128xf32>
    %cst_185 = arith.constant 1.000000e+00 : f32
    %621 = vector.broadcast %cst_185 : f32 to vector<8x128xf32>
    %622 = arith.cmpf ogt, %531, %621 : vector<8x128xf32>
    %623 = arith.extui %622 : vector<8x128xi1> to vector<8x128xi32>
    %624 = arith.sitofp %623 : vector<8x128xi32> to vector<8x128xf32>
    %cst_186 = arith.constant 0.899999976 : f32
    %625 = vector.broadcast %cst_186 : f32 to vector<8x128xf32>
    %626 = arith.mulf %625, %531 : vector<8x128xf32>
    %627 = arith.addf %626, %619 : vector<8x128xf32>
    %cst_187 = arith.constant 1.000000e+00 : f32
    %628 = vector.broadcast %cst_187 : f32 to vector<8x128xf32>
    %629 = arith.mulf %624, %628 : vector<8x128xf32>
    %630 = arith.subf %627, %629 : vector<8x128xf32>
    %cst_188 = arith.constant 1.000000e+00 : f32
    %631 = vector.broadcast %cst_188 : f32 to vector<8x128xf32>
    %632 = arith.cmpf ogt, %630, %631 : vector<8x128xf32>
    %633 = arith.extui %632 : vector<8x128xi1> to vector<8x128xi32>
    %634 = arith.sitofp %633 : vector<8x128xi32> to vector<8x128xf32>
    %635 = arith.truncf %634 : vector<8x128xf32> to vector<8x128xbf16>
    %cst_189 = arith.constant dense<0.000000e+00> : vector<8x128xf32>
    %636 = tpu.matmul %635, %1, %cst_189 {dimension_numbers = #tpu.dot_dimension_numbers<[1], [0], [0], [1], [0, 0, 1, 1], [], []>} : vector<8x128xbf16>, vector<128x128xbf16>, vector<8x128xf32> -> vector<8x128xf32>
    %637 = arith.addf %636, %4 : vector<8x128xf32>
    %cst_190 = arith.constant 1.000000e+00 : f32
    %638 = vector.broadcast %cst_190 : f32 to vector<8x128xf32>
    %639 = arith.cmpf ogt, %548, %638 : vector<8x128xf32>
    %640 = arith.extui %639 : vector<8x128xi1> to vector<8x128xi32>
    %641 = arith.sitofp %640 : vector<8x128xi32> to vector<8x128xf32>
    %cst_191 = arith.constant 0.899999976 : f32
    %642 = vector.broadcast %cst_191 : f32 to vector<8x128xf32>
    %643 = arith.mulf %642, %548 : vector<8x128xf32>
    %644 = arith.addf %643, %637 : vector<8x128xf32>
    %cst_192 = arith.constant 1.000000e+00 : f32
    %645 = vector.broadcast %cst_192 : f32 to vector<8x128xf32>
    %646 = arith.mulf %641, %645 : vector<8x128xf32>
    %647 = arith.subf %644, %646 : vector<8x128xf32>
    %cst_193 = arith.constant 1.000000e+00 : f32
    %648 = vector.broadcast %cst_193 : f32 to vector<8x128xf32>
    %649 = arith.cmpf ogt, %647, %648 : vector<8x128xf32>
    %650 = arith.extui %649 : vector<8x128xi1> to vector<8x128xi32>
    %651 = arith.sitofp %650 : vector<8x128xi32> to vector<8x128xf32>
    %652 = arith.addf %651, %620 : vector<8x128xf32>
    %cst_194 = arith.constant 1.000000e+00 : f32
    %653 = vector.broadcast %cst_194 : f32 to vector<8x128xf32>
    %654 = arith.cmpf ogt, %563, %653 : vector<8x128xf32>
    %655 = arith.extui %654 : vector<8x128xi1> to vector<8x128xi32>
    %656 = arith.sitofp %655 : vector<8x128xi32> to vector<8x128xf32>
    %cst_195 = arith.constant 0.899999976 : f32
    %657 = vector.broadcast %cst_195 : f32 to vector<8x128xf32>
    %658 = arith.mulf %657, %563 : vector<8x128xf32>
    %659 = arith.addf %658, %652 : vector<8x128xf32>
    %cst_196 = arith.constant 1.000000e+00 : f32
    %660 = vector.broadcast %cst_196 : f32 to vector<8x128xf32>
    %661 = arith.mulf %656, %660 : vector<8x128xf32>
    %662 = arith.subf %659, %661 : vector<8x128xf32>
    %cst_197 = arith.constant 1.000000e+00 : f32
    %663 = vector.broadcast %cst_197 : f32 to vector<8x128xf32>
    %664 = arith.cmpf ogt, %662, %663 : vector<8x128xf32>
    %665 = arith.extui %664 : vector<8x128xi1> to vector<8x128xi32>
    %666 = arith.sitofp %665 : vector<8x128xi32> to vector<8x128xf32>
    %667 = arith.truncf %666 : vector<8x128xf32> to vector<8x128xbf16>
    %cst_198 = arith.constant dense<0.000000e+00> : vector<8x128xf32>
    %668 = tpu.matmul %667, %5, %cst_198 {dimension_numbers = #tpu.dot_dimension_numbers<[1], [0], [0], [1], [0, 0, 1, 1], [], []>} : vector<8x128xbf16>, vector<128x128xbf16>, vector<8x128xf32> -> vector<8x128xf32>
    %669 = arith.addf %668, %8 : vector<8x128xf32>
    %cst_199 = arith.constant 1.000000e+00 : f32
    %670 = vector.broadcast %cst_199 : f32 to vector<8x128xf32>
    %671 = arith.cmpf ogt, %580, %670 : vector<8x128xf32>
    %672 = arith.extui %671 : vector<8x128xi1> to vector<8x128xi32>
    %673 = arith.sitofp %672 : vector<8x128xi32> to vector<8x128xf32>
    %cst_200 = arith.constant 0.899999976 : f32
    %674 = vector.broadcast %cst_200 : f32 to vector<8x128xf32>
    %675 = arith.mulf %674, %580 : vector<8x128xf32>
    %676 = arith.addf %675, %669 : vector<8x128xf32>
    %cst_201 = arith.constant 1.000000e+00 : f32
    %677 = vector.broadcast %cst_201 : f32 to vector<8x128xf32>
    %678 = arith.mulf %673, %677 : vector<8x128xf32>
    %679 = arith.subf %676, %678 : vector<8x128xf32>
    %cst_202 = arith.constant 1.000000e+00 : f32
    %680 = vector.broadcast %cst_202 : f32 to vector<8x128xf32>
    %681 = arith.cmpf ogt, %679, %680 : vector<8x128xf32>
    %682 = arith.extui %681 : vector<8x128xi1> to vector<8x128xi32>
    %683 = arith.sitofp %682 : vector<8x128xi32> to vector<8x128xf32>
    %684 = arith.truncf %683 : vector<8x128xf32> to vector<8x128xbf16>
    %cst_203 = arith.constant dense<0.000000e+00> : vector<8x128xf32>
    %685 = tpu.matmul %684, %9, %cst_203 {dimension_numbers = #tpu.dot_dimension_numbers<[1], [0], [0], [1], [0, 0, 1, 1], [], []>} : vector<8x128xbf16>, vector<128x128xbf16>, vector<8x128xf32> -> vector<8x128xf32>
    %686 = arith.addf %685, %12 : vector<8x128xf32>
    %cst_204 = arith.constant 1.000000e+00 : f32
    %687 = vector.broadcast %cst_204 : f32 to vector<8x128xf32>
    %688 = arith.cmpf ogt, %597, %687 : vector<8x128xf32>
    %689 = arith.extui %688 : vector<8x128xi1> to vector<8x128xi32>
    %690 = arith.sitofp %689 : vector<8x128xi32> to vector<8x128xf32>
    %cst_205 = arith.constant 0.899999976 : f32
    %691 = vector.broadcast %cst_205 : f32 to vector<8x128xf32>
    %692 = arith.mulf %691, %597 : vector<8x128xf32>
    %693 = arith.addf %692, %686 : vector<8x128xf32>
    %cst_206 = arith.constant 1.000000e+00 : f32
    %694 = vector.broadcast %cst_206 : f32 to vector<8x128xf32>
    %695 = arith.mulf %690, %694 : vector<8x128xf32>
    %696 = arith.subf %693, %695 : vector<8x128xf32>
    %cst_207 = arith.constant 1.000000e+00 : f32
    %697 = vector.broadcast %cst_207 : f32 to vector<8x128xf32>
    %698 = arith.cmpf ogt, %696, %697 : vector<8x128xf32>
    %699 = arith.extui %698 : vector<8x128xi1> to vector<8x128xi32>
    %700 = arith.sitofp %699 : vector<8x128xi32> to vector<8x128xf32>
    %701 = arith.addf %700, %666 : vector<8x128xf32>
    %cst_208 = arith.constant 1.000000e+00 : f32
    %702 = vector.broadcast %cst_208 : f32 to vector<8x128xf32>
    %703 = arith.cmpf ogt, %612, %702 : vector<8x128xf32>
    %704 = arith.extui %703 : vector<8x128xi1> to vector<8x128xi32>
    %705 = arith.sitofp %704 : vector<8x128xi32> to vector<8x128xf32>
    %cst_209 = arith.constant 0.899999976 : f32
    %706 = vector.broadcast %cst_209 : f32 to vector<8x128xf32>
    %707 = arith.mulf %706, %612 : vector<8x128xf32>
    %708 = arith.addf %707, %701 : vector<8x128xf32>
    %cst_210 = arith.constant 1.000000e+00 : f32
    %709 = vector.broadcast %cst_210 : f32 to vector<8x128xf32>
    %710 = arith.mulf %705, %709 : vector<8x128xf32>
    %711 = arith.subf %708, %710 : vector<8x128xf32>
    %cst_211 = arith.constant 1.000000e+00 : f32
    %712 = vector.broadcast %cst_211 : f32 to vector<8x128xf32>
    %713 = arith.cmpf ogt, %711, %712 : vector<8x128xf32>
    %714 = arith.extui %713 : vector<8x128xi1> to vector<8x128xi32>
    %715 = arith.sitofp %714 : vector<8x128xi32> to vector<8x128xf32>
    %716 = arith.addf %617, %715 : vector<8x128xf32>
    %717 = vector.extract_strided_slice %16 {offsets = [56, 0], sizes = [8, 256], strides = [1, 1]} : vector<64x256xf32> to vector<8x256xf32>
    %718 = vector.extract_strided_slice %717 {offsets = [0, 0], sizes = [8, 128], strides = [1, 1]} : vector<8x256xf32> to vector<8x128xf32>
    %719 = vector.extract_strided_slice %717 {offsets = [0, 128], sizes = [8, 128], strides = [1, 1]} : vector<8x256xf32> to vector<8x128xf32>
    %cst_212 = arith.constant 1.000000e+00 : f32
    %720 = vector.broadcast %cst_212 : f32 to vector<8x128xf32>
    %721 = arith.cmpf ogt, %630, %720 : vector<8x128xf32>
    %722 = arith.extui %721 : vector<8x128xi1> to vector<8x128xi32>
    %723 = arith.sitofp %722 : vector<8x128xi32> to vector<8x128xf32>
    %cst_213 = arith.constant 0.899999976 : f32
    %724 = vector.broadcast %cst_213 : f32 to vector<8x128xf32>
    %725 = arith.mulf %724, %630 : vector<8x128xf32>
    %726 = arith.addf %725, %718 : vector<8x128xf32>
    %cst_214 = arith.constant 1.000000e+00 : f32
    %727 = vector.broadcast %cst_214 : f32 to vector<8x128xf32>
    %728 = arith.mulf %723, %727 : vector<8x128xf32>
    %729 = arith.subf %726, %728 : vector<8x128xf32>
    %cst_215 = arith.constant 1.000000e+00 : f32
    %730 = vector.broadcast %cst_215 : f32 to vector<8x128xf32>
    %731 = arith.cmpf ogt, %729, %730 : vector<8x128xf32>
    %732 = arith.extui %731 : vector<8x128xi1> to vector<8x128xi32>
    %733 = arith.sitofp %732 : vector<8x128xi32> to vector<8x128xf32>
    %734 = arith.truncf %733 : vector<8x128xf32> to vector<8x128xbf16>
    %cst_216 = arith.constant dense<0.000000e+00> : vector<8x128xf32>
    %735 = tpu.matmul %734, %1, %cst_216 {dimension_numbers = #tpu.dot_dimension_numbers<[1], [0], [0], [1], [0, 0, 1, 1], [], []>} : vector<8x128xbf16>, vector<128x128xbf16>, vector<8x128xf32> -> vector<8x128xf32>
    %736 = arith.addf %735, %4 : vector<8x128xf32>
    %cst_217 = arith.constant 1.000000e+00 : f32
    %737 = vector.broadcast %cst_217 : f32 to vector<8x128xf32>
    %738 = arith.cmpf ogt, %647, %737 : vector<8x128xf32>
    %739 = arith.extui %738 : vector<8x128xi1> to vector<8x128xi32>
    %740 = arith.sitofp %739 : vector<8x128xi32> to vector<8x128xf32>
    %cst_218 = arith.constant 0.899999976 : f32
    %741 = vector.broadcast %cst_218 : f32 to vector<8x128xf32>
    %742 = arith.mulf %741, %647 : vector<8x128xf32>
    %743 = arith.addf %742, %736 : vector<8x128xf32>
    %cst_219 = arith.constant 1.000000e+00 : f32
    %744 = vector.broadcast %cst_219 : f32 to vector<8x128xf32>
    %745 = arith.mulf %740, %744 : vector<8x128xf32>
    %746 = arith.subf %743, %745 : vector<8x128xf32>
    %cst_220 = arith.constant 1.000000e+00 : f32
    %747 = vector.broadcast %cst_220 : f32 to vector<8x128xf32>
    %748 = arith.cmpf ogt, %746, %747 : vector<8x128xf32>
    %749 = arith.extui %748 : vector<8x128xi1> to vector<8x128xi32>
    %750 = arith.sitofp %749 : vector<8x128xi32> to vector<8x128xf32>
    %751 = arith.addf %750, %719 : vector<8x128xf32>
    %cst_221 = arith.constant 1.000000e+00 : f32
    %752 = vector.broadcast %cst_221 : f32 to vector<8x128xf32>
    %753 = arith.cmpf ogt, %662, %752 : vector<8x128xf32>
    %754 = arith.extui %753 : vector<8x128xi1> to vector<8x128xi32>
    %755 = arith.sitofp %754 : vector<8x128xi32> to vector<8x128xf32>
    %cst_222 = arith.constant 0.899999976 : f32
    %756 = vector.broadcast %cst_222 : f32 to vector<8x128xf32>
    %757 = arith.mulf %756, %662 : vector<8x128xf32>
    %758 = arith.addf %757, %751 : vector<8x128xf32>
    %cst_223 = arith.constant 1.000000e+00 : f32
    %759 = vector.broadcast %cst_223 : f32 to vector<8x128xf32>
    %760 = arith.mulf %755, %759 : vector<8x128xf32>
    %761 = arith.subf %758, %760 : vector<8x128xf32>
    %cst_224 = arith.constant 1.000000e+00 : f32
    %762 = vector.broadcast %cst_224 : f32 to vector<8x128xf32>
    %763 = arith.cmpf ogt, %761, %762 : vector<8x128xf32>
    %764 = arith.extui %763 : vector<8x128xi1> to vector<8x128xi32>
    %765 = arith.sitofp %764 : vector<8x128xi32> to vector<8x128xf32>
    %766 = arith.truncf %765 : vector<8x128xf32> to vector<8x128xbf16>
    %cst_225 = arith.constant dense<0.000000e+00> : vector<8x128xf32>
    %767 = tpu.matmul %766, %5, %cst_225 {dimension_numbers = #tpu.dot_dimension_numbers<[1], [0], [0], [1], [0, 0, 1, 1], [], []>} : vector<8x128xbf16>, vector<128x128xbf16>, vector<8x128xf32> -> vector<8x128xf32>
    %768 = arith.addf %767, %8 : vector<8x128xf32>
    %cst_226 = arith.constant 1.000000e+00 : f32
    %769 = vector.broadcast %cst_226 : f32 to vector<8x128xf32>
    %770 = arith.cmpf ogt, %679, %769 : vector<8x128xf32>
    %771 = arith.extui %770 : vector<8x128xi1> to vector<8x128xi32>
    %772 = arith.sitofp %771 : vector<8x128xi32> to vector<8x128xf32>
    %cst_227 = arith.constant 0.899999976 : f32
    %773 = vector.broadcast %cst_227 : f32 to vector<8x128xf32>
    %774 = arith.mulf %773, %679 : vector<8x128xf32>
    %775 = arith.addf %774, %768 : vector<8x128xf32>
    %cst_228 = arith.constant 1.000000e+00 : f32
    %776 = vector.broadcast %cst_228 : f32 to vector<8x128xf32>
    %777 = arith.mulf %772, %776 : vector<8x128xf32>
    %778 = arith.subf %775, %777 : vector<8x128xf32>
    %cst_229 = arith.constant 1.000000e+00 : f32
    %779 = vector.broadcast %cst_229 : f32 to vector<8x128xf32>
    %780 = arith.cmpf ogt, %778, %779 : vector<8x128xf32>
    %781 = arith.extui %780 : vector<8x128xi1> to vector<8x128xi32>
    %782 = arith.sitofp %781 : vector<8x128xi32> to vector<8x128xf32>
    %783 = arith.truncf %782 : vector<8x128xf32> to vector<8x128xbf16>
    %cst_230 = arith.constant dense<0.000000e+00> : vector<8x128xf32>
    %784 = tpu.matmul %783, %9, %cst_230 {dimension_numbers = #tpu.dot_dimension_numbers<[1], [0], [0], [1], [0, 0, 1, 1], [], []>} : vector<8x128xbf16>, vector<128x128xbf16>, vector<8x128xf32> -> vector<8x128xf32>
    %785 = arith.addf %784, %12 : vector<8x128xf32>
    %cst_231 = arith.constant 1.000000e+00 : f32
    %786 = vector.broadcast %cst_231 : f32 to vector<8x128xf32>
    %787 = arith.cmpf ogt, %696, %786 : vector<8x128xf32>
    %788 = arith.extui %787 : vector<8x128xi1> to vector<8x128xi32>
    %789 = arith.sitofp %788 : vector<8x128xi32> to vector<8x128xf32>
    %cst_232 = arith.constant 0.899999976 : f32
    %790 = vector.broadcast %cst_232 : f32 to vector<8x128xf32>
    %791 = arith.mulf %790, %696 : vector<8x128xf32>
    %792 = arith.addf %791, %785 : vector<8x128xf32>
    %cst_233 = arith.constant 1.000000e+00 : f32
    %793 = vector.broadcast %cst_233 : f32 to vector<8x128xf32>
    %794 = arith.mulf %789, %793 : vector<8x128xf32>
    %795 = arith.subf %792, %794 : vector<8x128xf32>
    %cst_234 = arith.constant 1.000000e+00 : f32
    %796 = vector.broadcast %cst_234 : f32 to vector<8x128xf32>
    %797 = arith.cmpf ogt, %795, %796 : vector<8x128xf32>
    %798 = arith.extui %797 : vector<8x128xi1> to vector<8x128xi32>
    %799 = arith.sitofp %798 : vector<8x128xi32> to vector<8x128xf32>
    %800 = arith.addf %799, %765 : vector<8x128xf32>
    %cst_235 = arith.constant 1.000000e+00 : f32
    %801 = vector.broadcast %cst_235 : f32 to vector<8x128xf32>
    %802 = arith.cmpf ogt, %711, %801 : vector<8x128xf32>
    %803 = arith.extui %802 : vector<8x128xi1> to vector<8x128xi32>
    %804 = arith.sitofp %803 : vector<8x128xi32> to vector<8x128xf32>
    %cst_236 = arith.constant 0.899999976 : f32
    %805 = vector.broadcast %cst_236 : f32 to vector<8x128xf32>
    %806 = arith.mulf %805, %711 : vector<8x128xf32>
    %807 = arith.addf %806, %800 : vector<8x128xf32>
    %cst_237 = arith.constant 1.000000e+00 : f32
    %808 = vector.broadcast %cst_237 : f32 to vector<8x128xf32>
    %809 = arith.mulf %804, %808 : vector<8x128xf32>
    %810 = arith.subf %807, %809 : vector<8x128xf32>
    %cst_238 = arith.constant 1.000000e+00 : f32
    %811 = vector.broadcast %cst_238 : f32 to vector<8x128xf32>
    %812 = arith.cmpf ogt, %810, %811 : vector<8x128xf32>
    %813 = arith.extui %812 : vector<8x128xi1> to vector<8x128xi32>
    %814 = arith.sitofp %813 : vector<8x128xi32> to vector<8x128xf32>
    %815 = arith.addf %716, %814 : vector<8x128xf32>
    %c0_239 = arith.constant 0 : index
    %c0_240 = arith.constant 0 : index
    %816 = vector.load %arg9[%c0_239, %c0_240] : memref<128x128xbf16, #tpu.memory_space<vmem>>, vector<128x128xbf16>
    %817 = arith.truncf %815 : vector<8x128xf32> to vector<8x128xbf16>
    %cst_241 = arith.constant dense<0.000000e+00> : vector<8x128xf32>
    %818 = tpu.matmul %817, %816, %cst_241 {dimension_numbers = #tpu.dot_dimension_numbers<[1], [0], [0], [1], [0, 0, 1, 1], [], []>} : vector<8x128xbf16>, vector<128x128xbf16>, vector<8x128xf32> -> vector<8x128xf32>
    %c0_242 = arith.constant 0 : index
    %c0_243 = arith.constant 0 : index
    %819 = vector.load %arg10[%c0_242, %c0_243] : memref<1x128xf32, #tpu.memory_space<vmem>>, vector<1x128xf32>
    %820 = vector.shape_cast %819 : vector<1x128xf32> to vector<1x128xf32>
    %821 = vector.broadcast %820 : vector<1x128xf32> to vector<8x128xf32>
    %822 = arith.addf %818, %821 : vector<8x128xf32>
    %c0_244 = arith.constant 0 : index
    %c0_245 = arith.constant 0 : index
    %823 = vector.load %arg11[%c0_244, %c0_245] : memref<8x128xf32, #tpu.memory_space<vmem>>, vector<8x128xf32>
    tpu.vector_store %arg11[%c0_244, %c0_245], %822 {strides = array<i32>} : memref<8x128xf32, #tpu.memory_space<vmem>>, vector<8x128xf32>,
    return
  }
  func.func @transform_0(%arg0: i32) -> (i32, i32, i32) {
    %c0_i32 = arith.constant 0 : i32
    %c0_i32_0 = arith.constant 0 : i32
    %c0_i32_1 = arith.constant 0 : i32
    return %c0_i32, %arg0, %c0_i32_0 : i32, i32, i32
  }
  func.func @transform_1(%arg0: i32) -> (i32, i32) {
    %c0_i32 = arith.constant 0 : i32
    %c0_i32_0 = arith.constant 0 : i32
    %c0_i32_1 = arith.constant 0 : i32
    return %c0_i32, %c0_i32_0 : i32, i32
  }
  func.func @transform_2(%arg0: i32) -> (i32, i32) {
    %c0_i32 = arith.constant 0 : i32
    %c0_i32_0 = arith.constant 0 : i32
    %c0_i32_1 = arith.constant 0 : i32
    return %c0_i32, %c0_i32_0 : i32, i32
  }
  func.func @transform_3(%arg0: i32) -> (i32, i32) {
    %c0_i32 = arith.constant 0 : i32
    %c0_i32_0 = arith.constant 0 : i32
    %c0_i32_1 = arith.constant 0 : i32
    return %c0_i32, %c0_i32_0 : i32, i32
  }
  func.func @transform_4(%arg0: i32) -> (i32, i32) {
    %c0_i32 = arith.constant 0 : i32
    %c0_i32_0 = arith.constant 0 : i32
    %c0_i32_1 = arith.constant 0 : i32
    return %c0_i32, %c0_i32_0 : i32, i32
  }
  func.func @transform_5(%arg0: i32) -> (i32, i32) {
    %c0_i32 = arith.constant 0 : i32
    %c0_i32_0 = arith.constant 0 : i32
    %c0_i32_1 = arith.constant 0 : i32
    return %c0_i32, %c0_i32_0 : i32, i32
  }
  func.func @transform_6(%arg0: i32) -> (i32, i32) {
    %c0_i32 = arith.constant 0 : i32
    %c0_i32_0 = arith.constant 0 : i32
    %c0_i32_1 = arith.constant 0 : i32
    return %c0_i32, %c0_i32_0 : i32, i32
  }
  func.func @transform_7(%arg0: i32) -> (i32, i32) {
    %c0_i32 = arith.constant 0 : i32
    %c0_i32_0 = arith.constant 0 : i32
    %c0_i32_1 = arith.constant 0 : i32
    return %c0_i32, %c0_i32_0 : i32, i32
  }
  func.func @transform_8(%arg0: i32) -> (i32, i32) {
    %c0_i32 = arith.constant 0 : i32
    %c0_i32_0 = arith.constant 0 : i32
    %c0_i32_1 = arith.constant 0 : i32
    return %c0_i32, %c0_i32_0 : i32, i32
  }
  func.func @transform_9(%arg0: i32) -> (i32, i32) {
    %c0_i32 = arith.constant 0 : i32
    %c0_i32_0 = arith.constant 0 : i32
    %c0_i32_1 = arith.constant 0 : i32
    return %c0_i32, %c0_i32_0 : i32, i32
  }
  func.func @transform_10(%arg0: i32) -> (i32, i32) {
    %c0_i32 = arith.constant 0 : i32
    %c0_i32_0 = arith.constant 0 : i32
    return %arg0, %c0_i32 : i32, i32
  }
}

</mosaic_0001>

<llo_original>
// kernel: tpu_custom_call.1
$region0: #{tpu_custom_call.1}
  #allocation0 [shape = 'u32[]', space=smem, size = 0x4, offset = 0x4, fixed_abs, tag = 'smem constant byte address 0x4 - core index']
  #allocation1 [shape = 'u32[144,128]{1,0:T(1,128)}', space=vmem, size = 0x12000, scoped, tag = 'internal scratch']
  %s0 = inlined_call_operand.hbm [shape: f32[8,8,128], index: 0, kind: input, shape index: {}]
  %s1 = inlined_call_operand.hbm [shape: bf16[128,256], index: 1, kind: input, shape index: {}]
  %s2 = inlined_call_operand.hbm [shape: bf16[128,128], index: 2, kind: input, shape index: {}]
  %s3 = inlined_call_operand.vmem [shape: f32[1,128], index: 3, kind: input, shape index: {}]
  %s4 = inlined_call_operand.hbm [shape: bf16[128,128], index: 4, kind: input, shape index: {}]
  %s5 = inlined_call_operand.vmem [shape: f32[1,128], index: 5, kind: input, shape index: {}]
  %s6 = inlined_call_operand.hbm [shape: bf16[128,128], index: 6, kind: input, shape index: {}]
  %s7 = inlined_call_operand.vmem [shape: f32[1,128], index: 7, kind: input, shape index: {}]
  %s8 = inlined_call_operand.hbm [shape: bf16[128,128], index: 8, kind: input, shape index: {}]
  %s9 = inlined_call_operand.vmem [shape: f32[1,128], index: 9, kind: input, shape index: {}]
  %s10 = inlined_call_operand.hbm [shape: f32[8,128], index: 10, kind: output, shape index: {}]
  %s11 = sld [smem:[#allocation0]]
  $region74: #{tpu_custom_call.1} parent=0
    _
  %s13 = ssub.s32 1, %s11
  %s14 = scalar_select 0, %s13, %s11
  $region1: #{tpu_custom_call.1} parent=0
    #allocation2 [shape = 'u8[32768]{0}', space=vmem, size = 0x8000, scoped, tag = 'input window, operand 0, single buffered']
    #allocation3 [shape = 's32[1]{0}', space=sflag, size = 0x4, scoped, tag = 'scoped memory for tpu_custom_call.1']
    #allocation4 [shape = 's32[1]{0}', space=sflag, size = 0x4, scoped, tag = 'scoped memory for tpu_custom_call.1']
    #allocation5 [shape = 'u8[65536]{0}', space=vmem, size = 0x10000, scoped, tag = 'input window, operand 1, single buffered']
    #allocation6 [shape = 's32[1]{0}', space=sflag, size = 0x4, scoped, tag = 'scoped memory for tpu_custom_call.1']
    #allocation7 [shape = 'u8[32768]{0}', space=vmem, size = 0x8000, scoped, tag = 'input window, operand 2, single buffered']
    #allocation8 [shape = 'u8[32768]{0}', space=vmem, size = 0x8000, scoped, tag = 'input window, operand 4, single buffered']
    #allocation9 [shape = 's32[1]{0}', space=sflag, size = 0x4, scoped, tag = 'scoped memory for tpu_custom_call.1']
    #allocation10 [shape = 'u8[32768]{0}', space=vmem, size = 0x8000, scoped, tag = 'input window, operand 6, single buffered']
    #allocation11 [shape = 'u8[32768]{0}', space=vmem, size = 0x8000, scoped, tag = 'input window, operand 8, single buffered']
    #allocation12 [shape = 's32[1]{0}', space=sflag, size = 0x4, scoped, tag = 'scoped memory for tpu_custom_call.1']
    #allocation13 [shape = 'u8[4096]{0}', space=vmem, size = 0x1000, scoped, tag = 'output window, operand 0, single buffered']
    %15 = vsyncpa [#allocation3], 0
    %16 = vsyncpa [#allocation6], 0
    %17 = vsyncpa [#allocation9], 0
    %18 = vsyncpa [#allocation12], 0
    %19 = vsyncpa [#allocation4], 0
    // Predicated region
    $region2: #{tpu_custom_call.1} parent=1 // pred_check
      _
    $region3: #{tpu_custom_call.1} parent=1 // pred_check_branch
      %21 = sbr.rel (0) target = $region5
    $region4: #{tpu_custom_call.1} parent=1 // pred_region
      %s23 = ssub.s32 1024, 1024
      %24 = vsyncadd [#allocation3], %s23
      %s25 = sshll.u32 [#allocation2], 4
      %s26 = int_to_ptr.vmem [resolvable:$true] %s25
      %31 = dma.hbm_to_vmem [thread:$0]  %s0, 1024, %s26, [#allocation3], 128, 128, 8
    $region5: #{tpu_custom_call.1} parent=1 // pred_fallthru
      _
    // Predicated region
    $region6: #{tpu_custom_call.1} parent=1 // pred_check
      _
    $region7: #{tpu_custom_call.1} parent=1 // pred_check_branch
      %33 = sbr.rel (0) target = $region9
    $region8: #{tpu_custom_call.1} parent=1 // pred_region
      %s35 = ssub.s32 2048, 2048
      %36 = vsyncadd [#allocation6], %s35
      %s37 = sshll.u32 [#allocation5], 4
      %s38 = int_to_ptr.vmem [resolvable:$true] %s37
      %43 = dma.hbm_to_vmem [thread:$0]  %s1, 2048, %s38, [#allocation6], 128, 128, 8
    $region9: #{tpu_custom_call.1} parent=1 // pred_fallthru
      _
    // Predicated region
    $region10: #{tpu_custom_call.1} parent=1 // pred_check
      _
    $region11: #{tpu_custom_call.1} parent=1 // pred_check_branch
      %45 = sbr.rel (0) target = $region13
    $region12: #{tpu_custom_call.1} parent=1 // pred_region
      %s47 = ssub.s32 1024, 1024
      %48 = vsyncadd [#allocation6], %s47
      %s49 = sshll.u32 [#allocation7], 4
      %s50 = int_to_ptr.vmem [resolvable:$true] %s49
      %55 = dma.hbm_to_vmem [thread:$0]  %s2, 1024, %s50, [#allocation6], 64, 64, 4
    $region13: #{tpu_custom_call.1} parent=1 // pred_fallthru
      _
    // Predicated region
    $region14: #{tpu_custom_call.1} parent=1 // pred_check
      _
    $region15: #{tpu_custom_call.1} parent=1 // pred_check_branch
      %57 = sbr.rel (0) target = $region17
    $region16: #{tpu_custom_call.1} parent=1 // pred_region
      _
    $region17: #{tpu_custom_call.1} parent=1 // pred_fallthru
      _
    // Predicated region
    $region18: #{tpu_custom_call.1} parent=1 // pred_check
      _
    $region19: #{tpu_custom_call.1} parent=1 // pred_check_branch
      %59 = sbr.rel (0) target = $region21
    $region20: #{tpu_custom_call.1} parent=1 // pred_region
      %s61 = ssub.s32 1024, 1024
      %62 = vsyncadd [#allocation9], %s61
      %s63 = sshll.u32 [#allocation8], 4
      %s64 = int_to_ptr.vmem [resolvable:$true] %s63
      %69 = dma.hbm_to_vmem [thread:$0]  %s4, 1024, %s64, [#allocation9], 64, 64, 4
    $region21: #{tpu_custom_call.1} parent=1 // pred_fallthru
      _
    // Predicated region
    $region22: #{tpu_custom_call.1} parent=1 // pred_check
      _
    $region23: #{tpu_custom_call.1} parent=1 // pred_check_branch
      %71 = sbr.rel (0) target = $region25
    $region24: #{tpu_custom_call.1} parent=1 // pred_region
      _
    $region25: #{tpu_custom_call.1} parent=1 // pred_fallthru
      _
    // Predicated region
    $region26: #{tpu_custom_call.1} parent=1 // pred_check
      _
    $region27: #{tpu_custom_call.1} parent=1 // pred_check_branch
      %73 = sbr.rel (0) target = $region29
    $region28: #{tpu_custom_call.1} parent=1 // pred_region
      %s75 = ssub.s32 1024, 1024
      %76 = vsyncadd [#allocation9], %s75
      %s77 = sshll.u32 [#allocation10], 4
      %s78 = int_to_ptr.vmem [resolvable:$true] %s77
      %83 = dma.hbm_to_vmem [thread:$0]  %s6, 1024, %s78, [#allocation9], 64, 64, 4
    $region29: #{tpu_custom_call.1} parent=1 // pred_fallthru
      _
    // Predicated region
    $region30: #{tpu_custom_call.1} parent=1 // pred_check
      _
    $region31: #{tpu_custom_call.1} parent=1 // pred_check_branch
      %85 = sbr.rel (0) target = $region33
    $region32: #{tpu_custom_call.1} parent=1 // pred_region
      _
    $region33: #{tpu_custom_call.1} parent=1 // pred_fallthru
      _
    // Predicated region
    $region34: #{tpu_custom_call.1} parent=1 // pred_check
      _
    $region35: #{tpu_custom_call.1} parent=1 // pred_check_branch
      %87 = sbr.rel (0) target = $region37
    $region36: #{tpu_custom_call.1} parent=1 // pred_region
      %s89 = ssub.s32 1024, 1024
      %90 = vsyncadd [#allocation12], %s89
      %s91 = sshll.u32 [#allocation11], 4
      %s92 = int_to_ptr.vmem [resolvable:$true] %s91
      %97 = dma.hbm_to_vmem [thread:$0]  %s8, 1024, %s92, [#allocation12], 64, 64, 4
    $region37: #{tpu_custom_call.1} parent=1 // pred_fallthru
      _
    // Predicated region
    $region38: #{tpu_custom_call.1} parent=1 // pred_check
      _
    $region39: #{tpu_custom_call.1} parent=1 // pred_check_branch
      %99 = sbr.rel (0) target = $region41
    $region40: #{tpu_custom_call.1} parent=1 // pred_region
      _
    $region41: #{tpu_custom_call.1} parent=1 // pred_fallthru
      _
    // Predicated region
    $region42: #{tpu_custom_call.1} parent=1 // pred_check
      _
    $region43: #{tpu_custom_call.1} parent=1 // pred_check_branch
      %101 = sbr.rel (0) target = $region45
    $region44: #{tpu_custom_call.1} parent=1 // pred_region
      %102 = dma.done [#allocation3], 1024
    $region45: #{tpu_custom_call.1} parent=1 // pred_fallthru
      _
    // Predicated region
    $region46: #{tpu_custom_call.1} parent=1 // pred_check
      _
    $region47: #{tpu_custom_call.1} parent=1 // pred_check_branch
      %104 = sbr.rel (0) target = $region49
    $region48: #{tpu_custom_call.1} parent=1 // pred_region
      %105 = dma.done [#allocation6], 2048
    $region49: #{tpu_custom_call.1} parent=1 // pred_fallthru
      _
    // Predicated region
    $region50: #{tpu_custom_call.1} parent=1 // pred_check
      _
    $region51: #{tpu_custom_call.1} parent=1 // pred_check_branch
      %107 = sbr.rel (0) target = $region53
    $region52: #{tpu_custom_call.1} parent=1 // pred_region
      %108 = dma.done [#allocation6], 1024
    $region53: #{tpu_custom_call.1} parent=1 // pred_fallthru
      _
    // Predicated region
    $region54: #{tpu_custom_call.1} parent=1 // pred_check
      _
    $region55: #{tpu_custom_call.1} parent=1 // pred_check_branch
      %110 = sbr.rel (0) target = $region57
    $region56: #{tpu_custom_call.1} parent=1 // pred_region
      %111 = dma.done [#allocation9], 1024
    $region57: #{tpu_custom_call.1} parent=1 // pred_fallthru
      _
    // Predicated region
    $region58: #{tpu_custom_call.1} parent=1 // pred_check
      _
    $region59: #{tpu_custom_call.1} parent=1 // pred_check_branch
      %113 = sbr.rel (0) target = $region61
    $region60: #{tpu_custom_call.1} parent=1 // pred_region
      %114 = dma.done [#allocation9], 1024
    $region61: #{tpu_custom_call.1} parent=1 // pred_fallthru
      _
    // Predicated region
    $region62: #{tpu_custom_call.1} parent=1 // pred_check
      _
    $region63: #{tpu_custom_call.1} parent=1 // pred_check_branch
      %116 = sbr.rel (0) target = $region65
    $region64: #{tpu_custom_call.1} parent=1 // pred_region
      %117 = dma.done [#allocation12], 1024
    $region65: #{tpu_custom_call.1} parent=1 // pred_fallthru
      _
    %v119 = vld [vmem:[#allocation5] sm:$0xff]
    %v120 = vld [vmem:[#allocation5 + $0x8] sm:$0xff]
    %v121 = vld [vmem:[#allocation5 + $0x10] sm:$0xff]
    %v122 = vld [vmem:[#allocation5 + $0x18] sm:$0xff]
    %v123 = vld [vmem:[#allocation5 + $0x20] sm:$0xff]
    %v124 = vld [vmem:[#allocation5 + $0x28] sm:$0xff]
    %v125 = vld [vmem:[#allocation5 + $0x30] sm:$0xff]
    %v126 = vld [vmem:[#allocation5 + $0x38] sm:$0xff]
    %v127 = vld [vmem:[#allocation5 + $0x40] sm:$0xff]
    %v128 = vld [vmem:[#allocation5 + $0x48] sm:$0xff]
    %v129 = vld [vmem:[#allocation5 + $0x50] sm:$0xff]
    %v130 = vld [vmem:[#allocation5 + $0x58] sm:$0xff]
    %v131 = vld [vmem:[#allocation5 + $0x60] sm:$0xff]
    %v132 = vld [vmem:[#allocation5 + $0x68] sm:$0xff]
    %v133 = vld [vmem:[#allocation5 + $0x70] sm:$0xff]
    %v134 = vld [vmem:[#allocation5 + $0x78] sm:$0xff]
    %v135 = vld [vmem:[#allocation7] sm:$0xf]
    %v136 = vld [vmem:[#allocation7 + $0x4] sm:$0xf]
    %v137 = vld [vmem:[#allocation7 + $0x8] sm:$0xf]
    %v138 = vld [vmem:[#allocation7 + $0xc] sm:$0xf]
    %v139 = vld [vmem:[#allocation7 + $0x10] sm:$0xf]
    %v140 = vld [vmem:[#allocation7 + $0x14] sm:$0xf]
    %v141 = vld [vmem:[#allocation7 + $0x18] sm:$0xf]
    %v142 = vld [vmem:[#allocation7 + $0x1c] sm:$0xf]
    %v143 = vld [vmem:[#allocation7 + $0x20] sm:$0xf]
    %v144 = vld [vmem:[#allocation7 + $0x24] sm:$0xf]
    %v145 = vld [vmem:[#allocation7 + $0x28] sm:$0xf]
    %v146 = vld [vmem:[#allocation7 + $0x2c] sm:$0xf]
    %v147 = vld [vmem:[#allocation7 + $0x30] sm:$0xf]
    %v148 = vld [vmem:[#allocation7 + $0x34] sm:$0xf]
    %v149 = vld [vmem:[#allocation7 + $0x38] sm:$0xf]
    %v150 = vld [vmem:[#allocation7 + $0x3c] sm:$0xf]
    %v151 = vld [vmem:[%s3] sm:$0x1]
    %v153 = vlaneseq
    %v154 = vshrl.u32 %v153, 7
    %v155 = vsub.s32 0, %v154
    %v156 = vrot.slane %v151, %v155
    %v158 = vld [vmem:[#allocation8] sm:$0xf]
    %v159 = vld [vmem:[#allocation8 + $0x4] sm:$0xf]
    %v160 = vld [vmem:[#allocation8 + $0x8] sm:$0xf]
    %v161 = vld [vmem:[#allocation8 + $0xc] sm:$0xf]
    %v162 = vld [vmem:[#allocation8 + $0x10] sm:$0xf]
    %v163 = vld [vmem:[#allocation8 + $0x14] sm:$0xf]
    %v164 = vld [vmem:[#allocation8 + $0x18] sm:$0xf]
    %v165 = vld [vmem:[#allocation8 + $0x1c] sm:$0xf]
    %v166 = vld [vmem:[#allocation8 + $0x20] sm:$0xf]
    %v167 = vld [vmem:[#allocation8 + $0x24] sm:$0xf]
    %v168 = vld [vmem:[#allocation8 + $0x28] sm:$0xf]
    %v169 = vld [vmem:[#allocation8 + $0x2c] sm:$0xf]
    %v170 = vld [vmem:[#allocation8 + $0x30] sm:$0xf]
    %v171 = vld [vmem:[#allocation8 + $0x34] sm:$0xf]
    %v172 = vld [vmem:[#allocation8 + $0x38] sm:$0xf]
    %v173 = vld [vmem:[#allocation8 + $0x3c] sm:$0xf]
    %v174 = vld [vmem:[%s5] sm:$0x1]
    %v176 = vlaneseq
    %v177 = vshrl.u32 %v176, 7
    %v178 = vsub.s32 0, %v177
    %v179 = vrot.slane %v174, %v178
    %v181 = vld [vmem:[#allocation10] sm:$0xf]
    %v182 = vld [vmem:[#allocation10 + $0x4] sm:$0xf]
    %v183 = vld [vmem:[#allocation10 + $0x8] sm:$0xf]
    %v184 = vld [vmem:[#allocation10 + $0xc] sm:$0xf]
    %v185 = vld [vmem:[#allocation10 + $0x10] sm:$0xf]
    %v186 = vld [vmem:[#allocation10 + $0x14] sm:$0xf]
    %v187 = vld [vmem:[#allocation10 + $0x18] sm:$0xf]
    %v188 = vld [vmem:[#allocation10 + $0x1c] sm:$0xf]
    %v189 = vld [vmem:[#allocation10 + $0x20] sm:$0xf]
    %v190 = vld [vmem:[#allocation10 + $0x24] sm:$0xf]
    %v191 = vld [vmem:[#allocation10 + $0x28] sm:$0xf]
    %v192 = vld [vmem:[#allocation10 + $0x2c] sm:$0xf]
    %v193 = vld [vmem:[#allocation10 + $0x30] sm:$0xf]
    %v194 = vld [vmem:[#allocation10 + $0x34] sm:$0xf]
    %v195 = vld [vmem:[#allocation10 + $0x38] sm:$0xf]
    %v196 = vld [vmem:[#allocation10 + $0x3c] sm:$0xf]
    %v197 = vld [vmem:[%s7] sm:$0x1]
    %v199 = vlaneseq
    %v200 = vshrl.u32 %v199, 7
    %v201 = vsub.s32 0, %v200
    %v202 = vrot.slane %v197, %v201
    %v204 = vld [vmem:[#allocation2] sm:$0xff]
    %v205 = vld [vmem:[#allocation2 + $0x8] sm:$0xff]
    %v206 = vld [vmem:[#allocation2 + $0x10] sm:$0xff]
    %v207 = vld [vmem:[#allocation2 + $0x18] sm:$0xff]
    %v208 = vld [vmem:[#allocation2 + $0x20] sm:$0xff]
    %v209 = vld [vmem:[#allocation2 + $0x28] sm:$0xff]
    %v210 = vld [vmem:[#allocation2 + $0x30] sm:$0xff]
    %v211 = vld [vmem:[#allocation2 + $0x38] sm:$0xff]
    %v212 = vpack.c.bf16 %v205, %v204
    %v213 = vpack.c.bf16 %v207, %v206
    %v214 = vpack.c.bf16 %v209, %v208
    %v215 = vpack.c.bf16 %v211, %v210
    %v232 = vunpack.c.l.b16 %v119
    %v233 = vunpack.c.h.b16 %v119
    %v234 = vunpack.c.l.b16 %v120
    %v235 = vunpack.c.h.b16 %v120
    %v236 = vunpack.c.l.b16 %v121
    %v237 = vunpack.c.h.b16 %v121
    %v238 = vunpack.c.l.b16 %v122
    %v239 = vunpack.c.h.b16 %v122
    %v240 = vunpack.c.l.b16 %v123
    %v241 = vunpack.c.h.b16 %v123
    %v242 = vunpack.c.l.b16 %v124
    %v243 = vunpack.c.h.b16 %v124
    %v244 = vunpack.c.l.b16 %v125
    %v245 = vunpack.c.h.b16 %v125
    %v246 = vunpack.c.l.b16 %v126
    %v247 = vunpack.c.h.b16 %v126
    %v248 = vunpack.c.l.b16 %v127
    %v249 = vunpack.c.h.b16 %v127
    %v250 = vunpack.c.l.b16 %v128
    %v251 = vunpack.c.h.b16 %v128
    %v252 = vunpack.c.l.b16 %v129
    %v253 = vunpack.c.h.b16 %v129
    %v254 = vunpack.c.l.b16 %v130
    %v255 = vunpack.c.h.b16 %v130
    %v256 = vunpack.c.l.b16 %v131
    %v257 = vunpack.c.h.b16 %v131
    %v258 = vunpack.c.l.b16 %v132
    %v259 = vunpack.c.h.b16 %v132
    %v260 = vunpack.c.l.b16 %v133
    %v261 = vunpack.c.h.b16 %v133
    %v262 = vunpack.c.l.b16 %v134
    %v263 = vunpack.c.h.b16 %v134
    %v264 = vpack.c.b16 %v234, %v232
    %v265 = vpack.c.b16 %v235, %v233
    %v266 = vpack.c.b16 %v238, %v236
    %v267 = vpack.c.b16 %v239, %v237
    %v268 = vpack.c.b16 %v242, %v240
    %v269 = vpack.c.b16 %v243, %v241
    %v270 = vpack.c.b16 %v246, %v244
    %v271 = vpack.c.b16 %v247, %v245
    %v272 = vpack.c.b16 %v250, %v248
    %v273 = vpack.c.b16 %v251, %v249
    %v274 = vpack.c.b16 %v254, %v252
    %v275 = vpack.c.b16 %v255, %v253
    %v276 = vpack.c.b16 %v258, %v256
    %v277 = vpack.c.b16 %v259, %v257
    %v278 = vpack.c.b16 %v262, %v260
    %v279 = vpack.c.b16 %v263, %v261
    %296 = vmatprep.subr.bf16.mxu0 %v279
    %297 = vmatpush1.bf16.msra.mxu0 %v278
    %298 = vmatprep.subr.bf16.mxu0 %v277
    %299 = vmatpush1.bf16.msra.mxu0 %v276
    %300 = vmatprep.subr.bf16.mxu0 %v275
    %301 = vmatpush1.bf16.msra.mxu0 %v274
    %302 = vmatprep.subr.bf16.mxu0 %v273
    %303 = vmatpush1.bf16.msra.mxu0 %v272
    %304 = vmatprep.subr.bf16.mxu0 %v271
    %305 = vmatpush1.bf16.msra.mxu0 %v270
    %306 = vmatprep.subr.bf16.mxu0 %v269
    %307 = vmatpush1.bf16.msra.mxu0 %v268
    %308 = vmatprep.subr.bf16.mxu0 %v267
    %309 = vmatpush1.bf16.msra.mxu0 %v266
    %310 = vmatprep.subr.bf16.mxu0 %v265
    %311 = vmatpush1.bf16.msra.mxu0 %v264
    %312 = vmatprep.subr.bf16.mxu0 0
    %313 = vmatpush2.bf16.msra.mxu0 0
    %314 = vmatprep.subr.bf16.mxu0 0
    %315 = vmatpush2.bf16.msra.mxu0 0
    %316 = vmatprep.subr.bf16.mxu0 0
    %317 = vmatpush2.bf16.msra.mxu0 0
    %318 = vmatprep.subr.bf16.mxu0 0
    %319 = vmatpush2.bf16.msra.mxu0 0
    %320 = vmatprep.subr.bf16.mxu0 0
    %321 = vmatpush2.bf16.msra.mxu0 0
    %322 = vmatprep.subr.bf16.mxu0 0
    %323 = vmatpush2.bf16.msra.mxu0 0
    %324 = vmatprep.subr.bf16.mxu0 0
    %325 = vmatpush2.bf16.msra.mxu0 0
    %326 = vmatprep.subr.bf16.mxu0 0
    %327 = vmatpush2.bf16.msra.mxu0 0
    %328 = vmatprep.mubr.bf16.mxu0 0
    %329 = vmatmul.mubr.bf16.gmra.mxu0 %v212
    %v330 = vpop.f32.mrf.mxu0
    %v331 = vadd.f32 0.0, %v330
    %v332 = vpop.f32.mrf.mxu0
    %v333 = vadd.f32 0.0, %v332
    %v334 = vpop.f32.mrf.mxu0
    %v335 = vadd.f32 0.0, %v334
    %v336 = vpop.f32.mrf.mxu0
    %v337 = vadd.f32 0.0, %v336
    %338 = vmatprep.mubr.bf16.mxu0 0
    %339 = vmatmul.mubr.bf16.gmra.mxu0 %v213
    %v340 = vpop.f32.mrf.mxu0
    %v341 = vadd.f32 0.0, %v340
    %v342 = vpop.f32.mrf.mxu0
    %v343 = vadd.f32 0.0, %v342
    %v344 = vpop.f32.mrf.mxu0
    %v345 = vadd.f32 0.0, %v344
    %v346 = vpop.f32.mrf.mxu0
    %v347 = vadd.f32 0.0, %v346
    %348 = vmatprep.mubr.bf16.mxu0 0
    %349 = vmatmul.mubr.bf16.gmra.mxu0 %v214
    %v350 = vpop.f32.mrf.mxu0
    %v351 = vadd.f32 0.0, %v350
    %v352 = vpop.f32.mrf.mxu0
    %v353 = vadd.f32 0.0, %v352
    %v354 = vpop.f32.mrf.mxu0
    %v355 = vadd.f32 0.0, %v354
    %v356 = vpop.f32.mrf.mxu0
    %v357 = vadd.f32 0.0, %v356
    %358 = vmatprep.mubr.bf16.mxu0 0
    %359 = vmatmul.mubr.bf16.gmra.mxu0 %v215
    %v360 = vpop.f32.mrf.mxu0
    %v361 = vadd.f32 0.0, %v360
    %v362 = vpop.f32.mrf.mxu0
    %v363 = vadd.f32 0.0, %v362
    %v364 = vpop.f32.mrf.mxu0
    %v365 = vadd.f32 0.0, %v364
    %v366 = vpop.f32.mrf.mxu0
    %v367 = vadd.f32 0.0, %v366
    %368 = vdwg.mxu0
    %vm369 = vcmp.gt.f32.partialorder 0.0, 1.0
    %v370 = vsel %vm369, 1, 0
    %v371 = vcvt.s32.f32 %v370
    %v372 = vadd.f32 %v331, 0.0
    %v373 = vsub.f32 %v372, %v371
    %vm374 = vcmp.gt.f32.partialorder %v373, 1.0
    %v375 = vsel %vm374, 1, 0
    %v376 = vcvt.s32.f32 %v375
    %v377 = vpack.c.bf16 %v376, %v376
    %v394 = vunpack.c.l.b16 %v135
    %v395 = vunpack.c.l.b16 %v136
    %v396 = vunpack.c.l.b16 %v137
    %v397 = vunpack.c.l.b16 %v138
    %v398 = vunpack.c.l.b16 %v139
    %v399 = vunpack.c.l.b16 %v140
    %v400 = vunpack.c.l.b16 %v141
    %v401 = vunpack.c.l.b16 %v142
    %v402 = vunpack.c.l.b16 %v143
    %v403 = vunpack.c.l.b16 %v144
    %v404 = vunpack.c.l.b16 %v145
    %v405 = vunpack.c.l.b16 %v146
    %v406 = vunpack.c.l.b16 %v147
    %v407 = vunpack.c.l.b16 %v148
    %v408 = vunpack.c.l.b16 %v149
    %v409 = vunpack.c.l.b16 %v150
    %v410 = vpack.c.b16 %v395, %v394
    %v411 = vpack.c.b16 %v397, %v396
    %v412 = vpack.c.b16 %v399, %v398
    %v413 = vpack.c.b16 %v401, %v400
    %v414 = vpack.c.b16 %v403, %v402
    %v415 = vpack.c.b16 %v405, %v404
    %v416 = vpack.c.b16 %v407, %v406
    %v417 = vpack.c.b16 %v409, %v408
    %426 = vmatprep.subr.bf16.mxu0 0
    %427 = vmatpush1.bf16.msra.mxu0 %v417
    %428 = vmatprep.subr.bf16.mxu0 0
    %429 = vmatpush1.bf16.msra.mxu0 %v416
    %430 = vmatprep.subr.bf16.mxu0 0
    %431 = vmatpush1.bf16.msra.mxu0 %v415
    %432 = vmatprep.subr.bf16.mxu0 0
    %433 = vmatpush1.bf16.msra.mxu0 %v414
    %434 = vmatprep.subr.bf16.mxu0 0
    %435 = vmatpush1.bf16.msra.mxu0 %v413
    %436 = vmatprep.subr.bf16.mxu0 0
    %437 = vmatpush1.bf16.msra.mxu0 %v412
    %438 = vmatprep.subr.bf16.mxu0 0
    %439 = vmatpush1.bf16.msra.mxu0 %v411
    %440 = vmatprep.subr.bf16.mxu0 0
    %441 = vmatpush1.bf16.msra.mxu0 %v410
    %442 = vmatprep.subr.bf16.mxu0 0
    %443 = vmatpush2.bf16.msra.mxu0 0
    %444 = vmatprep.subr.bf16.mxu0 0
    %445 = vmatpush2.bf16.msra.mxu0 0
    %446 = vmatprep.subr.bf16.mxu0 0
    %447 = vmatpush2.bf16.msra.mxu0 0
    %448 = vmatprep.subr.bf16.mxu0 0
    %449 = vmatpush2.bf16.msra.mxu0 0
    %450 = vmatprep.subr.bf16.mxu0 0
    %451 = vmatpush2.bf16.msra.mxu0 0
    %452 = vmatprep.subr.bf16.mxu0 0
    %453 = vmatpush2.bf16.msra.mxu0 0
    %454 = vmatprep.subr.bf16.mxu0 0
    %455 = vmatpush2.bf16.msra.mxu0 0
    %456 = vmatprep.subr.bf16.mxu0 0
    %457 = vmatpush2.bf16.msra.mxu0 0
    %458 = vmatprep.mubr.bf16.mxu0 0
    %459 = vmatmul.mubr.bf16.gmra.mxu0 %v377
    %v460 = vpop.f32.mrf.mxu0
    %v461 = vadd.f32 %v156, %v460
    %v462 = vpop.f32.mrf.mxu0
    %v463 = vpop.f32.mrf.mxu0
    %v464 = vpop.f32.mrf.mxu0
    %465 = vdwg.mxu0
    %v466 = vadd.f32 %v461, 0.0
    %v467 = vsub.f32 %v466, %v371
    %vm468 = vcmp.gt.f32.partialorder %v467, 1.0
    %v469 = vsel %vm468, 1, 0
    %v470 = vcvt.s32.f32 %v469
    %v471 = vadd.f32 %v470, %v333
    %v472 = vadd.f32 %v471, 0.0
    %v473 = vsub.f32 %v472, %v371
    %vm474 = vcmp.gt.f32.partialorder %v473, 1.0
    %v475 = vsel %vm474, 1, 0
    %v476 = vcvt.s32.f32 %v475
    %v477 = vpack.c.bf16 %v476, %v476
    %v494 = vunpack.c.l.b16 %v158
    %v495 = vunpack.c.l.b16 %v159
    %v496 = vunpack.c.l.b16 %v160
    %v497 = vunpack.c.l.b16 %v161
    %v498 = vunpack.c.l.b16 %v162
    %v499 = vunpack.c.l.b16 %v163
    %v500 = vunpack.c.l.b16 %v164
    %v501 = vunpack.c.l.b16 %v165
    %v502 = vunpack.c.l.b16 %v166
    %v503 = vunpack.c.l.b16 %v167
    %v504 = vunpack.c.l.b16 %v168
    %v505 = vunpack.c.l.b16 %v169
    %v506 = vunpack.c.l.b16 %v170
    %v507 = vunpack.c.l.b16 %v171
    %v508 = vunpack.c.l.b16 %v172
    %v509 = vunpack.c.l.b16 %v173
    %v510 = vpack.c.b16 %v495, %v494
    %v511 = vpack.c.b16 %v497, %v496
    %v512 = vpack.c.b16 %v499, %v498
    %v513 = vpack.c.b16 %v501, %v500
    %v514 = vpack.c.b16 %v503, %v502
    %v515 = vpack.c.b16 %v505, %v504
    %v516 = vpack.c.b16 %v507, %v506
    %v517 = vpack.c.b16 %v509, %v508
    %526 = vmatprep.subr.bf16.mxu0 0
    %527 = vmatpush1.bf16.msra.mxu0 %v517
    %528 = vmatprep.subr.bf16.mxu0 0
    %529 = vmatpush1.bf16.msra.mxu0 %v516
    %530 = vmatprep.subr.bf16.mxu0 0
    %531 = vmatpush1.bf16.msra.mxu0 %v515
    %532 = vmatprep.subr.bf16.mxu0 0
    %533 = vmatpush1.bf16.msra.mxu0 %v514
    %534 = vmatprep.subr.bf16.mxu0 0
    %535 = vmatpush1.bf16.msra.mxu0 %v513
    %536 = vmatprep.subr.bf16.mxu0 0
    %537 = vmatpush1.bf16.msra.mxu0 %v512
    %538 = vmatprep.subr.bf16.mxu0 0
    %539 = vmatpush1.bf16.msra.mxu0 %v511
    %540 = vmatprep.subr.bf16.mxu0 0
    %541 = vmatpush1.bf16.msra.mxu0 %v510
    %542 = vmatprep.subr.bf16.mxu0 0
    %543 = vmatpush2.bf16.msra.mxu0 0
    %544 = vmatprep.subr.bf16.mxu0 0
    %545 = vmatpush2.bf16.msra.mxu0 0
    %546 = vmatprep.subr.bf16.mxu0 0
    %547 = vmatpush2.bf16.msra.mxu0 0
    %548 = vmatprep.subr.bf16.mxu0 0
    %549 = vmatpush2.bf16.msra.mxu0 0
    %550 = vmatprep.subr.bf16.mxu0 0
    %551 = vmatpush2.bf16.msra.mxu0 0
    %552 = vmatprep.subr.bf16.mxu0 0
    %553 = vmatpush2.bf16.msra.mxu0 0
    %554 = vmatprep.subr.bf16.mxu0 0
    %555 = vmatpush2.bf16.msra.mxu0 0
    %556 = vmatprep.subr.bf16.mxu0 0
    %557 = vmatpush2.bf16.msra.mxu0 0
    %558 = vmatprep.mubr.bf16.mxu0 0
    %559 = vmatmul.mubr.bf16.gmra.mxu0 %v477
    %v560 = vpop.f32.mrf.mxu0
    %v561 = vadd.f32 %v179, %v560
    %v562 = vpop.f32.mrf.mxu0
    %v563 = vpop.f32.mrf.mxu0
    %v564 = vpop.f32.mrf.mxu0
    %565 = vdwg.mxu0
    %v566 = vadd.f32 %v561, 0.0
    %v567 = vsub.f32 %v566, %v371
    %vm568 = vcmp.gt.f32.partialorder %v567, 1.0
    %v569 = vsel %vm568, 1, 0
    %v570 = vcvt.s32.f32 %v569
    %v571 = vpack.c.bf16 %v570, %v570
    %v588 = vunpack.c.l.b16 %v181
    %v589 = vunpack.c.l.b16 %v182
    %v590 = vunpack.c.l.b16 %v183
    %v591 = vunpack.c.l.b16 %v184
    %v592 = vunpack.c.l.b16 %v185
    %v593 = vunpack.c.l.b16 %v186
    %v594 = vunpack.c.l.b16 %v187
    %v595 = vunpack.c.l.b16 %v188
    %v596 = vunpack.c.l.b16 %v189
    %v597 = vunpack.c.l.b16 %v190
    %v598 = vunpack.c.l.b16 %v191
    %v599 = vunpack.c.l.b16 %v192
    %v600 = vunpack.c.l.b16 %v193
    %v601 = vunpack.c.l.b16 %v194
    %v602 = vunpack.c.l.b16 %v195
    %v603 = vunpack.c.l.b16 %v196
    %v604 = vpack.c.b16 %v589, %v588
    %v605 = vpack.c.b16 %v591, %v590
    %v606 = vpack.c.b16 %v593, %v592
    %v607 = vpack.c.b16 %v595, %v594
    %v608 = vpack.c.b16 %v597, %v596
    %v609 = vpack.c.b16 %v599, %v598
    %v610 = vpack.c.b16 %v601, %v600
    %v611 = vpack.c.b16 %v603, %v602
    %620 = vmatprep.subr.bf16.mxu0 0
    %621 = vmatpush1.bf16.msra.mxu0 %v611
    %622 = vmatprep.subr.bf16.mxu0 0
    %623 = vmatpush1.bf16.msra.mxu0 %v610
    %624 = vmatprep.subr.bf16.mxu0 0
    %625 = vmatpush1.bf16.msra.mxu0 %v609
    %626 = vmatprep.subr.bf16.mxu0 0
    %627 = vmatpush1.bf16.msra.mxu0 %v608
    %628 = vmatprep.subr.bf16.mxu0 0
    %629 = vmatpush1.bf16.msra.mxu0 %v607
    %630 = vmatprep.subr.bf16.mxu0 0
    %631 = vmatpush1.bf16.msra.mxu0 %v606
    %632 = vmatprep.subr.bf16.mxu0 0
    %633 = vmatpush1.bf16.msra.mxu0 %v605
    %634 = vmatprep.subr.bf16.mxu0 0
    %635 = vmatpush1.bf16.msra.mxu0 %v604
    %636 = vmatprep.subr.bf16.mxu0 0
    %637 = vmatpush2.bf16.msra.mxu0 0
    %638 = vmatprep.subr.bf16.mxu0 0
    %639 = vmatpush2.bf16.msra.mxu0 0
    %640 = vmatprep.subr.bf16.mxu0 0
    %641 = vmatpush2.bf16.msra.mxu0 0
    %642 = vmatprep.subr.bf16.mxu0 0
    %643 = vmatpush2.bf16.msra.mxu0 0
    %644 = vmatprep.subr.bf16.mxu0 0
    %645 = vmatpush2.bf16.msra.mxu0 0
    %646 = vmatprep.subr.bf16.mxu0 0
    %647 = vmatpush2.bf16.msra.mxu0 0
    %648 = vmatprep.subr.bf16.mxu0 0
    %649 = vmatpush2.bf16.msra.mxu0 0
    %650 = vmatprep.subr.bf16.mxu0 0
    %651 = vmatpush2.bf16.msra.mxu0 0
    %652 = vmatprep.mubr.bf16.mxu0 0
    %653 = vmatmul.mubr.bf16.gmra.mxu0 %v571
    %v654 = vpop.f32.mrf.mxu0
    %v655 = vadd.f32 %v202, %v654
    %v656 = vpop.f32.mrf.mxu0
    %v657 = vpop.f32.mrf.mxu0
    %v658 = vpop.f32.mrf.mxu0
    %659 = vdwg.mxu0
    %v660 = vadd.f32 %v655, 0.0
    %v661 = vsub.f32 %v660, %v371
    %vm662 = vcmp.gt.f32.partialorder %v661, 1.0
    %v663 = vsel %vm662, 1, 0
    %v664 = vcvt.s32.f32 %v663
    %v665 = vadd.f32 %v664, %v476
    %v666 = vadd.f32 %v665, 0.0
    %v667 = vsub.f32 %v666, %v371
    %vm668 = vcmp.gt.f32.partialorder %v667, 1.0
    %v669 = vsel %vm668, 1, 0
    %v670 = vcvt.s32.f32 %v669
    %v671 = vadd.f32 %v670, 0.0
    %v672 = vmul.f32 %v373, 0.9
    %v673 = vadd.f32 %v672, %v335
    %v674 = vsub.f32 %v673, %v376
    %vm675 = vcmp.gt.f32.partialorder %v674, 1.0
    %v676 = vsel %vm675, 1, 0
    %v677 = vcvt.s32.f32 %v676
    %v678 = vpack.c.bf16 %v677, %v677
    %679 = vmatprep.subr.bf16.mxu0 0
    %680 = vmatpush1.bf16.msra.mxu0 %v417
    %681 = vmatprep.subr.bf16.mxu0 0
    %682 = vmatpush1.bf16.msra.mxu0 %v416
    %683 = vmatprep.subr.bf16.mxu0 0
    %684 = vmatpush1.bf16.msra.mxu0 %v415
    %685 = vmatprep.subr.bf16.mxu0 0
    %686 = vmatpush1.bf16.msra.mxu0 %v414
    %687 = vmatprep.subr.bf16.mxu0 0
    %688 = vmatpush1.bf16.msra.mxu0 %v413
    %689 = vmatprep.subr.bf16.mxu0 0
    %690 = vmatpush1.bf16.msra.mxu0 %v412
    %691 = vmatprep.subr.bf16.mxu0 0
    %692 = vmatpush1.bf16.msra.mxu0 %v411
    %693 = vmatprep.subr.bf16.mxu0 0
    %694 = vmatpush1.bf16.msra.mxu0 %v410
    %695 = vmatprep.subr.bf16.mxu0 0
    %696 = vmatpush2.bf16.msra.mxu0 0
    %697 = vmatprep.subr.bf16.mxu0 0
    %698 = vmatpush2.bf16.msra.mxu0 0
    %699 = vmatprep.subr.bf16.mxu0 0
    %700 = vmatpush2.bf16.msra.mxu0 0
    %701 = vmatprep.subr.bf16.mxu0 0
    %702 = vmatpush2.bf16.msra.mxu0 0
    %703 = vmatprep.subr.bf16.mxu0 0
    %704 = vmatpush2.bf16.msra.mxu0 0
    %705 = vmatprep.subr.bf16.mxu0 0
    %706 = vmatpush2.bf16.msra.mxu0 0
    %707 = vmatprep.subr.bf16.mxu0 0
    %708 = vmatpush2.bf16.msra.mxu0 0
    %709 = vmatprep.subr.bf16.mxu0 0
    %710 = vmatpush2.bf16.msra.mxu0 0
    %711 = vmatprep.mubr.bf16.mxu0 0
    %712 = vmatmul.mubr.bf16.gmra.mxu0 %v678
    %v713 = vpop.f32.mrf.mxu0
    %v714 = vadd.f32 %v156, %v713
    %v715 = vpop.f32.mrf.mxu0
    %v716 = vpop.f32.mrf.mxu0
    %v717 = vpop.f32.mrf.mxu0
    %718 = vdwg.mxu0
    %v719 = vmul.f32 %v467, 0.9
    %v720 = vadd.f32 %v719, %v714
    %v721 = vsub.f32 %v720, %v470
    %vm722 = vcmp.gt.f32.partialorder %v721, 1.0
    %v723 = vsel %vm722, 1, 0
    %v724 = vcvt.s32.f32 %v723
    %v725 = vadd.f32 %v724, %v337
    %v726 = vmul.f32 %v473, 0.9
    %v727 = vadd.f32 %v726, %v725
    %v728 = vsub.f32 %v727, %v476
    %vm729 = vcmp.gt.f32.partialorder %v728, 1.0
    %v730 = vsel %vm729, 1, 0
    %v731 = vcvt.s32.f32 %v730
    %v732 = vpack.c.bf16 %v731, %v731
    %733 = vmatprep.subr.bf16.mxu0 0
    %734 = vmatpush1.bf16.msra.mxu0 %v517
    %735 = vmatprep.subr.bf16.mxu0 0
    %736 = vmatpush1.bf16.msra.mxu0 %v516
    %737 = vmatprep.subr.bf16.mxu0 0
    %738 = vmatpush1.bf16.msra.mxu0 %v515
    %739 = vmatprep.subr.bf16.mxu0 0
    %740 = vmatpush1.bf16.msra.mxu0 %v514
    %741 = vmatprep.subr.bf16.mxu0 0
    %742 = vmatpush1.bf16.msra.mxu0 %v513
    %743 = vmatprep.subr.bf16.mxu0 0
    %744 = vmatpush1.bf16.msra.mxu0 %v512
    %745 = vmatprep.subr.bf16.mxu0 0
    %746 = vmatpush1.bf16.msra.mxu0 %v511
    %747 = vmatprep.subr.bf16.mxu0 0
    %748 = vmatpush1.bf16.msra.mxu0 %v510
    %749 = vmatprep.subr.bf16.mxu0 0
    %750 = vmatpush2.bf16.msra.mxu0 0
    %751 = vmatprep.subr.bf16.mxu0 0
    %752 = vmatpush2.bf16.msra.mxu0 0
    %753 = vmatprep.subr.bf16.mxu0 0
    %754 = vmatpush2.bf16.msra.mxu0 0
    %755 = vmatprep.subr.bf16.mxu0 0
    %756 = vmatpush2.bf16.msra.mxu0 0
    %757 = vmatprep.subr.bf16.mxu0 0
    %758 = vmatpush2.bf16.msra.mxu0 0
    %759 = vmatprep.subr.bf16.mxu0 0
    %760 = vmatpush2.bf16.msra.mxu0 0
    %761 = vmatprep.subr.bf16.mxu0 0
    %762 = vmatpush2.bf16.msra.mxu0 0
    %763 = vmatprep.subr.bf16.mxu0 0
    %764 = vmatpush2.bf16.msra.mxu0 0
    %765 = vmatprep.mubr.bf16.mxu0 0
    %766 = vmatmul.mubr.bf16.gmra.mxu0 %v732
    %v767 = vpop.f32.mrf.mxu0
    %v768 = vadd.f32 %v179, %v767
    %v769 = vpop.f32.mrf.mxu0
    %v770 = vpop.f32.mrf.mxu0
    %v771 = vpop.f32.mrf.mxu0
    %772 = vdwg.mxu0
    %v773 = vmul.f32 %v567, 0.9
    %v774 = vadd.f32 %v773, %v768
    %v775 = vsub.f32 %v774, %v570
    %vm776 = vcmp.gt.f32.partialorder %v775, 1.0
    %v777 = vsel %vm776, 1, 0
    %v778 = vcvt.s32.f32 %v777
    %v779 = vpack.c.bf16 %v778, %v778
    %780 = vmatprep.subr.bf16.mxu0 0
    %781 = vmatpush1.bf16.msra.mxu0 %v611
    %782 = vmatprep.subr.bf16.mxu0 0
    %783 = vmatpush1.bf16.msra.mxu0 %v610
    %784 = vmatprep.subr.bf16.mxu0 0
    %785 = vmatpush1.bf16.msra.mxu0 %v609
    %786 = vmatprep.subr.bf16.mxu0 0
    %787 = vmatpush1.bf16.msra.mxu0 %v608
    %788 = vmatprep.subr.bf16.mxu0 0
    %789 = vmatpush1.bf16.msra.mxu0 %v607
    %790 = vmatprep.subr.bf16.mxu0 0
    %791 = vmatpush1.bf16.msra.mxu0 %v606
    %792 = vmatprep.subr.bf16.mxu0 0
    %793 = vmatpush1.bf16.msra.mxu0 %v605
    %794 = vmatprep.subr.bf16.mxu0 0
    %795 = vmatpush1.bf16.msra.mxu0 %v604
    %796 = vmatprep.subr.bf16.mxu0 0
    %797 = vmatpush2.bf16.msra.mxu0 0
    %798 = vmatprep.subr.bf16.mxu0 0
    %799 = vmatpush2.bf16.msra.mxu0 0
    %800 = vmatprep.subr.bf16.mxu0 0
    %801 = vmatpush2.bf16.msra.mxu0 0
    %802 = vmatprep.subr.bf16.mxu0 0
    %803 = vmatpush2.bf16.msra.mxu0 0
    %804 = vmatprep.subr.bf16.mxu0 0
    %805 = vmatpush2.bf16.msra.mxu0 0
    %806 = vmatprep.subr.bf16.mxu0 0
    %807 = vmatpush2.bf16.msra.mxu0 0
    %808 = vmatprep.subr.bf16.mxu0 0
    %809 = vmatpush2.bf16.msra.mxu0 0
    %810 = vmatprep.subr.bf16.mxu0 0
    %811 = vmatpush2.bf16.msra.mxu0 0
    %812 = vmatprep.mubr.bf16.mxu0 0
    %813 = vmatmul.mubr.bf16.gmra.mxu0 %v779
    %v814 = vpop.f32.mrf.mxu0
    %v815 = vadd.f32 %v202, %v814
    %v816 = vpop.f32.mrf.mxu0
    %v817 = vpop.f32.mrf.mxu0
    %v818 = vpop.f32.mrf.mxu0
    %819 = vdwg.mxu0
    %v820 = vmul.f32 %v661, 0.9
    %v821 = vadd.f32 %v820, %v815
    %v822 = vsub.f32 %v821, %v664
    %vm823 = vcmp.gt.f32.partialorder %v822, 1.0
    %v824 = vsel %vm823, 1, 0
    %v825 = vcvt.s32.f32 %v824
    %v826 = vadd.f32 %v825, %v731
    %v827 = vmul.f32 %v667, 0.9
    %v828 = vadd.f32 %v827, %v826
    %v829 = vsub.f32 %v828, %v670
    %vm830 = vcmp.gt.f32.partialorder %v829, 1.0
    %v831 = vsel %vm830, 1, 0
    %v832 = vcvt.s32.f32 %v831
    %v833 = vadd.f32 %v671, %v832
    %v834 = vmul.f32 %v674, 0.9
    %v835 = vadd.f32 %v834, %v341
    %v836 = vsub.f32 %v835, %v677
    %vm837 = vcmp.gt.f32.partialorder %v836, 1.0
    %v838 = vsel %vm837, 1, 0
    %v839 = vcvt.s32.f32 %v838
    %v840 = vpack.c.bf16 %v839, %v839
    %841 = vmatprep.subr.bf16.mxu0 0
    %842 = vmatpush1.bf16.msra.mxu0 %v417
    %843 = vmatprep.subr.bf16.mxu0 0
    %844 = vmatpush1.bf16.msra.mxu0 %v416
    %845 = vmatprep.subr.bf16.mxu0 0
    %846 = vmatpush1.bf16.msra.mxu0 %v415
    %847 = vmatprep.subr.bf16.mxu0 0
    %848 = vmatpush1.bf16.msra.mxu0 %v414
    %849 = vmatprep.subr.bf16.mxu0 0
    %850 = vmatpush1.bf16.msra.mxu0 %v413
    %851 = vmatprep.subr.bf16.mxu0 0
    %852 = vmatpush1.bf16.msra.mxu0 %v412
    %853 = vmatprep.subr.bf16.mxu0 0
    %854 = vmatpush1.bf16.msra.mxu0 %v411
    %855 = vmatprep.subr.bf16.mxu0 0
    %856 = vmatpush1.bf16.msra.mxu0 %v410
    %857 = vmatprep.subr.bf16.mxu0 0
    %858 = vmatpush2.bf16.msra.mxu0 0
    %859 = vmatprep.subr.bf16.mxu0 0
    %860 = vmatpush2.bf16.msra.mxu0 0
    %861 = vmatprep.subr.bf16.mxu0 0
    %862 = vmatpush2.bf16.msra.mxu0 0
    %863 = vmatprep.subr.bf16.mxu0 0
    %864 = vmatpush2.bf16.msra.mxu0 0
    %865 = vmatprep.subr.bf16.mxu0 0
    %866 = vmatpush2.bf16.msra.mxu0 0
    %867 = vmatprep.subr.bf16.mxu0 0
    %868 = vmatpush2.bf16.msra.mxu0 0
    %869 = vmatprep.subr.bf16.mxu0 0
    %870 = vmatpush2.bf16.msra.mxu0 0
    %871 = vmatprep.subr.bf16.mxu0 0
    %872 = vmatpush2.bf16.msra.mxu0 0
    %873 = vmatprep.mubr.bf16.mxu0 0
    %874 = vmatmul.mubr.bf16.gmra.mxu0 %v840
    %v875 = vpop.f32.mrf.mxu0
    %v876 = vadd.f32 %v156, %v875
    %v877 = vpop.f32.mrf.mxu0
    %v878 = vpop.f32.mrf.mxu0
    %v879 = vpop.f32.mrf.mxu0
    %880 = vdwg.mxu0
    %v881 = vmul.f32 %v721, 0.9
    %v882 = vadd.f32 %v881, %v876
    %v883 = vsub.f32 %v882, %v724
    %vm884 = vcmp.gt.f32.partialorder %v883, 1.0
    %v885 = vsel %vm884, 1, 0
    %v886 = vcvt.s32.f32 %v885
    %v887 = vadd.f32 %v886, %v343
    %v888 = vmul.f32 %v728, 0.9
    %v889 = vadd.f32 %v888, %v887
    %v890 = vsub.f32 %v889, %v731
    %vm891 = vcmp.gt.f32.partialorder %v890, 1.0
    %v892 = vsel %vm891, 1, 0
    %v893 = vcvt.s32.f32 %v892
    %v894 = vpack.c.bf16 %v893, %v893
    %895 = vmatprep.subr.bf16.mxu0 0
    %896 = vmatpush1.bf16.msra.mxu0 %v517
    %897 = vmatprep.subr.bf16.mxu0 0
    %898 = vmatpush1.bf16.msra.mxu0 %v516
    %899 = vmatprep.subr.bf16.mxu0 0
    %900 = vmatpush1.bf16.msra.mxu0 %v515
    %901 = vmatprep.subr.bf16.mxu0 0
    %902 = vmatpush1.bf16.msra.mxu0 %v514
    %903 = vmatprep.subr.bf16.mxu0 0
    %904 = vmatpush1.bf16.msra.mxu0 %v513
    %905 = vmatprep.subr.bf16.mxu0 0
    %906 = vmatpush1.bf16.msra.mxu0 %v512
    %907 = vmatprep.subr.bf16.mxu0 0
    %908 = vmatpush1.bf16.msra.mxu0 %v511
    %909 = vmatprep.subr.bf16.mxu0 0
    %910 = vmatpush1.bf16.msra.mxu0 %v510
    %911 = vmatprep.subr.bf16.mxu0 0
    %912 = vmatpush2.bf16.msra.mxu0 0
    %913 = vmatprep.subr.bf16.mxu0 0
    %914 = vmatpush2.bf16.msra.mxu0 0
    %915 = vmatprep.subr.bf16.mxu0 0
    %916 = vmatpush2.bf16.msra.mxu0 0
    %917 = vmatprep.subr.bf16.mxu0 0
    %918 = vmatpush2.bf16.msra.mxu0 0
    %919 = vmatprep.subr.bf16.mxu0 0
    %920 = vmatpush2.bf16.msra.mxu0 0
    %921 = vmatprep.subr.bf16.mxu0 0
    %922 = vmatpush2.bf16.msra.mxu0 0
    %923 = vmatprep.subr.bf16.mxu0 0
    %924 = vmatpush2.bf16.msra.mxu0 0
    %925 = vmatprep.subr.bf16.mxu0 0
    %926 = vmatpush2.bf16.msra.mxu0 0
    %927 = vmatprep.mubr.bf16.mxu0 0
    %928 = vmatmul.mubr.bf16.gmra.mxu0 %v894
    %v929 = vpop.f32.mrf.mxu0
    %v930 = vadd.f32 %v179, %v929
    %v931 = vpop.f32.mrf.mxu0
    %v932 = vpop.f32.mrf.mxu0
    %v933 = vpop.f32.mrf.mxu0
    %934 = vdwg.mxu0
    %v935 = vmul.f32 %v775, 0.9
    %v936 = vadd.f32 %v935, %v930
    %v937 = vsub.f32 %v936, %v778
    %vm938 = vcmp.gt.f32.partialorder %v937, 1.0
    %v939 = vsel %vm938, 1, 0
    %v940 = vcvt.s32.f32 %v939
    %v941 = vpack.c.bf16 %v940, %v940
    %942 = vmatprep.subr.bf16.mxu0 0
    %943 = vmatpush1.bf16.msra.mxu0 %v611
    %944 = vmatprep.subr.bf16.mxu0 0
    %945 = vmatpush1.bf16.msra.mxu0 %v610
    %946 = vmatprep.subr.bf16.mxu0 0
    %947 = vmatpush1.bf16.msra.mxu0 %v609
    %948 = vmatprep.subr.bf16.mxu0 0
    %949 = vmatpush1.bf16.msra.mxu0 %v608
    %950 = vmatprep.subr.bf16.mxu0 0
    %951 = vmatpush1.bf16.msra.mxu0 %v607
    %952 = vmatprep.subr.bf16.mxu0 0
    %953 = vmatpush1.bf16.msra.mxu0 %v606
    %954 = vmatprep.subr.bf16.mxu0 0
    %955 = vmatpush1.bf16.msra.mxu0 %v605
    %956 = vmatprep.subr.bf16.mxu0 0
    %957 = vmatpush1.bf16.msra.mxu0 %v604
    %958 = vmatprep.subr.bf16.mxu0 0
    %959 = vmatpush2.bf16.msra.mxu0 0
    %960 = vmatprep.subr.bf16.mxu0 0
    %961 = vmatpush2.bf16.msra.mxu0 0
    %962 = vmatprep.subr.bf16.mxu0 0
    %963 = vmatpush2.bf16.msra.mxu0 0
    %964 = vmatprep.subr.bf16.mxu0 0
    %965 = vmatpush2.bf16.msra.mxu0 0
    %966 = vmatprep.subr.bf16.mxu0 0
    %967 = vmatpush2.bf16.msra.mxu0 0
    %968 = vmatprep.subr.bf16.mxu0 0
    %969 = vmatpush2.bf16.msra.mxu0 0
    %970 = vmatprep.subr.bf16.mxu0 0
    %971 = vmatpush2.bf16.msra.mxu0 0
    %972 = vmatprep.subr.bf16.mxu0 0
    %973 = vmatpush2.bf16.msra.mxu0 0
    %974 = vmatprep.mubr.bf16.mxu0 0
    %975 = vmatmul.mubr.bf16.gmra.mxu0 %v941
    %v976 = vpop.f32.mrf.mxu0
    %v977 = vadd.f32 %v202, %v976
    %v978 = vpop.f32.mrf.mxu0
    %v979 = vpop.f32.mrf.mxu0
    %v980 = vpop.f32.mrf.mxu0
    %981 = vdwg.mxu0
    %v982 = vmul.f32 %v822, 0.9
    %v983 = vadd.f32 %v982, %v977
    %v984 = vsub.f32 %v983, %v825
    %vm985 = vcmp.gt.f32.partialorder %v984, 1.0
    %v986 = vsel %vm985, 1, 0
    %v987 = vcvt.s32.f32 %v986
    %v988 = vadd.f32 %v987, %v893
    %v989 = vmul.f32 %v829, 0.9
    %v990 = vadd.f32 %v989, %v988
    %v991 = vsub.f32 %v990, %v832
    %vm992 = vcmp.gt.f32.partialorder %v991, 1.0
    %v993 = vsel %vm992, 1, 0
    %v994 = vcvt.s32.f32 %v993
    %v995 = vadd.f32 %v833, %v994
    %v996 = vmul.f32 %v836, 0.9
    %v997 = vadd.f32 %v996, %v345
    %v998 = vsub.f32 %v997, %v839
    %vm999 = vcmp.gt.f32.partialorder %v998, 1.0
    %v1000 = vsel %vm999, 1, 0
    %v1001 = vcvt.s32.f32 %v1000
    %v1002 = vpack.c.bf16 %v1001, %v1001
    %1003 = vmatprep.subr.bf16.mxu0 0
    %1004 = vmatpush1.bf16.msra.mxu0 %v417
    %1005 = vmatprep.subr.bf16.mxu0 0
    %1006 = vmatpush1.bf16.msra.mxu0 %v416
    %1007 = vmatprep.subr.bf16.mxu0 0
    %1008 = vmatpush1.bf16.msra.mxu0 %v415
    %1009 = vmatprep.subr.bf16.mxu0 0
    %1010 = vmatpush1.bf16.msra.mxu0 %v414
    %1011 = vmatprep.subr.bf16.mxu0 0
    %1012 = vmatpush1.bf16.msra.mxu0 %v413
    %1013 = vmatprep.subr.bf16.mxu0 0
    %1014 = vmatpush1.bf16.msra.mxu0 %v412
    %1015 = vmatprep.subr.bf16.mxu0 0
    %1016 = vmatpush1.bf16.msra.mxu0 %v411
    %1017 = vmatprep.subr.bf16.mxu0 0
    %1018 = vmatpush1.bf16.msra.mxu0 %v410
    %1019 = vmatprep.subr.bf16.mxu0 0
    %1020 = vmatpush2.bf16.msra.mxu0 0
    %1021 = vmatprep.subr.bf16.mxu0 0
    %1022 = vmatpush2.bf16.msra.mxu0 0
    %1023 = vmatprep.subr.bf16.mxu0 0
    %1024 = vmatpush2.bf16.msra.mxu0 0
    %1025 = vmatprep.subr.bf16.mxu0 0
    %1026 = vmatpush2.bf16.msra.mxu0 0
    %1027 = vmatprep.subr.bf16.mxu0 0
    %1028 = vmatpush2.bf16.msra.mxu0 0
    %1029 = vmatprep.subr.bf16.mxu0 0
    %1030 = vmatpush2.bf16.msra.mxu0 0
    %1031 = vmatprep.subr.bf16.mxu0 0
    %1032 = vmatpush2.bf16.msra.mxu0 0
    %1033 = vmatprep.subr.bf16.mxu0 0
    %1034 = vmatpush2.bf16.msra.mxu0 0
    %1035 = vmatprep.mubr.bf16.mxu0 0
    %1036 = vmatmul.mubr.bf16.gmra.mxu0 %v1002
    %v1037 = vpop.f32.mrf.mxu0
    %v1038 = vadd.f32 %v156, %v1037
    %v1039 = vpop.f32.mrf.mxu0
    %v1040 = vpop.f32.mrf.mxu0
    %v1041 = vpop.f32.mrf.mxu0
    %1042 = vdwg.mxu0
    %v1043 = vmul.f32 %v883, 0.9
    %v1044 = vadd.f32 %v1043, %v1038
    %v1045 = vsub.f32 %v1044, %v886
    %vm1046 = vcmp.gt.f32.partialorder %v1045, 1.0
    %v1047 = vsel %vm1046, 1, 0
    %v1048 = vcvt.s32.f32 %v1047
    %v1049 = vadd.f32 %v1048, %v347
    %v1050 = vmul.f32 %v890, 0.9
    %v1051 = vadd.f32 %v1050, %v1049
    %v1052 = vsub.f32 %v1051, %v893
    %vm1053 = vcmp.gt.f32.partialorder %v1052, 1.0
    %v1054 = vsel %vm1053, 1, 0
    %v1055 = vcvt.s32.f32 %v1054
    %v1056 = vpack.c.bf16 %v1055, %v1055
    %1057 = vmatprep.subr.bf16.mxu0 0
    %1058 = vmatpush1.bf16.msra.mxu0 %v517
    %1059 = vmatprep.subr.bf16.mxu0 0
    %1060 = vmatpush1.bf16.msra.mxu0 %v516
    %1061 = vmatprep.subr.bf16.mxu0 0
    %1062 = vmatpush1.bf16.msra.mxu0 %v515
    %1063 = vmatprep.subr.bf16.mxu0 0
    %1064 = vmatpush1.bf16.msra.mxu0 %v514
    %1065 = vmatprep.subr.bf16.mxu0 0
    %1066 = vmatpush1.bf16.msra.mxu0 %v513
    %1067 = vmatprep.subr.bf16.mxu0 0
    %1068 = vmatpush1.bf16.msra.mxu0 %v512
    %1069 = vmatprep.subr.bf16.mxu0 0
    %1070 = vmatpush1.bf16.msra.mxu0 %v511
    %1071 = vmatprep.subr.bf16.mxu0 0
    %1072 = vmatpush1.bf16.msra.mxu0 %v510
    %1073 = vmatprep.subr.bf16.mxu0 0
    %1074 = vmatpush2.bf16.msra.mxu0 0
    %1075 = vmatprep.subr.bf16.mxu0 0
    %1076 = vmatpush2.bf16.msra.mxu0 0
    %1077 = vmatprep.subr.bf16.mxu0 0
    %1078 = vmatpush2.bf16.msra.mxu0 0
    %1079 = vmatprep.subr.bf16.mxu0 0
    %1080 = vmatpush2.bf16.msra.mxu0 0
    %1081 = vmatprep.subr.bf16.mxu0 0
    %1082 = vmatpush2.bf16.msra.mxu0 0
    %1083 = vmatprep.subr.bf16.mxu0 0
    %1084 = vmatpush2.bf16.msra.mxu0 0
    %1085 = vmatprep.subr.bf16.mxu0 0
    %1086 = vmatpush2.bf16.msra.mxu0 0
    %1087 = vmatprep.subr.bf16.mxu0 0
    %1088 = vmatpush2.bf16.msra.mxu0 0
    %1089 = vmatprep.mubr.bf16.mxu0 0
    %1090 = vmatmul.mubr.bf16.gmra.mxu0 %v1056
    %v1091 = vpop.f32.mrf.mxu0
    %v1092 = vadd.f32 %v179, %v1091
    %v1093 = vpop.f32.mrf.mxu0
    %v1094 = vpop.f32.mrf.mxu0
    %v1095 = vpop.f32.mrf.mxu0
    %1096 = vdwg.mxu0
    %v1097 = vmul.f32 %v937, 0.9
    %v1098 = vadd.f32 %v1097, %v1092
    %v1099 = vsub.f32 %v1098, %v940
    %vm1100 = vcmp.gt.f32.partialorder %v1099, 1.0
    %v1101 = vsel %vm1100, 1, 0
    %v1102 = vcvt.s32.f32 %v1101
    %v1103 = vpack.c.bf16 %v1102, %v1102
    %1104 = vmatprep.subr.bf16.mxu0 0
    %1105 = vmatpush1.bf16.msra.mxu0 %v611
    %1106 = vmatprep.subr.bf16.mxu0 0
    %1107 = vmatpush1.bf16.msra.mxu0 %v610
    %1108 = vmatprep.subr.bf16.mxu0 0
    %1109 = vmatpush1.bf16.msra.mxu0 %v609
    %1110 = vmatprep.subr.bf16.mxu0 0
    %1111 = vmatpush1.bf16.msra.mxu0 %v608
    %1112 = vmatprep.subr.bf16.mxu0 0
    %1113 = vmatpush1.bf16.msra.mxu0 %v607
    %1114 = vmatprep.subr.bf16.mxu0 0
    %1115 = vmatpush1.bf16.msra.mxu0 %v606
    %1116 = vmatprep.subr.bf16.mxu0 0
    %1117 = vmatpush1.bf16.msra.mxu0 %v605
    %1118 = vmatprep.subr.bf16.mxu0 0
    %1119 = vmatpush1.bf16.msra.mxu0 %v604
    %1120 = vmatprep.subr.bf16.mxu0 0
    %1121 = vmatpush2.bf16.msra.mxu0 0
    %1122 = vmatprep.subr.bf16.mxu0 0
    %1123 = vmatpush2.bf16.msra.mxu0 0
    %1124 = vmatprep.subr.bf16.mxu0 0
    %1125 = vmatpush2.bf16.msra.mxu0 0
    %1126 = vmatprep.subr.bf16.mxu0 0
    %1127 = vmatpush2.bf16.msra.mxu0 0
    %1128 = vmatprep.subr.bf16.mxu0 0
    %1129 = vmatpush2.bf16.msra.mxu0 0
    %1130 = vmatprep.subr.bf16.mxu0 0
    %1131 = vmatpush2.bf16.msra.mxu0 0
    %1132 = vmatprep.subr.bf16.mxu0 0
    %1133 = vmatpush2.bf16.msra.mxu0 0
    %1134 = vmatprep.subr.bf16.mxu0 0
    %1135 = vmatpush2.bf16.msra.mxu0 0
    %1136 = vmatprep.mubr.bf16.mxu0 0
    %1137 = vmatmul.mubr.bf16.gmra.mxu0 %v1103
    %v1138 = vpop.f32.mrf.mxu0
    %v1139 = vadd.f32 %v202, %v1138
    %v1140 = vpop.f32.mrf.mxu0
    %v1141 = vpop.f32.mrf.mxu0
    %v1142 = vpop.f32.mrf.mxu0
    %1143 = vdwg.mxu0
    %v1144 = vmul.f32 %v984, 0.9
    %v1145 = vadd.f32 %v1144, %v1139
    %v1146 = vsub.f32 %v1145, %v987
    %vm1147 = vcmp.gt.f32.partialorder %v1146, 1.0
    %v1148 = vsel %vm1147, 1, 0
    %v1149 = vcvt.s32.f32 %v1148
    %v1150 = vadd.f32 %v1149, %v1055
    %v1151 = vmul.f32 %v991, 0.9
    %v1152 = vadd.f32 %v1151, %v1150
    %v1153 = vsub.f32 %v1152, %v994
    %vm1154 = vcmp.gt.f32.partialorder %v1153, 1.0
    %v1155 = vsel %vm1154, 1, 0
    %v1156 = vcvt.s32.f32 %v1155
    %v1157 = vadd.f32 %v995, %v1156
    %v1158 = vmul.f32 %v998, 0.9
    %v1159 = vadd.f32 %v1158, %v351
    %v1160 = vsub.f32 %v1159, %v1001
    %vm1161 = vcmp.gt.f32.partialorder %v1160, 1.0
    %v1162 = vsel %vm1161, 1, 0
    %v1163 = vcvt.s32.f32 %v1162
    %v1164 = vpack.c.bf16 %v1163, %v1163
    %1165 = vmatprep.subr.bf16.mxu0 0
    %1166 = vmatpush1.bf16.msra.mxu0 %v417
    %1167 = vmatprep.subr.bf16.mxu0 0
    %1168 = vmatpush1.bf16.msra.mxu0 %v416
    %1169 = vmatprep.subr.bf16.mxu0 0
    %1170 = vmatpush1.bf16.msra.mxu0 %v415
    %1171 = vmatprep.subr.bf16.mxu0 0
    %1172 = vmatpush1.bf16.msra.mxu0 %v414
    %1173 = vmatprep.subr.bf16.mxu0 0
    %1174 = vmatpush1.bf16.msra.mxu0 %v413
    %1175 = vmatprep.subr.bf16.mxu0 0
    %1176 = vmatpush1.bf16.msra.mxu0 %v412
    %1177 = vmatprep.subr.bf16.mxu0 0
    %1178 = vmatpush1.bf16.msra.mxu0 %v411
    %1179 = vmatprep.subr.bf16.mxu0 0
    %1180 = vmatpush1.bf16.msra.mxu0 %v410
    %1181 = vmatprep.subr.bf16.mxu0 0
    %1182 = vmatpush2.bf16.msra.mxu0 0
    %1183 = vmatprep.subr.bf16.mxu0 0
    %1184 = vmatpush2.bf16.msra.mxu0 0
    %1185 = vmatprep.subr.bf16.mxu0 0
    %1186 = vmatpush2.bf16.msra.mxu0 0
    %1187 = vmatprep.subr.bf16.mxu0 0
    %1188 = vmatpush2.bf16.msra.mxu0 0
    %1189 = vmatprep.subr.bf16.mxu0 0
    %1190 = vmatpush2.bf16.msra.mxu0 0
    %1191 = vmatprep.subr.bf16.mxu0 0
    %1192 = vmatpush2.bf16.msra.mxu0 0
    %1193 = vmatprep.subr.bf16.mxu0 0
    %1194 = vmatpush2.bf16.msra.mxu0 0
    %1195 = vmatprep.subr.bf16.mxu0 0
    %1196 = vmatpush2.bf16.msra.mxu0 0
    %1197 = vmatprep.mubr.bf16.mxu0 0
    %1198 = vmatmul.mubr.bf16.gmra.mxu0 %v1164
    %v1199 = vpop.f32.mrf.mxu0
    %v1200 = vadd.f32 %v156, %v1199
    %v1201 = vpop.f32.mrf.mxu0
    %v1202 = vpop.f32.mrf.mxu0
    %v1203 = vpop.f32.mrf.mxu0
    %1204 = vdwg.mxu0
    %v1205 = vmul.f32 %v1045, 0.9
    %v1206 = vadd.f32 %v1205, %v1200
    %v1207 = vsub.f32 %v1206, %v1048
    %vm1208 = vcmp.gt.f32.partialorder %v1207, 1.0
    %v1209 = vsel %vm1208, 1, 0
    %v1210 = vcvt.s32.f32 %v1209
    %v1211 = vadd.f32 %v1210, %v353
    %v1212 = vmul.f32 %v1052, 0.9
    %v1213 = vadd.f32 %v1212, %v1211
    %v1214 = vsub.f32 %v1213, %v1055
    %vm1215 = vcmp.gt.f32.partialorder %v1214, 1.0
    %v1216 = vsel %vm1215, 1, 0
    %v1217 = vcvt.s32.f32 %v1216
    %v1218 = vpack.c.bf16 %v1217, %v1217
    %1219 = vmatprep.subr.bf16.mxu0 0
    %1220 = vmatpush1.bf16.msra.mxu0 %v517
    %1221 = vmatprep.subr.bf16.mxu0 0
    %1222 = vmatpush1.bf16.msra.mxu0 %v516
    %1223 = vmatprep.subr.bf16.mxu0 0
    %1224 = vmatpush1.bf16.msra.mxu0 %v515
    %1225 = vmatprep.subr.bf16.mxu0 0
    %1226 = vmatpush1.bf16.msra.mxu0 %v514
    %1227 = vmatprep.subr.bf16.mxu0 0
    %1228 = vmatpush1.bf16.msra.mxu0 %v513
    %1229 = vmatprep.subr.bf16.mxu0 0
    %1230 = vmatpush1.bf16.msra.mxu0 %v512
    %1231 = vmatprep.subr.bf16.mxu0 0
    %1232 = vmatpush1.bf16.msra.mxu0 %v511
    %1233 = vmatprep.subr.bf16.mxu0 0
    %1234 = vmatpush1.bf16.msra.mxu0 %v510
    %1235 = vmatprep.subr.bf16.mxu0 0
    %1236 = vmatpush2.bf16.msra.mxu0 0
    %1237 = vmatprep.subr.bf16.mxu0 0
    %1238 = vmatpush2.bf16.msra.mxu0 0
    %1239 = vmatprep.subr.bf16.mxu0 0
    %1240 = vmatpush2.bf16.msra.mxu0 0
    %1241 = vmatprep.subr.bf16.mxu0 0
    %1242 = vmatpush2.bf16.msra.mxu0 0
    %1243 = vmatprep.subr.bf16.mxu0 0
    %1244 = vmatpush2.bf16.msra.mxu0 0
    %1245 = vmatprep.subr.bf16.mxu0 0
    %1246 = vmatpush2.bf16.msra.mxu0 0
    %1247 = vmatprep.subr.bf16.mxu0 0
    %1248 = vmatpush2.bf16.msra.mxu0 0
    %1249 = vmatprep.subr.bf16.mxu0 0
    %1250 = vmatpush2.bf16.msra.mxu0 0
    %1251 = vmatprep.mubr.bf16.mxu0 0
    %1252 = vmatmul.mubr.bf16.gmra.mxu0 %v1218
    %v1253 = vpop.f32.mrf.mxu0
    %v1254 = vadd.f32 %v179, %v1253
    %v1255 = vpop.f32.mrf.mxu0
    %v1256 = vpop.f32.mrf.mxu0
    %v1257 = vpop.f32.mrf.mxu0
    %1258 = vdwg.mxu0
    %v1259 = vmul.f32 %v1099, 0.9
    %v1260 = vadd.f32 %v1259, %v1254
    %v1261 = vsub.f32 %v1260, %v1102
    %vm1262 = vcmp.gt.f32.partialorder %v1261, 1.0
    %v1263 = vsel %vm1262, 1, 0
    %v1264 = vcvt.s32.f32 %v1263
    %v1265 = vpack.c.bf16 %v1264, %v1264
    %1266 = vmatprep.subr.bf16.mxu0 0
    %1267 = vmatpush1.bf16.msra.mxu0 %v611
    %1268 = vmatprep.subr.bf16.mxu0 0
    %1269 = vmatpush1.bf16.msra.mxu0 %v610
    %1270 = vmatprep.subr.bf16.mxu0 0
    %1271 = vmatpush1.bf16.msra.mxu0 %v609
    %1272 = vmatprep.subr.bf16.mxu0 0
    %1273 = vmatpush1.bf16.msra.mxu0 %v608
    %1274 = vmatprep.subr.bf16.mxu0 0
    %1275 = vmatpush1.bf16.msra.mxu0 %v607
    %1276 = vmatprep.subr.bf16.mxu0 0
    %1277 = vmatpush1.bf16.msra.mxu0 %v606
    %1278 = vmatprep.subr.bf16.mxu0 0
    %1279 = vmatpush1.bf16.msra.mxu0 %v605
    %1280 = vmatprep.subr.bf16.mxu0 0
    %1281 = vmatpush1.bf16.msra.mxu0 %v604
    %1282 = vmatprep.subr.bf16.mxu0 0
    %1283 = vmatpush2.bf16.msra.mxu0 0
    %1284 = vmatprep.subr.bf16.mxu0 0
    %1285 = vmatpush2.bf16.msra.mxu0 0
    %1286 = vmatprep.subr.bf16.mxu0 0
    %1287 = vmatpush2.bf16.msra.mxu0 0
    %1288 = vmatprep.subr.bf16.mxu0 0
    %1289 = vmatpush2.bf16.msra.mxu0 0
    %1290 = vmatprep.subr.bf16.mxu0 0
    %1291 = vmatpush2.bf16.msra.mxu0 0
    %1292 = vmatprep.subr.bf16.mxu0 0
    %1293 = vmatpush2.bf16.msra.mxu0 0
    %1294 = vmatprep.subr.bf16.mxu0 0
    %1295 = vmatpush2.bf16.msra.mxu0 0
    %1296 = vmatprep.subr.bf16.mxu0 0
    %1297 = vmatpush2.bf16.msra.mxu0 0
    %1298 = vmatprep.mubr.bf16.mxu0 0
    %1299 = vmatmul.mubr.bf16.gmra.mxu0 %v1265
    %v1300 = vpop.f32.mrf.mxu0
    %v1301 = vadd.f32 %v202, %v1300
    %v1302 = vpop.f32.mrf.mxu0
    %v1303 = vpop.f32.mrf.mxu0
    %v1304 = vpop.f32.mrf.mxu0
    %1305 = vdwg.mxu0
    %v1306 = vmul.f32 %v1146, 0.9
    %v1307 = vadd.f32 %v1306, %v1301
    %v1308 = vsub.f32 %v1307, %v1149
    %vm1309 = vcmp.gt.f32.partialorder %v1308, 1.0
    %v1310 = vsel %vm1309, 1, 0
    %v1311 = vcvt.s32.f32 %v1310
    %v1312 = vadd.f32 %v1311, %v1217
    %v1313 = vmul.f32 %v1153, 0.9
    %v1314 = vadd.f32 %v1313, %v1312
    %v1315 = vsub.f32 %v1314, %v1156
    %vm1316 = vcmp.gt.f32.partialorder %v1315, 1.0
    %v1317 = vsel %vm1316, 1, 0
    %v1318 = vcvt.s32.f32 %v1317
    %v1319 = vadd.f32 %v1157, %v1318
    %v1320 = vmul.f32 %v1160, 0.9
    %v1321 = vadd.f32 %v1320, %v355
    %v1322 = vsub.f32 %v1321, %v1163
    %vm1323 = vcmp.gt.f32.partialorder %v1322, 1.0
    %v1324 = vsel %vm1323, 1, 0
    %v1325 = vcvt.s32.f32 %v1324
    %v1326 = vpack.c.bf16 %v1325, %v1325
    %1327 = vmatprep.subr.bf16.mxu0 0
    %1328 = vmatpush1.bf16.msra.mxu0 %v417
    %1329 = vmatprep.subr.bf16.mxu0 0
    %1330 = vmatpush1.bf16.msra.mxu0 %v416
    %1331 = vmatprep.subr.bf16.mxu0 0
    %1332 = vmatpush1.bf16.msra.mxu0 %v415
    %1333 = vmatprep.subr.bf16.mxu0 0
    %1334 = vmatpush1.bf16.msra.mxu0 %v414
    %1335 = vmatprep.subr.bf16.mxu0 0
    %1336 = vmatpush1.bf16.msra.mxu0 %v413
    %1337 = vmatprep.subr.bf16.mxu0 0
    %1338 = vmatpush1.bf16.msra.mxu0 %v412
    %1339 = vmatprep.subr.bf16.mxu0 0
    %1340 = vmatpush1.bf16.msra.mxu0 %v411
    %1341 = vmatprep.subr.bf16.mxu0 0
    %1342 = vmatpush1.bf16.msra.mxu0 %v410
    %1343 = vmatprep.subr.bf16.mxu0 0
    %1344 = vmatpush2.bf16.msra.mxu0 0
    %1345 = vmatprep.subr.bf16.mxu0 0
    %1346 = vmatpush2.bf16.msra.mxu0 0
    %1347 = vmatprep.subr.bf16.mxu0 0
    %1348 = vmatpush2.bf16.msra.mxu0 0
    %1349 = vmatprep.subr.bf16.mxu0 0
    %1350 = vmatpush2.bf16.msra.mxu0 0
    %1351 = vmatprep.subr.bf16.mxu0 0
    %1352 = vmatpush2.bf16.msra.mxu0 0
    %1353 = vmatprep.subr.bf16.mxu0 0
    %1354 = vmatpush2.bf16.msra.mxu0 0
    %1355 = vmatprep.subr.bf16.mxu0 0
    %1356 = vmatpush2.bf16.msra.mxu0 0
    %1357 = vmatprep.subr.bf16.mxu0 0
    %1358 = vmatpush2.bf16.msra.mxu0 0
    %1359 = vmatprep.mubr.bf16.mxu0 0
    %1360 = vmatmul.mubr.bf16.gmra.mxu0 %v1326
    %v1361 = vpop.f32.mrf.mxu0
    %v1362 = vadd.f32 %v156, %v1361
    %v1363 = vpop.f32.mrf.mxu0
    %v1364 = vpop.f32.mrf.mxu0
    %v1365 = vpop.f32.mrf.mxu0
    %1366 = vdwg.mxu0
    %v1367 = vmul.f32 %v1207, 0.9
    %v1368 = vadd.f32 %v1367, %v1362
    %v1369 = vsub.f32 %v1368, %v1210
    %vm1370 = vcmp.gt.f32.partialorder %v1369, 1.0
    %v1371 = vsel %vm1370, 1, 0
    %v1372 = vcvt.s32.f32 %v1371
    %v1373 = vadd.f32 %v1372, %v357
    %v1374 = vmul.f32 %v1214, 0.9
    %v1375 = vadd.f32 %v1374, %v1373
    %v1376 = vsub.f32 %v1375, %v1217
    %vm1377 = vcmp.gt.f32.partialorder %v1376, 1.0
    %v1378 = vsel %vm1377, 1, 0
    %v1379 = vcvt.s32.f32 %v1378
    %v1380 = vpack.c.bf16 %v1379, %v1379
    %1381 = vmatprep.subr.bf16.mxu0 0
    %1382 = vmatpush1.bf16.msra.mxu0 %v517
    %1383 = vmatprep.subr.bf16.mxu0 0
    %1384 = vmatpush1.bf16.msra.mxu0 %v516
    %1385 = vmatprep.subr.bf16.mxu0 0
    %1386 = vmatpush1.bf16.msra.mxu0 %v515
    %1387 = vmatprep.subr.bf16.mxu0 0
    %1388 = vmatpush1.bf16.msra.mxu0 %v514
    %1389 = vmatprep.subr.bf16.mxu0 0
    %1390 = vmatpush1.bf16.msra.mxu0 %v513
    %1391 = vmatprep.subr.bf16.mxu0 0
    %1392 = vmatpush1.bf16.msra.mxu0 %v512
    %1393 = vmatprep.subr.bf16.mxu0 0
    %1394 = vmatpush1.bf16.msra.mxu0 %v511
    %1395 = vmatprep.subr.bf16.mxu0 0
    %1396 = vmatpush1.bf16.msra.mxu0 %v510
    %1397 = vmatprep.subr.bf16.mxu0 0
    %1398 = vmatpush2.bf16.msra.mxu0 0
    %1399 = vmatprep.subr.bf16.mxu0 0
    %1400 = vmatpush2.bf16.msra.mxu0 0
    %1401 = vmatprep.subr.bf16.mxu0 0
    %1402 = vmatpush2.bf16.msra.mxu0 0
    %1403 = vmatprep.subr.bf16.mxu0 0
    %1404 = vmatpush2.bf16.msra.mxu0 0
    %1405 = vmatprep.subr.bf16.mxu0 0
    %1406 = vmatpush2.bf16.msra.mxu0 0
    %1407 = vmatprep.subr.bf16.mxu0 0
    %1408 = vmatpush2.bf16.msra.mxu0 0
    %1409 = vmatprep.subr.bf16.mxu0 0
    %1410 = vmatpush2.bf16.msra.mxu0 0
    %1411 = vmatprep.subr.bf16.mxu0 0
    %1412 = vmatpush2.bf16.msra.mxu0 0
    %1413 = vmatprep.mubr.bf16.mxu0 0
    %1414 = vmatmul.mubr.bf16.gmra.mxu0 %v1380
    %v1415 = vpop.f32.mrf.mxu0
    %v1416 = vadd.f32 %v179, %v1415
    %v1417 = vpop.f32.mrf.mxu0
    %v1418 = vpop.f32.mrf.mxu0
    %v1419 = vpop.f32.mrf.mxu0
    %1420 = vdwg.mxu0
    %v1421 = vmul.f32 %v1261, 0.9
    %v1422 = vadd.f32 %v1421, %v1416
    %v1423 = vsub.f32 %v1422, %v1264
    %vm1424 = vcmp.gt.f32.partialorder %v1423, 1.0
    %v1425 = vsel %vm1424, 1, 0
    %v1426 = vcvt.s32.f32 %v1425
    %v1427 = vpack.c.bf16 %v1426, %v1426
    %1428 = vmatprep.subr.bf16.mxu0 0
    %1429 = vmatpush1.bf16.msra.mxu0 %v611
    %1430 = vmatprep.subr.bf16.mxu0 0
    %1431 = vmatpush1.bf16.msra.mxu0 %v610
    %1432 = vmatprep.subr.bf16.mxu0 0
    %1433 = vmatpush1.bf16.msra.mxu0 %v609
    %1434 = vmatprep.subr.bf16.mxu0 0
    %1435 = vmatpush1.bf16.msra.mxu0 %v608
    %1436 = vmatprep.subr.bf16.mxu0 0
    %1437 = vmatpush1.bf16.msra.mxu0 %v607
    %1438 = vmatprep.subr.bf16.mxu0 0
    %1439 = vmatpush1.bf16.msra.mxu0 %v606
    %1440 = vmatprep.subr.bf16.mxu0 0
    %1441 = vmatpush1.bf16.msra.mxu0 %v605
    %1442 = vmatprep.subr.bf16.mxu0 0
    %1443 = vmatpush1.bf16.msra.mxu0 %v604
    %1444 = vmatprep.subr.bf16.mxu0 0
    %1445 = vmatpush2.bf16.msra.mxu0 0
    %1446 = vmatprep.subr.bf16.mxu0 0
    %1447 = vmatpush2.bf16.msra.mxu0 0
    %1448 = vmatprep.subr.bf16.mxu0 0
    %1449 = vmatpush2.bf16.msra.mxu0 0
    %1450 = vmatprep.subr.bf16.mxu0 0
    %1451 = vmatpush2.bf16.msra.mxu0 0
    %1452 = vmatprep.subr.bf16.mxu0 0
    %1453 = vmatpush2.bf16.msra.mxu0 0
    %1454 = vmatprep.subr.bf16.mxu0 0
    %1455 = vmatpush2.bf16.msra.mxu0 0
    %1456 = vmatprep.subr.bf16.mxu0 0
    %1457 = vmatpush2.bf16.msra.mxu0 0
    %1458 = vmatprep.subr.bf16.mxu0 0
    %1459 = vmatpush2.bf16.msra.mxu0 0
    %1460 = vmatprep.mubr.bf16.mxu0 0
    %1461 = vmatmul.mubr.bf16.gmra.mxu0 %v1427
    %v1462 = vpop.f32.mrf.mxu0
    %v1463 = vadd.f32 %v202, %v1462
    %v1464 = vpop.f32.mrf.mxu0
    %v1465 = vpop.f32.mrf.mxu0
    %v1466 = vpop.f32.mrf.mxu0
    %1467 = vdwg.mxu0
    %v1468 = vmul.f32 %v1308, 0.9
    %v1469 = vadd.f32 %v1468, %v1463
    %v1470 = vsub.f32 %v1469, %v1311
    %vm1471 = vcmp.gt.f32.partialorder %v1470, 1.0
    %v1472 = vsel %vm1471, 1, 0
    %v1473 = vcvt.s32.f32 %v1472
    %v1474 = vadd.f32 %v1473, %v1379
    %v1475 = vmul.f32 %v1315, 0.9
    %v1476 = vadd.f32 %v1475, %v1474
    %v1477 = vsub.f32 %v1476, %v1318
    %vm1478 = vcmp.gt.f32.partialorder %v1477, 1.0
    %v1479 = vsel %vm1478, 1, 0
    %v1480 = vcvt.s32.f32 %v1479
    %v1481 = vadd.f32 %v1319, %v1480
    %v1482 = vmul.f32 %v1322, 0.9
    %v1483 = vadd.f32 %v1482, %v361
    %v1484 = vsub.f32 %v1483, %v1325
    %vm1485 = vcmp.gt.f32.partialorder %v1484, 1.0
    %v1486 = vsel %vm1485, 1, 0
    %v1487 = vcvt.s32.f32 %v1486
    %v1488 = vpack.c.bf16 %v1487, %v1487
    %1489 = vmatprep.subr.bf16.mxu0 0
    %1490 = vmatpush1.bf16.msra.mxu0 %v417
    %1491 = vmatprep.subr.bf16.mxu0 0
    %1492 = vmatpush1.bf16.msra.mxu0 %v416
    %1493 = vmatprep.subr.bf16.mxu0 0
    %1494 = vmatpush1.bf16.msra.mxu0 %v415
    %1495 = vmatprep.subr.bf16.mxu0 0
    %1496 = vmatpush1.bf16.msra.mxu0 %v414
    %1497 = vmatprep.subr.bf16.mxu0 0
    %1498 = vmatpush1.bf16.msra.mxu0 %v413
    %1499 = vmatprep.subr.bf16.mxu0 0
    %1500 = vmatpush1.bf16.msra.mxu0 %v412
    %1501 = vmatprep.subr.bf16.mxu0 0
    %1502 = vmatpush1.bf16.msra.mxu0 %v411
    %1503 = vmatprep.subr.bf16.mxu0 0
    %1504 = vmatpush1.bf16.msra.mxu0 %v410
    %1505 = vmatprep.subr.bf16.mxu0 0
    %1506 = vmatpush2.bf16.msra.mxu0 0
    %1507 = vmatprep.subr.bf16.mxu0 0
    %1508 = vmatpush2.bf16.msra.mxu0 0
    %1509 = vmatprep.subr.bf16.mxu0 0
    %1510 = vmatpush2.bf16.msra.mxu0 0
    %1511 = vmatprep.subr.bf16.mxu0 0
    %1512 = vmatpush2.bf16.msra.mxu0 0
    %1513 = vmatprep.subr.bf16.mxu0 0
    %1514 = vmatpush2.bf16.msra.mxu0 0
    %1515 = vmatprep.subr.bf16.mxu0 0
    %1516 = vmatpush2.bf16.msra.mxu0 0
    %1517 = vmatprep.subr.bf16.mxu0 0
    %1518 = vmatpush2.bf16.msra.mxu0 0
    %1519 = vmatprep.subr.bf16.mxu0 0
    %1520 = vmatpush2.bf16.msra.mxu0 0
    %1521 = vmatprep.mubr.bf16.mxu0 0
    %1522 = vmatmul.mubr.bf16.gmra.mxu0 %v1488
    %v1523 = vpop.f32.mrf.mxu0
    %v1524 = vadd.f32 %v156, %v1523
    %v1525 = vpop.f32.mrf.mxu0
    %v1526 = vpop.f32.mrf.mxu0
    %v1527 = vpop.f32.mrf.mxu0
    %1528 = vdwg.mxu0
    %v1529 = vmul.f32 %v1369, 0.9
    %v1530 = vadd.f32 %v1529, %v1524
    %v1531 = vsub.f32 %v1530, %v1372
    %vm1532 = vcmp.gt.f32.partialorder %v1531, 1.0
    %v1533 = vsel %vm1532, 1, 0
    %v1534 = vcvt.s32.f32 %v1533
    %v1535 = vadd.f32 %v1534, %v363
    %v1536 = vmul.f32 %v1376, 0.9
    %v1537 = vadd.f32 %v1536, %v1535
    %v1538 = vsub.f32 %v1537, %v1379
    %vm1539 = vcmp.gt.f32.partialorder %v1538, 1.0
    %v1540 = vsel %vm1539, 1, 0
    %v1541 = vcvt.s32.f32 %v1540
    %v1542 = vpack.c.bf16 %v1541, %v1541
    %1543 = vmatprep.subr.bf16.mxu0 0
    %1544 = vmatpush1.bf16.msra.mxu0 %v517
    %1545 = vmatprep.subr.bf16.mxu0 0
    %1546 = vmatpush1.bf16.msra.mxu0 %v516
    %1547 = vmatprep.subr.bf16.mxu0 0
    %1548 = vmatpush1.bf16.msra.mxu0 %v515
    %1549 = vmatprep.subr.bf16.mxu0 0
    %1550 = vmatpush1.bf16.msra.mxu0 %v514
    %1551 = vmatprep.subr.bf16.mxu0 0
    %1552 = vmatpush1.bf16.msra.mxu0 %v513
    %1553 = vmatprep.subr.bf16.mxu0 0
    %1554 = vmatpush1.bf16.msra.mxu0 %v512
    %1555 = vmatprep.subr.bf16.mxu0 0
    %1556 = vmatpush1.bf16.msra.mxu0 %v511
    %1557 = vmatprep.subr.bf16.mxu0 0
    %1558 = vmatpush1.bf16.msra.mxu0 %v510
    %1559 = vmatprep.subr.bf16.mxu0 0
    %1560 = vmatpush2.bf16.msra.mxu0 0
    %1561 = vmatprep.subr.bf16.mxu0 0
    %1562 = vmatpush2.bf16.msra.mxu0 0
    %1563 = vmatprep.subr.bf16.mxu0 0
    %1564 = vmatpush2.bf16.msra.mxu0 0
    %1565 = vmatprep.subr.bf16.mxu0 0
    %1566 = vmatpush2.bf16.msra.mxu0 0
    %1567 = vmatprep.subr.bf16.mxu0 0
    %1568 = vmatpush2.bf16.msra.mxu0 0
    %1569 = vmatprep.subr.bf16.mxu0 0
    %1570 = vmatpush2.bf16.msra.mxu0 0
    %1571 = vmatprep.subr.bf16.mxu0 0
    %1572 = vmatpush2.bf16.msra.mxu0 0
    %1573 = vmatprep.subr.bf16.mxu0 0
    %1574 = vmatpush2.bf16.msra.mxu0 0
    %1575 = vmatprep.mubr.bf16.mxu0 0
    %1576 = vmatmul.mubr.bf16.gmra.mxu0 %v1542
    %v1577 = vpop.f32.mrf.mxu0
    %v1578 = vadd.f32 %v179, %v1577
    %v1579 = vpop.f32.mrf.mxu0
    %v1580 = vpop.f32.mrf.mxu0
    %v1581 = vpop.f32.mrf.mxu0
    %1582 = vdwg.mxu0
    %v1583 = vmul.f32 %v1423, 0.9
    %v1584 = vadd.f32 %v1583, %v1578
    %v1585 = vsub.f32 %v1584, %v1426
    %vm1586 = vcmp.gt.f32.partialorder %v1585, 1.0
    %v1587 = vsel %vm1586, 1, 0
    %v1588 = vcvt.s32.f32 %v1587
    %v1589 = vpack.c.bf16 %v1588, %v1588
    %1590 = vmatprep.subr.bf16.mxu0 0
    %1591 = vmatpush1.bf16.msra.mxu0 %v611
    %1592 = vmatprep.subr.bf16.mxu0 0
    %1593 = vmatpush1.bf16.msra.mxu0 %v610
    %1594 = vmatprep.subr.bf16.mxu0 0
    %1595 = vmatpush1.bf16.msra.mxu0 %v609
    %1596 = vmatprep.subr.bf16.mxu0 0
    %1597 = vmatpush1.bf16.msra.mxu0 %v608
    %1598 = vmatprep.subr.bf16.mxu0 0
    %1599 = vmatpush1.bf16.msra.mxu0 %v607
    %1600 = vmatprep.subr.bf16.mxu0 0
    %1601 = vmatpush1.bf16.msra.mxu0 %v606
    %1602 = vmatprep.subr.bf16.mxu0 0
    %1603 = vmatpush1.bf16.msra.mxu0 %v605
    %1604 = vmatprep.subr.bf16.mxu0 0
    %1605 = vmatpush1.bf16.msra.mxu0 %v604
    %1606 = vmatprep.subr.bf16.mxu0 0
    %1607 = vmatpush2.bf16.msra.mxu0 0
    %1608 = vmatprep.subr.bf16.mxu0 0
    %1609 = vmatpush2.bf16.msra.mxu0 0
    %1610 = vmatprep.subr.bf16.mxu0 0
    %1611 = vmatpush2.bf16.msra.mxu0 0
    %1612 = vmatprep.subr.bf16.mxu0 0
    %1613 = vmatpush2.bf16.msra.mxu0 0
    %1614 = vmatprep.subr.bf16.mxu0 0
    %1615 = vmatpush2.bf16.msra.mxu0 0
    %1616 = vmatprep.subr.bf16.mxu0 0
    %1617 = vmatpush2.bf16.msra.mxu0 0
    %1618 = vmatprep.subr.bf16.mxu0 0
    %1619 = vmatpush2.bf16.msra.mxu0 0
    %1620 = vmatprep.subr.bf16.mxu0 0
    %1621 = vmatpush2.bf16.msra.mxu0 0
    %1622 = vmatprep.mubr.bf16.mxu0 0
    %1623 = vmatmul.mubr.bf16.gmra.mxu0 %v1589
    %v1624 = vpop.f32.mrf.mxu0
    %v1625 = vadd.f32 %v202, %v1624
    %v1626 = vpop.f32.mrf.mxu0
    %v1627 = vpop.f32.mrf.mxu0
    %v1628 = vpop.f32.mrf.mxu0
    %1629 = vdwg.mxu0
    %v1630 = vmul.f32 %v1470, 0.9
    %v1631 = vadd.f32 %v1630, %v1625
    %v1632 = vsub.f32 %v1631, %v1473
    %vm1633 = vcmp.gt.f32.partialorder %v1632, 1.0
    %v1634 = vsel %vm1633, 1, 0
    %v1635 = vcvt.s32.f32 %v1634
    %v1636 = vadd.f32 %v1635, %v1541
    %v1637 = vmul.f32 %v1477, 0.9
    %v1638 = vadd.f32 %v1637, %v1636
    %v1639 = vsub.f32 %v1638, %v1480
    %vm1640 = vcmp.gt.f32.partialorder %v1639, 1.0
    %v1641 = vsel %vm1640, 1, 0
    %v1642 = vcvt.s32.f32 %v1641
    %v1643 = vadd.f32 %v1481, %v1642
    %v1644 = vmul.f32 %v1484, 0.9
    %v1645 = vadd.f32 %v1644, %v365
    %v1646 = vsub.f32 %v1645, %v1487
    %vm1647 = vcmp.gt.f32.partialorder %v1646, 1.0
    %v1648 = vsel %vm1647, 1, 0
    %v1649 = vcvt.s32.f32 %v1648
    %v1650 = vpack.c.bf16 %v1649, %v1649
    %1651 = vmatprep.subr.bf16.mxu0 0
    %1652 = vmatpush1.bf16.msra.mxu0 %v417
    %1653 = vmatprep.subr.bf16.mxu0 0
    %1654 = vmatpush1.bf16.msra.mxu0 %v416
    %1655 = vmatprep.subr.bf16.mxu0 0
    %1656 = vmatpush1.bf16.msra.mxu0 %v415
    %1657 = vmatprep.subr.bf16.mxu0 0
    %1658 = vmatpush1.bf16.msra.mxu0 %v414
    %1659 = vmatprep.subr.bf16.mxu0 0
    %1660 = vmatpush1.bf16.msra.mxu0 %v413
    %1661 = vmatprep.subr.bf16.mxu0 0
    %1662 = vmatpush1.bf16.msra.mxu0 %v412
    %1663 = vmatprep.subr.bf16.mxu0 0
    %1664 = vmatpush1.bf16.msra.mxu0 %v411
    %1665 = vmatprep.subr.bf16.mxu0 0
    %1666 = vmatpush1.bf16.msra.mxu0 %v410
    %1667 = vmatprep.subr.bf16.mxu0 0
    %1668 = vmatpush2.bf16.msra.mxu0 0
    %1669 = vmatprep.subr.bf16.mxu0 0
    %1670 = vmatpush2.bf16.msra.mxu0 0
    %1671 = vmatprep.subr.bf16.mxu0 0
    %1672 = vmatpush2.bf16.msra.mxu0 0
    %1673 = vmatprep.subr.bf16.mxu0 0
    %1674 = vmatpush2.bf16.msra.mxu0 0
    %1675 = vmatprep.subr.bf16.mxu0 0
    %1676 = vmatpush2.bf16.msra.mxu0 0
    %1677 = vmatprep.subr.bf16.mxu0 0
    %1678 = vmatpush2.bf16.msra.mxu0 0
    %1679 = vmatprep.subr.bf16.mxu0 0
    %1680 = vmatpush2.bf16.msra.mxu0 0
    %1681 = vmatprep.subr.bf16.mxu0 0
    %1682 = vmatpush2.bf16.msra.mxu0 0
    %1683 = vmatprep.mubr.bf16.mxu0 0
    %1684 = vmatmul.mubr.bf16.gmra.mxu0 %v1650
    %v1685 = vpop.f32.mrf.mxu0
    %v1686 = vadd.f32 %v156, %v1685
    %v1687 = vpop.f32.mrf.mxu0
    %v1688 = vpop.f32.mrf.mxu0
    %v1689 = vpop.f32.mrf.mxu0
    %1690 = vdwg.mxu0
    %v1691 = vmul.f32 %v1531, 0.9
    %v1692 = vadd.f32 %v1691, %v1686
    %v1693 = vsub.f32 %v1692, %v1534
    %vm1694 = vcmp.gt.f32.partialorder %v1693, 1.0
    %v1695 = vsel %vm1694, 1, 0
    %v1696 = vcvt.s32.f32 %v1695
    %v1697 = vadd.f32 %v1696, %v367
    %v1698 = vmul.f32 %v1538, 0.9
    %v1699 = vadd.f32 %v1698, %v1697
    %v1700 = vsub.f32 %v1699, %v1541
    %vm1701 = vcmp.gt.f32.partialorder %v1700, 1.0
    %v1702 = vsel %vm1701, 1, 0
    %v1703 = vcvt.s32.f32 %v1702
    %v1704 = vpack.c.bf16 %v1703, %v1703
    %1705 = vmatprep.subr.bf16.mxu0 0
    %1706 = vmatpush1.bf16.msra.mxu0 %v517
    %1707 = vmatprep.subr.bf16.mxu0 0
    %1708 = vmatpush1.bf16.msra.mxu0 %v516
    %1709 = vmatprep.subr.bf16.mxu0 0
    %1710 = vmatpush1.bf16.msra.mxu0 %v515
    %1711 = vmatprep.subr.bf16.mxu0 0
    %1712 = vmatpush1.bf16.msra.mxu0 %v514
    %1713 = vmatprep.subr.bf16.mxu0 0
    %1714 = vmatpush1.bf16.msra.mxu0 %v513
    %1715 = vmatprep.subr.bf16.mxu0 0
    %1716 = vmatpush1.bf16.msra.mxu0 %v512
    %1717 = vmatprep.subr.bf16.mxu0 0
    %1718 = vmatpush1.bf16.msra.mxu0 %v511
    %1719 = vmatprep.subr.bf16.mxu0 0
    %1720 = vmatpush1.bf16.msra.mxu0 %v510
    %1721 = vmatprep.subr.bf16.mxu0 0
    %1722 = vmatpush2.bf16.msra.mxu0 0
    %1723 = vmatprep.subr.bf16.mxu0 0
    %1724 = vmatpush2.bf16.msra.mxu0 0
    %1725 = vmatprep.subr.bf16.mxu0 0
    %1726 = vmatpush2.bf16.msra.mxu0 0
    %1727 = vmatprep.subr.bf16.mxu0 0
    %1728 = vmatpush2.bf16.msra.mxu0 0
    %1729 = vmatprep.subr.bf16.mxu0 0
    %1730 = vmatpush2.bf16.msra.mxu0 0
    %1731 = vmatprep.subr.bf16.mxu0 0
    %1732 = vmatpush2.bf16.msra.mxu0 0
    %1733 = vmatprep.subr.bf16.mxu0 0
    %1734 = vmatpush2.bf16.msra.mxu0 0
    %1735 = vmatprep.subr.bf16.mxu0 0
    %1736 = vmatpush2.bf16.msra.mxu0 0
    %1737 = vmatprep.mubr.bf16.mxu0 0
    %1738 = vmatmul.mubr.bf16.gmra.mxu0 %v1704
    %v1739 = vpop.f32.mrf.mxu0
    %v1740 = vadd.f32 %v179, %v1739
    %v1741 = vpop.f32.mrf.mxu0
    %v1742 = vpop.f32.mrf.mxu0
    %v1743 = vpop.f32.mrf.mxu0
    %1744 = vdwg.mxu0
    %v1745 = vmul.f32 %v1585, 0.9
    %v1746 = vadd.f32 %v1745, %v1740
    %v1747 = vsub.f32 %v1746, %v1588
    %vm1748 = vcmp.gt.f32.partialorder %v1747, 1.0
    %v1749 = vsel %vm1748, 1, 0
    %v1750 = vcvt.s32.f32 %v1749
    %v1751 = vpack.c.bf16 %v1750, %v1750
    %1752 = vmatprep.subr.bf16.mxu0 0
    %1753 = vmatpush1.bf16.msra.mxu0 %v611
    %1754 = vmatprep.subr.bf16.mxu0 0
    %1755 = vmatpush1.bf16.msra.mxu0 %v610
    %1756 = vmatprep.subr.bf16.mxu0 0
    %1757 = vmatpush1.bf16.msra.mxu0 %v609
    %1758 = vmatprep.subr.bf16.mxu0 0
    %1759 = vmatpush1.bf16.msra.mxu0 %v608
    %1760 = vmatprep.subr.bf16.mxu0 0
    %1761 = vmatpush1.bf16.msra.mxu0 %v607
    %1762 = vmatprep.subr.bf16.mxu0 0
    %1763 = vmatpush1.bf16.msra.mxu0 %v606
    %1764 = vmatprep.subr.bf16.mxu0 0
    %1765 = vmatpush1.bf16.msra.mxu0 %v605
    %1766 = vmatprep.subr.bf16.mxu0 0
    %1767 = vmatpush1.bf16.msra.mxu0 %v604
    %1768 = vmatprep.subr.bf16.mxu0 0
    %1769 = vmatpush2.bf16.msra.mxu0 0
    %1770 = vmatprep.subr.bf16.mxu0 0
    %1771 = vmatpush2.bf16.msra.mxu0 0
    %1772 = vmatprep.subr.bf16.mxu0 0
    %1773 = vmatpush2.bf16.msra.mxu0 0
    %1774 = vmatprep.subr.bf16.mxu0 0
    %1775 = vmatpush2.bf16.msra.mxu0 0
    %1776 = vmatprep.subr.bf16.mxu0 0
    %1777 = vmatpush2.bf16.msra.mxu0 0
    %1778 = vmatprep.subr.bf16.mxu0 0
    %1779 = vmatpush2.bf16.msra.mxu0 0
    %1780 = vmatprep.subr.bf16.mxu0 0
    %1781 = vmatpush2.bf16.msra.mxu0 0
    %1782 = vmatprep.subr.bf16.mxu0 0
    %1783 = vmatpush2.bf16.msra.mxu0 0
    %1784 = vmatprep.mubr.bf16.mxu0 0
    %1785 = vmatmul.mubr.bf16.gmra.mxu0 %v1751
    %v1786 = vpop.f32.mrf.mxu0
    %v1787 = vadd.f32 %v202, %v1786
    %v1788 = vpop.f32.mrf.mxu0
    %v1789 = vpop.f32.mrf.mxu0
    %v1790 = vpop.f32.mrf.mxu0
    %1791 = vdwg.mxu0
    %v1792 = vmul.f32 %v1632, 0.9
    %v1793 = vadd.f32 %v1792, %v1787
    %v1794 = vsub.f32 %v1793, %v1635
    %vm1795 = vcmp.gt.f32.partialorder %v1794, 1.0
    %v1796 = vsel %vm1795, 1, 0
    %v1797 = vcvt.s32.f32 %v1796
    %v1798 = vadd.f32 %v1797, %v1703
    %v1799 = vmul.f32 %v1639, 0.9
    %v1800 = vadd.f32 %v1799, %v1798
    %v1801 = vsub.f32 %v1800, %v1642
    %vm1802 = vcmp.gt.f32.partialorder %v1801, 1.0
    %v1803 = vsel %vm1802, 1, 0
    %v1804 = vcvt.s32.f32 %v1803
    %v1805 = vadd.f32 %v1643, %v1804
    %v1806 = vld [vmem:[#allocation11] sm:$0xf]
    %v1807 = vld [vmem:[#allocation11 + $0x4] sm:$0xf]
    %v1808 = vld [vmem:[#allocation11 + $0x8] sm:$0xf]
    %v1809 = vld [vmem:[#allocation11 + $0xc] sm:$0xf]
    %v1810 = vld [vmem:[#allocation11 + $0x10] sm:$0xf]
    %v1811 = vld [vmem:[#allocation11 + $0x14] sm:$0xf]
    %v1812 = vld [vmem:[#allocation11 + $0x18] sm:$0xf]
    %v1813 = vld [vmem:[#allocation11 + $0x1c] sm:$0xf]
    %v1814 = vld [vmem:[#allocation11 + $0x20] sm:$0xf]
    %v1815 = vld [vmem:[#allocation11 + $0x24] sm:$0xf]
    %v1816 = vld [vmem:[#allocation11 + $0x28] sm:$0xf]
    %v1817 = vld [vmem:[#allocation11 + $0x2c] sm:$0xf]
    %v1818 = vld [vmem:[#allocation11 + $0x30] sm:$0xf]
    %v1819 = vld [vmem:[#allocation11 + $0x34] sm:$0xf]
    %v1820 = vld [vmem:[#allocation11 + $0x38] sm:$0xf]
    %v1821 = vld [vmem:[#allocation11 + $0x3c] sm:$0xf]
    %v1822 = vpack.c.bf16 %v1805, %v1805
    %v1823 = vld [vmem:[%s9] sm:$0x1]
    %v1825 = vlaneseq
    %v1826 = vshrl.u32 %v1825, 7
    %v1827 = vsub.s32 0, %v1826
    %v1828 = vrot.slane %v1823, %v1827
    %v1846 = vunpack.c.l.b16 %v1806
    %v1847 = vunpack.c.l.b16 %v1807
    %v1848 = vunpack.c.l.b16 %v1808
    %v1849 = vunpack.c.l.b16 %v1809
    %v1850 = vunpack.c.l.b16 %v1810
    %v1851 = vunpack.c.l.b16 %v1811
    %v1852 = vunpack.c.l.b16 %v1812
    %v1853 = vunpack.c.l.b16 %v1813
    %v1854 = vunpack.c.l.b16 %v1814
    %v1855 = vunpack.c.l.b16 %v1815
    %v1856 = vunpack.c.l.b16 %v1816
    %v1857 = vunpack.c.l.b16 %v1817
    %v1858 = vunpack.c.l.b16 %v1818
    %v1859 = vunpack.c.l.b16 %v1819
    %v1860 = vunpack.c.l.b16 %v1820
    %v1861 = vunpack.c.l.b16 %v1821
    %v1862 = vpack.c.b16 %v1847, %v1846
    %v1863 = vpack.c.b16 %v1849, %v1848
    %v1864 = vpack.c.b16 %v1851, %v1850
    %v1865 = vpack.c.b16 %v1853, %v1852
    %v1866 = vpack.c.b16 %v1855, %v1854
    %v1867 = vpack.c.b16 %v1857, %v1856
    %v1868 = vpack.c.b16 %v1859, %v1858
    %v1869 = vpack.c.b16 %v1861, %v1860
    %1878 = vmatprep.subr.bf16.mxu0 0
    %1879 = vmatpush1.bf16.msra.mxu0 %v1869
    %1880 = vmatprep.subr.bf16.mxu0 0
    %1881 = vmatpush1.bf16.msra.mxu0 %v1868
    %1882 = vmatprep.subr.bf16.mxu0 0
    %1883 = vmatpush1.bf16.msra.mxu0 %v1867
    %1884 = vmatprep.subr.bf16.mxu0 0
    %1885 = vmatpush1.bf16.msra.mxu0 %v1866
    %1886 = vmatprep.subr.bf16.mxu0 0
    %1887 = vmatpush1.bf16.msra.mxu0 %v1865
    %1888 = vmatprep.subr.bf16.mxu0 0
    %1889 = vmatpush1.bf16.msra.mxu0 %v1864
    %1890 = vmatprep.subr.bf16.mxu0 0
    %1891 = vmatpush1.bf16.msra.mxu0 %v1863
    %1892 = vmatprep.subr.bf16.mxu0 0
    %1893 = vmatpush1.bf16.msra.mxu0 %v1862
    %1894 = vmatprep.subr.bf16.mxu0 0
    %1895 = vmatpush2.bf16.msra.mxu0 0
    %1896 = vmatprep.subr.bf16.mxu0 0
    %1897 = vmatpush2.bf16.msra.mxu0 0
    %1898 = vmatprep.subr.bf16.mxu0 0
    %1899 = vmatpush2.bf16.msra.mxu0 0
    %1900 = vmatprep.subr.bf16.mxu0 0
    %1901 = vmatpush2.bf16.msra.mxu0 0
    %1902 = vmatprep.subr.bf16.mxu0 0
    %1903 = vmatpush2.bf16.msra.mxu0 0
    %1904 = vmatprep.subr.bf16.mxu0 0
    %1905 = vmatpush2.bf16.msra.mxu0 0
    %1906 = vmatprep.subr.bf16.mxu0 0
    %1907 = vmatpush2.bf16.msra.mxu0 0
    %1908 = vmatprep.subr.bf16.mxu0 0
    %1909 = vmatpush2.bf16.msra.mxu0 0
    %1910 = vmatprep.mubr.bf16.mxu0 0
    %1911 = vmatmul.mubr.bf16.gmra.mxu0 %v1822
    %v1912 = vpop.f32.mrf.mxu0
    %v1913 = vadd.f32 %v1828, %v1912
    %v1914 = vpop.f32.mrf.mxu0
    %v1915 = vpop.f32.mrf.mxu0
    %v1916 = vpop.f32.mrf.mxu0
    %1917 = vdwg.mxu0
    %1918 = vst [vmem:[#allocation13] sm:$0xff] %v1913
    // Predicated region
    $region66: #{tpu_custom_call.1} parent=1 // pred_check
      _
    $region67: #{tpu_custom_call.1} parent=1 // pred_check_branch
      %1920 = sbr.rel (0) target = $region69
    $region68: #{tpu_custom_call.1} parent=1 // pred_region
      %s1922 = ssub.s32 128, 128
      %1923 = vsyncadd [#allocation4], %s1922
      %s1925 = sshll.u32 [#allocation13], 4
      %s1926 = int_to_ptr.vmem [resolvable:$true] %s1925
      %1928 = dma.vmem_to_hbm [thread:$0]  %s1926, 128, %s10, [#allocation4]
    $region69: #{tpu_custom_call.1} parent=1 // pred_fallthru
      _
    // Predicated region
    $region70: #{tpu_custom_call.1} parent=1 // pred_check
      _
    $region71: #{tpu_custom_call.1} parent=1 // pred_check_branch
      %1930 = sbr.rel (0) target = $region73
    $region72: #{tpu_custom_call.1} parent=1 // pred_region
      %1931 = dma.done [#allocation4], 128
    $region73: #{tpu_custom_call.1} parent=1 // pred_fallthru
      _
    %1932 = vsyncpa [#allocation3], 1
    %1933 = vsyncpa [#allocation6], 1
    %1934 = vsyncpa [#allocation9], 1
    %1935 = vsyncpa [#allocation12], 1
    %1936 = vsyncpa [#allocation4], 1

</llo_original>
